<compile_context>
chip_gen: v7x
topology: tpu7x:2x2x1
jax: 0.10.0
libtpu: 0.0.40
codegen_flags: <defaults>
</compile_context>

<pallas_src>
import functools
from itertools import product

import numpy as np
import jax
import jax.numpy as jnp
from jax.experimental import pallas as pl
from jax.experimental.pallas import tpu as pltpu


# ----------------------------------------------------------------------------
# Pallas kernels
# ----------------------------------------------------------------------------
def sci_block_kernel(Lh, even_ref, odd_ref,
                     phi_w1, phi_b1, phi_w2, phi_b2,
                     psi_w1, psi_b1, psi_w2, psi_b2,
                     rho_w1, rho_b1, rho_w2, rho_b2,
                     eta_w1, eta_b1, eta_w2, eta_b2,
                     even_out_ref, odd_out_ref):
    """Fused SCINet interactor block.

    Activations are 2D (TB*Lh, C): rows ordered (sample-major, time-minor) with
    time period Lh; channels sit on the lane axis.  Each Conv1d is expanded into
    K time-shifted dense matmuls on the MXU (bf16 in, f32 accumulate).
    """

    def shift_rows(x2, s):
        # result[r] = x2[r + s] if the shift stays inside the same length-Lh
        # time segment, else 0 (zero padding of the conv).
        if s == 0:
            return x2
        cols = x2.shape[1]
        zpad = jnp.zeros((abs(s), cols), x2.dtype)
        if s > 0:
            sh = jnp.concatenate([x2[s:, :], zpad], axis=0)
        else:
            sh = jnp.concatenate([zpad, x2[:s, :]], axis=0)
        t = jax.lax.broadcasted_iota(jnp.int32, x2.shape, 0) % Lh
        ok = jnp.logical_and(t + s >= 0, t + s < Lh)
        return jnp.where(ok, sh, jnp.zeros_like(sh))

    def conv1d(x2, w_ref, b_ref):
        # x2: (rows, Cin) bf16; w_ref: (K, Cin, Cout) bf16; b_ref: (1, Cout) f32
        K = w_ref.shape[0]
        P = (K - 1) // 2
        Cout = w_ref.shape[2]
        acc = jnp.zeros((x2.shape[0], Cout), jnp.float32)
        for k in range(K):
            acc = acc + jnp.dot(shift_rows(x2, k - P), w_ref[k],
                                preferred_element_type=jnp.float32)
        return acc + b_ref[...]

    def conv_module(x2, w1, b1, w2, b2):
        h = conv1d(x2, w1, b1)
        h = jnp.where(h > 0, h, 0.01 * h)                   # LeakyReLU(0.01)
        return jnp.tanh(conv1d(h.astype(jnp.bfloat16), w2, b2))

    even = even_ref[...]
    odd = odd_ref[...]

    d = odd.astype(jnp.float32) * jnp.exp(
        conv_module(even, phi_w1, phi_b1, phi_w2, phi_b2))
    c = even.astype(jnp.float32) * jnp.exp(
        conv_module(odd, psi_w1, psi_b1, psi_w2, psi_b2))

    even_out_ref[...] = (c + conv_module(d.astype(jnp.bfloat16),
                                         eta_w1, eta_b1, eta_w2, eta_b2)
                         ).astype(even_out_ref.dtype)
    odd_out_ref[...] = (d - conv_module(c.astype(jnp.bfloat16),
                                        rho_w1, rho_b1, rho_w2, rho_b2)
                        ).astype(odd_out_ref.dtype)


def fc_kernel(f_ref, r_ref, wf_ref, w_ref, b_ref, o_ref):
    """out = F_concat @ W_realigned + residual @ W + b (realign folded into W)."""
    acc = jnp.dot(f_ref[...], wf_ref[...], preferred_element_type=jnp.float32)
    acc = acc + jnp.dot(r_ref[...], w_ref[...], preferred_element_type=jnp.float32)
    o_ref[...] = acc + b_ref[...]


# ----------------------------------------------------------------------------
# Wrappers around pallas_call
# ----------------------------------------------------------------------------
def _pick_row_tile(M, inner_rows):
    """Largest sample-tile TB with TB | M and (TB*inner_rows) % 8 == 0 (or TB == M),
    keeping roughly <= 4096 sublane rows per block."""
    cap = min(M, max(1, 4096 // max(inner_rows, 1)))
    for tb in range(cap, 0, -1):
        if M % tb == 0 and ((tb * inner_rows) % 8 == 0 or tb == M):
            return tb
    return M


def sci_block_apply(even2, odd2, params, Lh):
    """even2/odd2: (M*Lh, C) bf16 with all tree branches of a level batched into M."""
    MLh, C = even2.shape
    M = MLh // Lh
    TB = _pick_row_tile(M, Lh)
    rows = TB * Lh
    grid = (M // TB,)

    act_spec = pl.BlockSpec((rows, C), lambda i: (i, 0))

    def resident_spec(arr):                 # weights stay resident across the grid
        nd = arr.ndim
        return pl.BlockSpec(arr.shape, lambda i, _nd=nd: (0,) * _nd)

    in_specs = [act_spec, act_spec] + [resident_spec(p) for p in params]

    e, o = pl.pallas_call(
        functools.partial(sci_block_kernel, Lh),
        out_shape=(jax.ShapeDtypeStruct((MLh, C), jnp.bfloat16),
                   jax.ShapeDtypeStruct((MLh, C), jnp.bfloat16)),
        grid=grid,
        in_specs=in_specs,
        out_specs=(act_spec, act_spec),
        compiler_params=pltpu.CompilerParams(dimension_semantics=("parallel",)),
    )(even2, odd2, *params)
    return e, o


def fc_apply(f2, r2, wfold, w, b):
    """f2/r2: (B*C, S) bf16, wfold/w: (S, HP) bf16, b: (1, HP) f32 -> (B*C, HP) f32."""
    M2, S = f2.shape
    HP = wfold.shape[1]
    TM = _pick_row_tile(M2, 1)
    grid = (M2 // TM,)
    row_spec = pl.BlockSpec((TM, S), lambda i: (i, 0))
    w_spec = pl.BlockSpec((S, HP), lambda i: (0, 0))
    b_spec = pl.BlockSpec((1, HP), lambda i: (0, 0))
    return pl.pallas_call(
        fc_kernel,
        out_shape=jax.ShapeDtypeStruct((M2, HP), jnp.float32),
        grid=grid,
        in_specs=[row_spec, row_spec, w_spec, w_spec, b_spec],
        out_specs=pl.BlockSpec((TM, HP), lambda i: (i, 0)),
        compiler_params=pltpu.CompilerParams(dimension_semantics=("parallel",)),
    )(f2, r2, wfold, w, b)


# ----------------------------------------------------------------------------
# Parameter construction (deterministic, in-script)
# ----------------------------------------------------------------------------
def build_level_params(key, C, H, K):
    """Four conv modules (phi, psi, rho, eta), weights stored as K slices of (Cin, Cout)."""
    keys = jax.random.split(key, 16)
    flat = []
    for m in range(4):
        w1 = 0.2 * jax.random.normal(keys[4 * m + 0], (H, C, K), jnp.float32)
        b1 = 0.1 * jax.random.normal(keys[4 * m + 1], (H,), jnp.float32)
        w2 = 0.2 * jax.random.normal(keys[4 * m + 2], (C, H, K), jnp.float32)
        b2 = 0.1 * jax.random.normal(keys[4 * m + 3], (C,), jnp.float32)
        flat.extend([
            jnp.transpose(w1, (2, 1, 0)).astype(jnp.bfloat16),   # (K, Cin=C, Cout=H)
            b1[None, :],                                          # (1, H) f32
            jnp.transpose(w2, (2, 1, 0)).astype(jnp.bfloat16),   # (K, Cin=H, Cout=C)
            b2[None, :],                                          # (1, C) f32
        ])
    return flat


def realign(seq_size, L):
    """Exact replica of SCI_Net.realign (inverse permutation of the tree split)."""
    def pre_realign(v, combination):
        for c in combination:
            v = v[::2] if c == 0 else v[1::2]
        return v

    ve = list(range(seq_size))
    output = []
    for comb in product(range(2), repeat=L):
        output.extend(pre_realign(ve, comb))
    a = np.vstack([output, list(range(seq_size))])
    a = a[:, a[0, :].argsort()]
    return a[1, :]


# ----------------------------------------------------------------------------
# SCI_Net forward
# ----------------------------------------------------------------------------
def sci_net_forward(x, level_params, fc_wfold, fc_w, fc_b, L, horizon):
    B, C, S = x.shape
    # Time-major / channel-last layout: rows = (branch, batch), lanes = channels.
    Fs = jnp.transpose(x, (0, 2, 1)).astype(jnp.bfloat16)        # (B, S, C)
    n_br = 1
    for lvl in range(L):                  # one batched pallas_call per tree level
        M = B * n_br
        Lf = S // n_br
        Lh = Lf // 2
        # TODO(synk): even/odd deinterleave kept as an XLA strided slice in the
        # wrapper; in-kernel strided sublane loads were avoided for robustness.
        even = Fs[:, 0::2, :].reshape(M * Lh, C)
        odd = Fs[:, 1::2, :].reshape(M * Lh, C)
        e_out, o_out = sci_block_apply(even, odd, level_params[lvl], Lh)
        e_out = e_out.reshape(n_br, B, Lh, C)
        o_out = o_out.reshape(n_br, B, Lh, C)
        Fs = jnp.stack([e_out, o_out], axis=1).reshape(n_br * 2 * B, Lh, C)
        n_br *= 2
    L_fin = S // n_br
    # Branch-concat along time (pre-realign order); realign is folded into fc_wfold.
    F_cat = Fs.reshape(n_br, B, L_fin, C).transpose(1, 0, 2, 3).reshape(B, S, C)
    F2 = jnp.transpose(F_cat, (0, 2, 1)).reshape(B * C, S)       # bf16
    R2 = x.reshape(B * C, S).astype(jnp.bfloat16)                # residual
    out = fc_apply(F2, R2, fc_wfold, fc_w, fc_b)                 # (B*C, HP) f32
    return out[:, :horizon].reshape(B, C, horizon)


# ----------------------------------------------------------------------------
if __name__ == "__main__":
    # Small, consistent shapes: seq_size must be divisible by 2**L.
    B, C, expand = 2, 4, 2
    kernel_size, stride, padding = 3, 1, 1
    seq_size, L, horizon = 16, 2, 4
    H = C * expand

    key = jax.random.PRNGKey(0)
    kx, kfc, *klev = jax.random.split(key, 2 + L)

    x = jax.random.normal(kx, (B, C, seq_size), jnp.float32)

    # One (shared-weight) SCI block per level, applied to all branches at once.
    level_params = [build_level_params(klev[i], C, H, kernel_size) for i in range(L)]

    fc_w = 0.2 * jax.random.normal(kfc, (seq_size, horizon), jnp.float32)
    fc_b = jnp.zeros((horizon,), jnp.float32)

    reverse_idx = realign(seq_size, L)          # permutation r (numpy)
    rinv = np.argsort(reverse_idx)              # inverse permutation

    HP = 128                                    # lane-dense padded horizon
    fc_w_pad = jnp.zeros((seq_size, HP), jnp.float32).at[:, :horizon].set(fc_w)
    fc_wfold = fc_w_pad[jnp.asarray(rinv, dtype=jnp.int32), :]   # realign folded in
    fc_b_pad = jnp.zeros((1, HP), jnp.float32).at[:, :horizon].set(fc_b[None, :])

    fwd = jax.jit(functools.partial(sci_net_forward, L=L, horizon=horizon))
    out = fwd(x, level_params,
              fc_wfold.astype(jnp.bfloat16), fc_w_pad.astype(jnp.bfloat16), fc_b_pad)
    jax.block_until_ready(out)
    assert out.shape == (B, C, horizon)
    print("KERNEL_OK")
</pallas_src>

<mosaic_0001>
module attributes {stable_mosaic.version = 11 : i64} {
  func.func @sci_block_kernel(%arg0: i32, %arg1: memref<16x4xbf16, #tpu.memory_space<vmem>>, %arg2: memref<16x4xbf16, #tpu.memory_space<vmem>>, %arg3: memref<3x4x8xbf16, #tpu.memory_space<vmem>>, %arg4: memref<1x8xf32, #tpu.memory_space<vmem>>, %arg5: memref<3x8x4xbf16, #tpu.memory_space<vmem>>, %arg6: memref<1x4xf32, #tpu.memory_space<vmem>>, %arg7: memref<3x4x8xbf16, #tpu.memory_space<vmem>>, %arg8: memref<1x8xf32, #tpu.memory_space<vmem>>, %arg9: memref<3x8x4xbf16, #tpu.memory_space<vmem>>, %arg10: memref<1x4xf32, #tpu.memory_space<vmem>>, %arg11: memref<3x4x8xbf16, #tpu.memory_space<vmem>>, %arg12: memref<1x8xf32, #tpu.memory_space<vmem>>, %arg13: memref<3x8x4xbf16, #tpu.memory_space<vmem>>, %arg14: memref<1x4xf32, #tpu.memory_space<vmem>>, %arg15: memref<3x4x8xbf16, #tpu.memory_space<vmem>>, %arg16: memref<1x8xf32, #tpu.memory_space<vmem>>, %arg17: memref<3x8x4xbf16, #tpu.memory_space<vmem>>, %arg18: memref<1x4xf32, #tpu.memory_space<vmem>>, %arg19: memref<16x4xbf16, #tpu.memory_space<vmem>>, %arg20: memref<16x4xbf16, #tpu.memory_space<vmem>>) attributes {dimension_semantics = [#tpu.dimension_semantics<parallel>], iteration_bounds = array<i64: 1>, scalar_prefetch = 0 : i64, scratch_operands = 0 : i64, tpu.core_type = #tpu.core_type<tc>, window_params = [{transform_indices = @transform_0, window_bounds = array<i64: 16, 4>}, {transform_indices = @transform_1, window_bounds = array<i64: 16, 4>}, {pipeline_mode = #tpu.pipeline_mode<synchronous>, transform_indices = @transform_2, window_bounds = array<i64: 3, 4, 8>}, {pipeline_mode = #tpu.pipeline_mode<synchronous>, transform_indices = @transform_3, window_bounds = array<i64: 1, 8>}, {pipeline_mode = #tpu.pipeline_mode<synchronous>, transform_indices = @transform_4, window_bounds = array<i64: 3, 8, 4>}, {pipeline_mode = #tpu.pipeline_mode<synchronous>, transform_indices = @transform_5, window_bounds = array<i64: 1, 4>}, {pipeline_mode = #tpu.pipeline_mode<synchronous>, transform_indices = @transform_6, window_bounds = array<i64: 3, 4, 8>}, {pipeline_mode = #tpu.pipeline_mode<synchronous>, transform_indices = @transform_7, window_bounds = array<i64: 1, 8>}, {pipeline_mode = #tpu.pipeline_mode<synchronous>, transform_indices = @transform_8, window_bounds = array<i64: 3, 8, 4>}, {pipeline_mode = #tpu.pipeline_mode<synchronous>, transform_indices = @transform_9, window_bounds = array<i64: 1, 4>}, {pipeline_mode = #tpu.pipeline_mode<synchronous>, transform_indices = @transform_10, window_bounds = array<i64: 3, 4, 8>}, {pipeline_mode = #tpu.pipeline_mode<synchronous>, transform_indices = @transform_11, window_bounds = array<i64: 1, 8>}, {pipeline_mode = #tpu.pipeline_mode<synchronous>, transform_indices = @transform_12, window_bounds = array<i64: 3, 8, 4>}, {pipeline_mode = #tpu.pipeline_mode<synchronous>, transform_indices = @transform_13, window_bounds = array<i64: 1, 4>}, {pipeline_mode = #tpu.pipeline_mode<synchronous>, transform_indices = @transform_14, window_bounds = array<i64: 3, 4, 8>}, {pipeline_mode = #tpu.pipeline_mode<synchronous>, transform_indices = @transform_15, window_bounds = array<i64: 1, 8>}, {pipeline_mode = #tpu.pipeline_mode<synchronous>, transform_indices = @transform_16, window_bounds = array<i64: 3, 8, 4>}, {pipeline_mode = #tpu.pipeline_mode<synchronous>, transform_indices = @transform_17, window_bounds = array<i64: 1, 4>}, {transform_indices = @transform_18, window_bounds = array<i64: 16, 4>}, {transform_indices = @transform_19, window_bounds = array<i64: 16, 4>}]} {
    %c0 = arith.constant 0 : index
    %c0_0 = arith.constant 0 : index
    %0 = vector.load %arg1[%c0, %c0_0] : memref<16x4xbf16, #tpu.memory_space<vmem>>, vector<16x4xbf16>
    %c0_1 = arith.constant 0 : index
    %c0_2 = arith.constant 0 : index
    %1 = vector.load %arg2[%c0_1, %c0_2] : memref<16x4xbf16, #tpu.memory_space<vmem>>, vector<16x4xbf16>
    %2 = arith.extf %1 : vector<16x4xbf16> to vector<16x4xf32>
    %cst = arith.constant 0.000000e+00 : f32
    %3 = vector.broadcast %cst : f32 to vector<16x8xf32>
    %cst_3 = arith.constant 0.000000e+00 : bf16
    %4 = vector.broadcast %cst_3 : bf16 to vector<1x4xbf16>
    %5 = vector.extract_strided_slice %0 {offsets = [0, 0], sizes = [15, 4], strides = [1, 1]} : vector<16x4xbf16> to vector<15x4xbf16>
    %6 = tpu.concatenate %4, %5 in 0 : vector<1x4xbf16>, vector<15x4xbf16> -> vector<16x4xbf16>
    %7 = tpu.iota {dimensions = array<i32: 0>} : vector<16x4xi32>
    %c8_i32 = arith.constant 8 : i32
    %c0_i32 = arith.constant 0 : i32
    %8 = arith.cmpi eq, %c8_i32, %c0_i32 : i32
    %c1_i32 = arith.constant 1 : i32
    %9 = arith.select %8, %c1_i32, %c8_i32 : i32
    %10 = vector.broadcast %9 : i32 to vector<16x4xi32>
    %11 = arith.remsi %7, %10 : vector<16x4xi32>
    %c0_i32_4 = arith.constant 0 : i32
    %12 = vector.broadcast %c0_i32_4 : i32 to vector<16x4xi32>
    %13 = arith.cmpi ne, %11, %12 : vector<16x4xi32>
    %c0_i32_5 = arith.constant 0 : i32
    %14 = vector.broadcast %c0_i32_5 : i32 to vector<16x4xi32>
    %15 = arith.cmpi slt, %11, %14 : vector<16x4xi32>
    %c0_i32_6 = arith.constant 0 : i32
    %16 = arith.cmpi slt, %9, %c0_i32_6 : i32
    %17 = vector.broadcast %16 : i1 to vector<16x4xi1>
    %18 = vector.broadcast %17 : vector<16x4xi1> to vector<16x4xi1>
    %19 = arith.xori %15, %18 : vector<16x4xi1>
    %20 = arith.andi %19, %13 : vector<16x4xi1>
    %21 = vector.broadcast %9 : i32 to vector<16x4xi32>
    %22 = arith.addi %11, %21 : vector<16x4xi32>
    %23 = arith.select %20, %22, %11 : vector<16x4xi1>, vector<16x4xi32>
    %c-1_i32 = arith.constant -1 : i32
    %24 = vector.broadcast %c-1_i32 : i32 to vector<16x4xi32>
    %25 = arith.addi %23, %24 : vector<16x4xi32>
    %c0_i32_7 = arith.constant 0 : i32
    %26 = vector.broadcast %c0_i32_7 : i32 to vector<16x4xi32>
    %27 = arith.cmpi sge, %25, %26 : vector<16x4xi32>
    %c-1_i32_8 = arith.constant -1 : i32
    %28 = vector.broadcast %c-1_i32_8 : i32 to vector<16x4xi32>
    %29 = arith.addi %23, %28 : vector<16x4xi32>
    %c8_i32_9 = arith.constant 8 : i32
    %30 = vector.broadcast %c8_i32_9 : i32 to vector<16x4xi32>
    %31 = arith.cmpi slt, %29, %30 : vector<16x4xi32>
    %32 = arith.andi %27, %31 : vector<16x4xi1>
    %cst_10 = arith.constant 0.000000e+00 : bf16
    %33 = vector.broadcast %cst_10 : bf16 to vector<16x4xbf16>
    %34 = arith.select %32, %6, %33 : vector<16x4xi1>, vector<16x4xbf16>
    %c0_11 = arith.constant 0 : index
    %c0_12 = arith.constant 0 : index
    %c0_13 = arith.constant 0 : index
    %35 = vector.load %arg3[%c0_11, %c0_12, %c0_13] : memref<3x4x8xbf16, #tpu.memory_space<vmem>>, vector<1x4x8xbf16>
    %36 = vector.shape_cast %35 : vector<1x4x8xbf16> to vector<4x8xbf16>
    %cst_14 = arith.constant dense<0.000000e+00> : vector<16x8xf32>
    %37 = tpu.matmul %34, %36, %cst_14 {dimension_numbers = #tpu.dot_dimension_numbers<[1], [0], [0], [1], [0, 0, 1, 1], [], []>} : vector<16x4xbf16>, vector<4x8xbf16>, vector<16x8xf32> -> vector<16x8xf32>
    %38 = arith.addf %3, %37 : vector<16x8xf32>
    %c1 = arith.constant 1 : index
    %c0_15 = arith.constant 0 : index
    %c0_16 = arith.constant 0 : index
    %39 = vector.load %arg3[%c1, %c0_15, %c0_16] : memref<3x4x8xbf16, #tpu.memory_space<vmem>>, vector<1x4x8xbf16>
    %40 = vector.shape_cast %39 : vector<1x4x8xbf16> to vector<4x8xbf16>
    %cst_17 = arith.constant dense<0.000000e+00> : vector<16x8xf32>
    %41 = tpu.matmul %0, %40, %cst_17 {dimension_numbers = #tpu.dot_dimension_numbers<[1], [0], [0], [1], [0, 0, 1, 1], [], []>} : vector<16x4xbf16>, vector<4x8xbf16>, vector<16x8xf32> -> vector<16x8xf32>
    %42 = arith.addf %38, %41 : vector<16x8xf32>
    %cst_18 = arith.constant 0.000000e+00 : bf16
    %43 = vector.broadcast %cst_18 : bf16 to vector<1x4xbf16>
    %44 = vector.extract_strided_slice %0 {offsets = [1, 0], sizes = [15, 4], strides = [1, 1]} : vector<16x4xbf16> to vector<15x4xbf16>
    %45 = tpu.concatenate %44, %43 in 0 : vector<15x4xbf16>, vector<1x4xbf16> -> vector<16x4xbf16>
    %46 = tpu.iota {dimensions = array<i32: 0>} : vector<16x4xi32>
    %c8_i32_19 = arith.constant 8 : i32
    %c0_i32_20 = arith.constant 0 : i32
    %47 = arith.cmpi eq, %c8_i32_19, %c0_i32_20 : i32
    %c1_i32_21 = arith.constant 1 : i32
    %48 = arith.select %47, %c1_i32_21, %c8_i32_19 : i32
    %49 = vector.broadcast %48 : i32 to vector<16x4xi32>
    %50 = arith.remsi %46, %49 : vector<16x4xi32>
    %c0_i32_22 = arith.constant 0 : i32
    %51 = vector.broadcast %c0_i32_22 : i32 to vector<16x4xi32>
    %52 = arith.cmpi ne, %50, %51 : vector<16x4xi32>
    %c0_i32_23 = arith.constant 0 : i32
    %53 = vector.broadcast %c0_i32_23 : i32 to vector<16x4xi32>
    %54 = arith.cmpi slt, %50, %53 : vector<16x4xi32>
    %c0_i32_24 = arith.constant 0 : i32
    %55 = arith.cmpi slt, %48, %c0_i32_24 : i32
    %56 = vector.broadcast %55 : i1 to vector<16x4xi1>
    %57 = vector.broadcast %56 : vector<16x4xi1> to vector<16x4xi1>
    %58 = arith.xori %54, %57 : vector<16x4xi1>
    %59 = arith.andi %58, %52 : vector<16x4xi1>
    %60 = vector.broadcast %48 : i32 to vector<16x4xi32>
    %61 = arith.addi %50, %60 : vector<16x4xi32>
    %62 = arith.select %59, %61, %50 : vector<16x4xi1>, vector<16x4xi32>
    %c1_i32_25 = arith.constant 1 : i32
    %63 = vector.broadcast %c1_i32_25 : i32 to vector<16x4xi32>
    %64 = arith.addi %62, %63 : vector<16x4xi32>
    %c0_i32_26 = arith.constant 0 : i32
    %65 = vector.broadcast %c0_i32_26 : i32 to vector<16x4xi32>
    %66 = arith.cmpi sge, %64, %65 : vector<16x4xi32>
    %c1_i32_27 = arith.constant 1 : i32
    %67 = vector.broadcast %c1_i32_27 : i32 to vector<16x4xi32>
    %68 = arith.addi %62, %67 : vector<16x4xi32>
    %c8_i32_28 = arith.constant 8 : i32
    %69 = vector.broadcast %c8_i32_28 : i32 to vector<16x4xi32>
    %70 = arith.cmpi slt, %68, %69 : vector<16x4xi32>
    %71 = arith.andi %66, %70 : vector<16x4xi1>
    %cst_29 = arith.constant 0.000000e+00 : bf16
    %72 = vector.broadcast %cst_29 : bf16 to vector<16x4xbf16>
    %73 = arith.select %71, %45, %72 : vector<16x4xi1>, vector<16x4xbf16>
    %c2 = arith.constant 2 : index
    %c0_30 = arith.constant 0 : index
    %c0_31 = arith.constant 0 : index
    %74 = vector.load %arg3[%c2, %c0_30, %c0_31] : memref<3x4x8xbf16, #tpu.memory_space<vmem>>, vector<1x4x8xbf16>
    %75 = vector.shape_cast %74 : vector<1x4x8xbf16> to vector<4x8xbf16>
    %cst_32 = arith.constant dense<0.000000e+00> : vector<16x8xf32>
    %76 = tpu.matmul %73, %75, %cst_32 {dimension_numbers = #tpu.dot_dimension_numbers<[1], [0], [0], [1], [0, 0, 1, 1], [], []>} : vector<16x4xbf16>, vector<4x8xbf16>, vector<16x8xf32> -> vector<16x8xf32>
    %77 = arith.addf %42, %76 : vector<16x8xf32>
    %c0_33 = arith.constant 0 : index
    %c0_34 = arith.constant 0 : index
    %78 = vector.load %arg4[%c0_33, %c0_34] : memref<1x8xf32, #tpu.memory_space<vmem>>, vector<1x8xf32>
    %79 = vector.broadcast %78 : vector<1x8xf32> to vector<16x8xf32>
    %80 = arith.addf %77, %79 : vector<16x8xf32>
    %cst_35 = arith.constant 0.000000e+00 : f32
    %81 = vector.broadcast %cst_35 : f32 to vector<16x8xf32>
    %82 = arith.cmpf ogt, %80, %81 : vector<16x8xf32>
    %cst_36 = arith.constant 0.00999999977 : f32
    %83 = vector.broadcast %cst_36 : f32 to vector<16x8xf32>
    %84 = arith.mulf %83, %80 : vector<16x8xf32>
    %85 = arith.select %82, %80, %84 : vector<16x8xi1>, vector<16x8xf32>
    %86 = arith.truncf %85 : vector<16x8xf32> to vector<16x8xbf16>
    %cst_37 = arith.constant 0.000000e+00 : f32
    %87 = vector.broadcast %cst_37 : f32 to vector<16x4xf32>
    %cst_38 = arith.constant 0.000000e+00 : bf16
    %88 = vector.broadcast %cst_38 : bf16 to vector<1x8xbf16>
    %89 = vector.extract_strided_slice %86 {offsets = [0, 0], sizes = [15, 8], strides = [1, 1]} : vector<16x8xbf16> to vector<15x8xbf16>
    %90 = tpu.concatenate %88, %89 in 0 : vector<1x8xbf16>, vector<15x8xbf16> -> vector<16x8xbf16>
    %91 = tpu.iota {dimensions = array<i32: 0>} : vector<16x8xi32>
    %c8_i32_39 = arith.constant 8 : i32
    %c0_i32_40 = arith.constant 0 : i32
    %92 = arith.cmpi eq, %c8_i32_39, %c0_i32_40 : i32
    %c1_i32_41 = arith.constant 1 : i32
    %93 = arith.select %92, %c1_i32_41, %c8_i32_39 : i32
    %94 = vector.broadcast %93 : i32 to vector<16x8xi32>
    %95 = arith.remsi %91, %94 : vector<16x8xi32>
    %c0_i32_42 = arith.constant 0 : i32
    %96 = vector.broadcast %c0_i32_42 : i32 to vector<16x8xi32>
    %97 = arith.cmpi ne, %95, %96 : vector<16x8xi32>
    %c0_i32_43 = arith.constant 0 : i32
    %98 = vector.broadcast %c0_i32_43 : i32 to vector<16x8xi32>
    %99 = arith.cmpi slt, %95, %98 : vector<16x8xi32>
    %c0_i32_44 = arith.constant 0 : i32
    %100 = arith.cmpi slt, %93, %c0_i32_44 : i32
    %101 = vector.broadcast %100 : i1 to vector<16x8xi1>
    %102 = vector.broadcast %101 : vector<16x8xi1> to vector<16x8xi1>
    %103 = arith.xori %99, %102 : vector<16x8xi1>
    %104 = arith.andi %103, %97 : vector<16x8xi1>
    %105 = vector.broadcast %93 : i32 to vector<16x8xi32>
    %106 = arith.addi %95, %105 : vector<16x8xi32>
    %107 = arith.select %104, %106, %95 : vector<16x8xi1>, vector<16x8xi32>
    %c-1_i32_45 = arith.constant -1 : i32
    %108 = vector.broadcast %c-1_i32_45 : i32 to vector<16x8xi32>
    %109 = arith.addi %107, %108 : vector<16x8xi32>
    %c0_i32_46 = arith.constant 0 : i32
    %110 = vector.broadcast %c0_i32_46 : i32 to vector<16x8xi32>
    %111 = arith.cmpi sge, %109, %110 : vector<16x8xi32>
    %c-1_i32_47 = arith.constant -1 : i32
    %112 = vector.broadcast %c-1_i32_47 : i32 to vector<16x8xi32>
    %113 = arith.addi %107, %112 : vector<16x8xi32>
    %c8_i32_48 = arith.constant 8 : i32
    %114 = vector.broadcast %c8_i32_48 : i32 to vector<16x8xi32>
    %115 = arith.cmpi slt, %113, %114 : vector<16x8xi32>
    %116 = arith.andi %111, %115 : vector<16x8xi1>
    %cst_49 = arith.constant 0.000000e+00 : bf16
    %117 = vector.broadcast %cst_49 : bf16 to vector<16x8xbf16>
    %118 = arith.select %116, %90, %117 : vector<16x8xi1>, vector<16x8xbf16>
    %c0_50 = arith.constant 0 : index
    %c0_51 = arith.constant 0 : index
    %c0_52 = arith.constant 0 : index
    %119 = vector.load %arg5[%c0_50, %c0_51, %c0_52] : memref<3x8x4xbf16, #tpu.memory_space<vmem>>, vector<1x8x4xbf16>
    %120 = vector.shape_cast %119 : vector<1x8x4xbf16> to vector<8x4xbf16>
    %cst_53 = arith.constant dense<0.000000e+00> : vector<16x4xf32>
    %121 = tpu.matmul %118, %120, %cst_53 {dimension_numbers = #tpu.dot_dimension_numbers<[1], [0], [0], [1], [0, 0, 1, 1], [], []>} : vector<16x8xbf16>, vector<8x4xbf16>, vector<16x4xf32> -> vector<16x4xf32>
    %122 = arith.addf %87, %121 : vector<16x4xf32>
    %c1_54 = arith.constant 1 : index
    %c0_55 = arith.constant 0 : index
    %c0_56 = arith.constant 0 : index
    %123 = vector.load %arg5[%c1_54, %c0_55, %c0_56] : memref<3x8x4xbf16, #tpu.memory_space<vmem>>, vector<1x8x4xbf16>
    %124 = vector.shape_cast %123 : vector<1x8x4xbf16> to vector<8x4xbf16>
    %cst_57 = arith.constant dense<0.000000e+00> : vector<16x4xf32>
    %125 = tpu.matmul %86, %124, %cst_57 {dimension_numbers = #tpu.dot_dimension_numbers<[1], [0], [0], [1], [0, 0, 1, 1], [], []>} : vector<16x8xbf16>, vector<8x4xbf16>, vector<16x4xf32> -> vector<16x4xf32>
    %126 = arith.addf %122, %125 : vector<16x4xf32>
    %cst_58 = arith.constant 0.000000e+00 : bf16
    %127 = vector.broadcast %cst_58 : bf16 to vector<1x8xbf16>
    %128 = vector.extract_strided_slice %86 {offsets = [1, 0], sizes = [15, 8], strides = [1, 1]} : vector<16x8xbf16> to vector<15x8xbf16>
    %129 = tpu.concatenate %128, %127 in 0 : vector<15x8xbf16>, vector<1x8xbf16> -> vector<16x8xbf16>
    %130 = tpu.iota {dimensions = array<i32: 0>} : vector<16x8xi32>
    %c8_i32_59 = arith.constant 8 : i32
    %c0_i32_60 = arith.constant 0 : i32
    %131 = arith.cmpi eq, %c8_i32_59, %c0_i32_60 : i32
    %c1_i32_61 = arith.constant 1 : i32
    %132 = arith.select %131, %c1_i32_61, %c8_i32_59 : i32
    %133 = vector.broadcast %132 : i32 to vector<16x8xi32>
    %134 = arith.remsi %130, %133 : vector<16x8xi32>
    %c0_i32_62 = arith.constant 0 : i32
    %135 = vector.broadcast %c0_i32_62 : i32 to vector<16x8xi32>
    %136 = arith.cmpi ne, %134, %135 : vector<16x8xi32>
    %c0_i32_63 = arith.constant 0 : i32
    %137 = vector.broadcast %c0_i32_63 : i32 to vector<16x8xi32>
    %138 = arith.cmpi slt, %134, %137 : vector<16x8xi32>
    %c0_i32_64 = arith.constant 0 : i32
    %139 = arith.cmpi slt, %132, %c0_i32_64 : i32
    %140 = vector.broadcast %139 : i1 to vector<16x8xi1>
    %141 = vector.broadcast %140 : vector<16x8xi1> to vector<16x8xi1>
    %142 = arith.xori %138, %141 : vector<16x8xi1>
    %143 = arith.andi %142, %136 : vector<16x8xi1>
    %144 = vector.broadcast %132 : i32 to vector<16x8xi32>
    %145 = arith.addi %134, %144 : vector<16x8xi32>
    %146 = arith.select %143, %145, %134 : vector<16x8xi1>, vector<16x8xi32>
    %c1_i32_65 = arith.constant 1 : i32
    %147 = vector.broadcast %c1_i32_65 : i32 to vector<16x8xi32>
    %148 = arith.addi %146, %147 : vector<16x8xi32>
    %c0_i32_66 = arith.constant 0 : i32
    %149 = vector.broadcast %c0_i32_66 : i32 to vector<16x8xi32>
    %150 = arith.cmpi sge, %148, %149 : vector<16x8xi32>
    %c1_i32_67 = arith.constant 1 : i32
    %151 = vector.broadcast %c1_i32_67 : i32 to vector<16x8xi32>
    %152 = arith.addi %146, %151 : vector<16x8xi32>
    %c8_i32_68 = arith.constant 8 : i32
    %153 = vector.broadcast %c8_i32_68 : i32 to vector<16x8xi32>
    %154 = arith.cmpi slt, %152, %153 : vector<16x8xi32>
    %155 = arith.andi %150, %154 : vector<16x8xi1>
    %cst_69 = arith.constant 0.000000e+00 : bf16
    %156 = vector.broadcast %cst_69 : bf16 to vector<16x8xbf16>
    %157 = arith.select %155, %129, %156 : vector<16x8xi1>, vector<16x8xbf16>
    %c2_70 = arith.constant 2 : index
    %c0_71 = arith.constant 0 : index
    %c0_72 = arith.constant 0 : index
    %158 = vector.load %arg5[%c2_70, %c0_71, %c0_72] : memref<3x8x4xbf16, #tpu.memory_space<vmem>>, vector<1x8x4xbf16>
    %159 = vector.shape_cast %158 : vector<1x8x4xbf16> to vector<8x4xbf16>
    %cst_73 = arith.constant dense<0.000000e+00> : vector<16x4xf32>
    %160 = tpu.matmul %157, %159, %cst_73 {dimension_numbers = #tpu.dot_dimension_numbers<[1], [0], [0], [1], [0, 0, 1, 1], [], []>} : vector<16x8xbf16>, vector<8x4xbf16>, vector<16x4xf32> -> vector<16x4xf32>
    %161 = arith.addf %126, %160 : vector<16x4xf32>
    %c0_74 = arith.constant 0 : index
    %c0_75 = arith.constant 0 : index
    %162 = vector.load %arg6[%c0_74, %c0_75] : memref<1x4xf32, #tpu.memory_space<vmem>>, vector<1x4xf32>
    %163 = vector.broadcast %162 : vector<1x4xf32> to vector<16x4xf32>
    %164 = arith.addf %161, %163 : vector<16x4xf32>
    %165 = math.tanh %164 : vector<16x4xf32>
    %166 = math.exp %165 : vector<16x4xf32>
    %167 = arith.mulf %2, %166 : vector<16x4xf32>
    %168 = arith.extf %0 : vector<16x4xbf16> to vector<16x4xf32>
    %cst_76 = arith.constant 0.000000e+00 : f32
    %169 = vector.broadcast %cst_76 : f32 to vector<16x8xf32>
    %cst_77 = arith.constant 0.000000e+00 : bf16
    %170 = vector.broadcast %cst_77 : bf16 to vector<1x4xbf16>
    %171 = vector.extract_strided_slice %1 {offsets = [0, 0], sizes = [15, 4], strides = [1, 1]} : vector<16x4xbf16> to vector<15x4xbf16>
    %172 = tpu.concatenate %170, %171 in 0 : vector<1x4xbf16>, vector<15x4xbf16> -> vector<16x4xbf16>
    %173 = tpu.iota {dimensions = array<i32: 0>} : vector<16x4xi32>
    %c8_i32_78 = arith.constant 8 : i32
    %c0_i32_79 = arith.constant 0 : i32
    %174 = arith.cmpi eq, %c8_i32_78, %c0_i32_79 : i32
    %c1_i32_80 = arith.constant 1 : i32
    %175 = arith.select %174, %c1_i32_80, %c8_i32_78 : i32
    %176 = vector.broadcast %175 : i32 to vector<16x4xi32>
    %177 = arith.remsi %173, %176 : vector<16x4xi32>
    %c0_i32_81 = arith.constant 0 : i32
    %178 = vector.broadcast %c0_i32_81 : i32 to vector<16x4xi32>
    %179 = arith.cmpi ne, %177, %178 : vector<16x4xi32>
    %c0_i32_82 = arith.constant 0 : i32
    %180 = vector.broadcast %c0_i32_82 : i32 to vector<16x4xi32>
    %181 = arith.cmpi slt, %177, %180 : vector<16x4xi32>
    %c0_i32_83 = arith.constant 0 : i32
    %182 = arith.cmpi slt, %175, %c0_i32_83 : i32
    %183 = vector.broadcast %182 : i1 to vector<16x4xi1>
    %184 = vector.broadcast %183 : vector<16x4xi1> to vector<16x4xi1>
    %185 = arith.xori %181, %184 : vector<16x4xi1>
    %186 = arith.andi %185, %179 : vector<16x4xi1>
    %187 = vector.broadcast %175 : i32 to vector<16x4xi32>
    %188 = arith.addi %177, %187 : vector<16x4xi32>
    %189 = arith.select %186, %188, %177 : vector<16x4xi1>, vector<16x4xi32>
    %c-1_i32_84 = arith.constant -1 : i32
    %190 = vector.broadcast %c-1_i32_84 : i32 to vector<16x4xi32>
    %191 = arith.addi %189, %190 : vector<16x4xi32>
    %c0_i32_85 = arith.constant 0 : i32
    %192 = vector.broadcast %c0_i32_85 : i32 to vector<16x4xi32>
    %193 = arith.cmpi sge, %191, %192 : vector<16x4xi32>
    %c-1_i32_86 = arith.constant -1 : i32
    %194 = vector.broadcast %c-1_i32_86 : i32 to vector<16x4xi32>
    %195 = arith.addi %189, %194 : vector<16x4xi32>
    %c8_i32_87 = arith.constant 8 : i32
    %196 = vector.broadcast %c8_i32_87 : i32 to vector<16x4xi32>
    %197 = arith.cmpi slt, %195, %196 : vector<16x4xi32>
    %198 = arith.andi %193, %197 : vector<16x4xi1>
    %cst_88 = arith.constant 0.000000e+00 : bf16
    %199 = vector.broadcast %cst_88 : bf16 to vector<16x4xbf16>
    %200 = arith.select %198, %172, %199 : vector<16x4xi1>, vector<16x4xbf16>
    %c0_89 = arith.constant 0 : index
    %c0_90 = arith.constant 0 : index
    %c0_91 = arith.constant 0 : index
    %201 = vector.load %arg7[%c0_89, %c0_90, %c0_91] : memref<3x4x8xbf16, #tpu.memory_space<vmem>>, vector<1x4x8xbf16>
    %202 = vector.shape_cast %201 : vector<1x4x8xbf16> to vector<4x8xbf16>
    %cst_92 = arith.constant dense<0.000000e+00> : vector<16x8xf32>
    %203 = tpu.matmul %200, %202, %cst_92 {dimension_numbers = #tpu.dot_dimension_numbers<[1], [0], [0], [1], [0, 0, 1, 1], [], []>} : vector<16x4xbf16>, vector<4x8xbf16>, vector<16x8xf32> -> vector<16x8xf32>
    %204 = arith.addf %169, %203 : vector<16x8xf32>
    %c1_93 = arith.constant 1 : index
    %c0_94 = arith.constant 0 : index
    %c0_95 = arith.constant 0 : index
    %205 = vector.load %arg7[%c1_93, %c0_94, %c0_95] : memref<3x4x8xbf16, #tpu.memory_space<vmem>>, vector<1x4x8xbf16>
    %206 = vector.shape_cast %205 : vector<1x4x8xbf16> to vector<4x8xbf16>
    %cst_96 = arith.constant dense<0.000000e+00> : vector<16x8xf32>
    %207 = tpu.matmul %1, %206, %cst_96 {dimension_numbers = #tpu.dot_dimension_numbers<[1], [0], [0], [1], [0, 0, 1, 1], [], []>} : vector<16x4xbf16>, vector<4x8xbf16>, vector<16x8xf32> -> vector<16x8xf32>
    %208 = arith.addf %204, %207 : vector<16x8xf32>
    %cst_97 = arith.constant 0.000000e+00 : bf16
    %209 = vector.broadcast %cst_97 : bf16 to vector<1x4xbf16>
    %210 = vector.extract_strided_slice %1 {offsets = [1, 0], sizes = [15, 4], strides = [1, 1]} : vector<16x4xbf16> to vector<15x4xbf16>
    %211 = tpu.concatenate %210, %209 in 0 : vector<15x4xbf16>, vector<1x4xbf16> -> vector<16x4xbf16>
    %212 = tpu.iota {dimensions = array<i32: 0>} : vector<16x4xi32>
    %c8_i32_98 = arith.constant 8 : i32
    %c0_i32_99 = arith.constant 0 : i32
    %213 = arith.cmpi eq, %c8_i32_98, %c0_i32_99 : i32
    %c1_i32_100 = arith.constant 1 : i32
    %214 = arith.select %213, %c1_i32_100, %c8_i32_98 : i32
    %215 = vector.broadcast %214 : i32 to vector<16x4xi32>
    %216 = arith.remsi %212, %215 : vector<16x4xi32>
    %c0_i32_101 = arith.constant 0 : i32
    %217 = vector.broadcast %c0_i32_101 : i32 to vector<16x4xi32>
    %218 = arith.cmpi ne, %216, %217 : vector<16x4xi32>
    %c0_i32_102 = arith.constant 0 : i32
    %219 = vector.broadcast %c0_i32_102 : i32 to vector<16x4xi32>
    %220 = arith.cmpi slt, %216, %219 : vector<16x4xi32>
    %c0_i32_103 = arith.constant 0 : i32
    %221 = arith.cmpi slt, %214, %c0_i32_103 : i32
    %222 = vector.broadcast %221 : i1 to vector<16x4xi1>
    %223 = vector.broadcast %222 : vector<16x4xi1> to vector<16x4xi1>
    %224 = arith.xori %220, %223 : vector<16x4xi1>
    %225 = arith.andi %224, %218 : vector<16x4xi1>
    %226 = vector.broadcast %214 : i32 to vector<16x4xi32>
    %227 = arith.addi %216, %226 : vector<16x4xi32>
    %228 = arith.select %225, %227, %216 : vector<16x4xi1>, vector<16x4xi32>
    %c1_i32_104 = arith.constant 1 : i32
    %229 = vector.broadcast %c1_i32_104 : i32 to vector<16x4xi32>
    %230 = arith.addi %228, %229 : vector<16x4xi32>
    %c0_i32_105 = arith.constant 0 : i32
    %231 = vector.broadcast %c0_i32_105 : i32 to vector<16x4xi32>
    %232 = arith.cmpi sge, %230, %231 : vector<16x4xi32>
    %c1_i32_106 = arith.constant 1 : i32
    %233 = vector.broadcast %c1_i32_106 : i32 to vector<16x4xi32>
    %234 = arith.addi %228, %233 : vector<16x4xi32>
    %c8_i32_107 = arith.constant 8 : i32
    %235 = vector.broadcast %c8_i32_107 : i32 to vector<16x4xi32>
    %236 = arith.cmpi slt, %234, %235 : vector<16x4xi32>
    %237 = arith.andi %232, %236 : vector<16x4xi1>
    %cst_108 = arith.constant 0.000000e+00 : bf16
    %238 = vector.broadcast %cst_108 : bf16 to vector<16x4xbf16>
    %239 = arith.select %237, %211, %238 : vector<16x4xi1>, vector<16x4xbf16>
    %c2_109 = arith.constant 2 : index
    %c0_110 = arith.constant 0 : index
    %c0_111 = arith.constant 0 : index
    %240 = vector.load %arg7[%c2_109, %c0_110, %c0_111] : memref<3x4x8xbf16, #tpu.memory_space<vmem>>, vector<1x4x8xbf16>
    %241 = vector.shape_cast %240 : vector<1x4x8xbf16> to vector<4x8xbf16>
    %cst_112 = arith.constant dense<0.000000e+00> : vector<16x8xf32>
    %242 = tpu.matmul %239, %241, %cst_112 {dimension_numbers = #tpu.dot_dimension_numbers<[1], [0], [0], [1], [0, 0, 1, 1], [], []>} : vector<16x4xbf16>, vector<4x8xbf16>, vector<16x8xf32> -> vector<16x8xf32>
    %243 = arith.addf %208, %242 : vector<16x8xf32>
    %c0_113 = arith.constant 0 : index
    %c0_114 = arith.constant 0 : index
    %244 = vector.load %arg8[%c0_113, %c0_114] : memref<1x8xf32, #tpu.memory_space<vmem>>, vector<1x8xf32>
    %245 = vector.broadcast %244 : vector<1x8xf32> to vector<16x8xf32>
    %246 = arith.addf %243, %245 : vector<16x8xf32>
    %cst_115 = arith.constant 0.000000e+00 : f32
    %247 = vector.broadcast %cst_115 : f32 to vector<16x8xf32>
    %248 = arith.cmpf ogt, %246, %247 : vector<16x8xf32>
    %cst_116 = arith.constant 0.00999999977 : f32
    %249 = vector.broadcast %cst_116 : f32 to vector<16x8xf32>
    %250 = arith.mulf %249, %246 : vector<16x8xf32>
    %251 = arith.select %248, %246, %250 : vector<16x8xi1>, vector<16x8xf32>
    %252 = arith.truncf %251 : vector<16x8xf32> to vector<16x8xbf16>
    %cst_117 = arith.constant 0.000000e+00 : f32
    %253 = vector.broadcast %cst_117 : f32 to vector<16x4xf32>
    %cst_118 = arith.constant 0.000000e+00 : bf16
    %254 = vector.broadcast %cst_118 : bf16 to vector<1x8xbf16>
    %255 = vector.extract_strided_slice %252 {offsets = [0, 0], sizes = [15, 8], strides = [1, 1]} : vector<16x8xbf16> to vector<15x8xbf16>
    %256 = tpu.concatenate %254, %255 in 0 : vector<1x8xbf16>, vector<15x8xbf16> -> vector<16x8xbf16>
    %257 = tpu.iota {dimensions = array<i32: 0>} : vector<16x8xi32>
    %c8_i32_119 = arith.constant 8 : i32
    %c0_i32_120 = arith.constant 0 : i32
    %258 = arith.cmpi eq, %c8_i32_119, %c0_i32_120 : i32
    %c1_i32_121 = arith.constant 1 : i32
    %259 = arith.select %258, %c1_i32_121, %c8_i32_119 : i32
    %260 = vector.broadcast %259 : i32 to vector<16x8xi32>
    %261 = arith.remsi %257, %260 : vector<16x8xi32>
    %c0_i32_122 = arith.constant 0 : i32
    %262 = vector.broadcast %c0_i32_122 : i32 to vector<16x8xi32>
    %263 = arith.cmpi ne, %261, %262 : vector<16x8xi32>
    %c0_i32_123 = arith.constant 0 : i32
    %264 = vector.broadcast %c0_i32_123 : i32 to vector<16x8xi32>
    %265 = arith.cmpi slt, %261, %264 : vector<16x8xi32>
    %c0_i32_124 = arith.constant 0 : i32
    %266 = arith.cmpi slt, %259, %c0_i32_124 : i32
    %267 = vector.broadcast %266 : i1 to vector<16x8xi1>
    %268 = vector.broadcast %267 : vector<16x8xi1> to vector<16x8xi1>
    %269 = arith.xori %265, %268 : vector<16x8xi1>
    %270 = arith.andi %269, %263 : vector<16x8xi1>
    %271 = vector.broadcast %259 : i32 to vector<16x8xi32>
    %272 = arith.addi %261, %271 : vector<16x8xi32>
    %273 = arith.select %270, %272, %261 : vector<16x8xi1>, vector<16x8xi32>
    %c-1_i32_125 = arith.constant -1 : i32
    %274 = vector.broadcast %c-1_i32_125 : i32 to vector<16x8xi32>
    %275 = arith.addi %273, %274 : vector<16x8xi32>
    %c0_i32_126 = arith.constant 0 : i32
    %276 = vector.broadcast %c0_i32_126 : i32 to vector<16x8xi32>
    %277 = arith.cmpi sge, %275, %276 : vector<16x8xi32>
    %c-1_i32_127 = arith.constant -1 : i32
    %278 = vector.broadcast %c-1_i32_127 : i32 to vector<16x8xi32>
    %279 = arith.addi %273, %278 : vector<16x8xi32>
    %c8_i32_128 = arith.constant 8 : i32
    %280 = vector.broadcast %c8_i32_128 : i32 to vector<16x8xi32>
    %281 = arith.cmpi slt, %279, %280 : vector<16x8xi32>
    %282 = arith.andi %277, %281 : vector<16x8xi1>
    %cst_129 = arith.constant 0.000000e+00 : bf16
    %283 = vector.broadcast %cst_129 : bf16 to vector<16x8xbf16>
    %284 = arith.select %282, %256, %283 : vector<16x8xi1>, vector<16x8xbf16>
    %c0_130 = arith.constant 0 : index
    %c0_131 = arith.constant 0 : index
    %c0_132 = arith.constant 0 : index
    %285 = vector.load %arg9[%c0_130, %c0_131, %c0_132] : memref<3x8x4xbf16, #tpu.memory_space<vmem>>, vector<1x8x4xbf16>
    %286 = vector.shape_cast %285 : vector<1x8x4xbf16> to vector<8x4xbf16>
    %cst_133 = arith.constant dense<0.000000e+00> : vector<16x4xf32>
    %287 = tpu.matmul %284, %286, %cst_133 {dimension_numbers = #tpu.dot_dimension_numbers<[1], [0], [0], [1], [0, 0, 1, 1], [], []>} : vector<16x8xbf16>, vector<8x4xbf16>, vector<16x4xf32> -> vector<16x4xf32>
    %288 = arith.addf %253, %287 : vector<16x4xf32>
    %c1_134 = arith.constant 1 : index
    %c0_135 = arith.constant 0 : index
    %c0_136 = arith.constant 0 : index
    %289 = vector.load %arg9[%c1_134, %c0_135, %c0_136] : memref<3x8x4xbf16, #tpu.memory_space<vmem>>, vector<1x8x4xbf16>
    %290 = vector.shape_cast %289 : vector<1x8x4xbf16> to vector<8x4xbf16>
    %cst_137 = arith.constant dense<0.000000e+00> : vector<16x4xf32>
    %291 = tpu.matmul %252, %290, %cst_137 {dimension_numbers = #tpu.dot_dimension_numbers<[1], [0], [0], [1], [0, 0, 1, 1], [], []>} : vector<16x8xbf16>, vector<8x4xbf16>, vector<16x4xf32> -> vector<16x4xf32>
    %292 = arith.addf %288, %291 : vector<16x4xf32>
    %cst_138 = arith.constant 0.000000e+00 : bf16
    %293 = vector.broadcast %cst_138 : bf16 to vector<1x8xbf16>
    %294 = vector.extract_strided_slice %252 {offsets = [1, 0], sizes = [15, 8], strides = [1, 1]} : vector<16x8xbf16> to vector<15x8xbf16>
    %295 = tpu.concatenate %294, %293 in 0 : vector<15x8xbf16>, vector<1x8xbf16> -> vector<16x8xbf16>
    %296 = tpu.iota {dimensions = array<i32: 0>} : vector<16x8xi32>
    %c8_i32_139 = arith.constant 8 : i32
    %c0_i32_140 = arith.constant 0 : i32
    %297 = arith.cmpi eq, %c8_i32_139, %c0_i32_140 : i32
    %c1_i32_141 = arith.constant 1 : i32
    %298 = arith.select %297, %c1_i32_141, %c8_i32_139 : i32
    %299 = vector.broadcast %298 : i32 to vector<16x8xi32>
    %300 = arith.remsi %296, %299 : vector<16x8xi32>
    %c0_i32_142 = arith.constant 0 : i32
    %301 = vector.broadcast %c0_i32_142 : i32 to vector<16x8xi32>
    %302 = arith.cmpi ne, %300, %301 : vector<16x8xi32>
    %c0_i32_143 = arith.constant 0 : i32
    %303 = vector.broadcast %c0_i32_143 : i32 to vector<16x8xi32>
    %304 = arith.cmpi slt, %300, %303 : vector<16x8xi32>
    %c0_i32_144 = arith.constant 0 : i32
    %305 = arith.cmpi slt, %298, %c0_i32_144 : i32
    %306 = vector.broadcast %305 : i1 to vector<16x8xi1>
    %307 = vector.broadcast %306 : vector<16x8xi1> to vector<16x8xi1>
    %308 = arith.xori %304, %307 : vector<16x8xi1>
    %309 = arith.andi %308, %302 : vector<16x8xi1>
    %310 = vector.broadcast %298 : i32 to vector<16x8xi32>
    %311 = arith.addi %300, %310 : vector<16x8xi32>
    %312 = arith.select %309, %311, %300 : vector<16x8xi1>, vector<16x8xi32>
    %c1_i32_145 = arith.constant 1 : i32
    %313 = vector.broadcast %c1_i32_145 : i32 to vector<16x8xi32>
    %314 = arith.addi %312, %313 : vector<16x8xi32>
    %c0_i32_146 = arith.constant 0 : i32
    %315 = vector.broadcast %c0_i32_146 : i32 to vector<16x8xi32>
    %316 = arith.cmpi sge, %314, %315 : vector<16x8xi32>
    %c1_i32_147 = arith.constant 1 : i32
    %317 = vector.broadcast %c1_i32_147 : i32 to vector<16x8xi32>
    %318 = arith.addi %312, %317 : vector<16x8xi32>
    %c8_i32_148 = arith.constant 8 : i32
    %319 = vector.broadcast %c8_i32_148 : i32 to vector<16x8xi32>
    %320 = arith.cmpi slt, %318, %319 : vector<16x8xi32>
    %321 = arith.andi %316, %320 : vector<16x8xi1>
    %cst_149 = arith.constant 0.000000e+00 : bf16
    %322 = vector.broadcast %cst_149 : bf16 to vector<16x8xbf16>
    %323 = arith.select %321, %295, %322 : vector<16x8xi1>, vector<16x8xbf16>
    %c2_150 = arith.constant 2 : index
    %c0_151 = arith.constant 0 : index
    %c0_152 = arith.constant 0 : index
    %324 = vector.load %arg9[%c2_150, %c0_151, %c0_152] : memref<3x8x4xbf16, #tpu.memory_space<vmem>>, vector<1x8x4xbf16>
    %325 = vector.shape_cast %324 : vector<1x8x4xbf16> to vector<8x4xbf16>
    %cst_153 = arith.constant dense<0.000000e+00> : vector<16x4xf32>
    %326 = tpu.matmul %323, %325, %cst_153 {dimension_numbers = #tpu.dot_dimension_numbers<[1], [0], [0], [1], [0, 0, 1, 1], [], []>} : vector<16x8xbf16>, vector<8x4xbf16>, vector<16x4xf32> -> vector<16x4xf32>
    %327 = arith.addf %292, %326 : vector<16x4xf32>
    %c0_154 = arith.constant 0 : index
    %c0_155 = arith.constant 0 : index
    %328 = vector.load %arg10[%c0_154, %c0_155] : memref<1x4xf32, #tpu.memory_space<vmem>>, vector<1x4xf32>
    %329 = vector.broadcast %328 : vector<1x4xf32> to vector<16x4xf32>
    %330 = arith.addf %327, %329 : vector<16x4xf32>
    %331 = math.tanh %330 : vector<16x4xf32>
    %332 = math.exp %331 : vector<16x4xf32>
    %333 = arith.mulf %168, %332 : vector<16x4xf32>
    %334 = arith.truncf %167 : vector<16x4xf32> to vector<16x4xbf16>
    %cst_156 = arith.constant 0.000000e+00 : f32
    %335 = vector.broadcast %cst_156 : f32 to vector<16x8xf32>
    %cst_157 = arith.constant 0.000000e+00 : bf16
    %336 = vector.broadcast %cst_157 : bf16 to vector<1x4xbf16>
    %337 = vector.extract_strided_slice %334 {offsets = [0, 0], sizes = [15, 4], strides = [1, 1]} : vector<16x4xbf16> to vector<15x4xbf16>
    %338 = tpu.concatenate %336, %337 in 0 : vector<1x4xbf16>, vector<15x4xbf16> -> vector<16x4xbf16>
    %339 = tpu.iota {dimensions = array<i32: 0>} : vector<16x4xi32>
    %c8_i32_158 = arith.constant 8 : i32
    %c0_i32_159 = arith.constant 0 : i32
    %340 = arith.cmpi eq, %c8_i32_158, %c0_i32_159 : i32
    %c1_i32_160 = arith.constant 1 : i32
    %341 = arith.select %340, %c1_i32_160, %c8_i32_158 : i32
    %342 = vector.broadcast %341 : i32 to vector<16x4xi32>
    %343 = arith.remsi %339, %342 : vector<16x4xi32>
    %c0_i32_161 = arith.constant 0 : i32
    %344 = vector.broadcast %c0_i32_161 : i32 to vector<16x4xi32>
    %345 = arith.cmpi ne, %343, %344 : vector<16x4xi32>
    %c0_i32_162 = arith.constant 0 : i32
    %346 = vector.broadcast %c0_i32_162 : i32 to vector<16x4xi32>
    %347 = arith.cmpi slt, %343, %346 : vector<16x4xi32>
    %c0_i32_163 = arith.constant 0 : i32
    %348 = arith.cmpi slt, %341, %c0_i32_163 : i32
    %349 = vector.broadcast %348 : i1 to vector<16x4xi1>
    %350 = vector.broadcast %349 : vector<16x4xi1> to vector<16x4xi1>
    %351 = arith.xori %347, %350 : vector<16x4xi1>
    %352 = arith.andi %351, %345 : vector<16x4xi1>
    %353 = vector.broadcast %341 : i32 to vector<16x4xi32>
    %354 = arith.addi %343, %353 : vector<16x4xi32>
    %355 = arith.select %352, %354, %343 : vector<16x4xi1>, vector<16x4xi32>
    %c-1_i32_164 = arith.constant -1 : i32
    %356 = vector.broadcast %c-1_i32_164 : i32 to vector<16x4xi32>
    %357 = arith.addi %355, %356 : vector<16x4xi32>
    %c0_i32_165 = arith.constant 0 : i32
    %358 = vector.broadcast %c0_i32_165 : i32 to vector<16x4xi32>
    %359 = arith.cmpi sge, %357, %358 : vector<16x4xi32>
    %c-1_i32_166 = arith.constant -1 : i32
    %360 = vector.broadcast %c-1_i32_166 : i32 to vector<16x4xi32>
    %361 = arith.addi %355, %360 : vector<16x4xi32>
    %c8_i32_167 = arith.constant 8 : i32
    %362 = vector.broadcast %c8_i32_167 : i32 to vector<16x4xi32>
    %363 = arith.cmpi slt, %361, %362 : vector<16x4xi32>
    %364 = arith.andi %359, %363 : vector<16x4xi1>
    %cst_168 = arith.constant 0.000000e+00 : bf16
    %365 = vector.broadcast %cst_168 : bf16 to vector<16x4xbf16>
    %366 = arith.select %364, %338, %365 : vector<16x4xi1>, vector<16x4xbf16>
    %c0_169 = arith.constant 0 : index
    %c0_170 = arith.constant 0 : index
    %c0_171 = arith.constant 0 : index
    %367 = vector.load %arg15[%c0_169, %c0_170, %c0_171] : memref<3x4x8xbf16, #tpu.memory_space<vmem>>, vector<1x4x8xbf16>
    %368 = vector.shape_cast %367 : vector<1x4x8xbf16> to vector<4x8xbf16>
    %cst_172 = arith.constant dense<0.000000e+00> : vector<16x8xf32>
    %369 = tpu.matmul %366, %368, %cst_172 {dimension_numbers = #tpu.dot_dimension_numbers<[1], [0], [0], [1], [0, 0, 1, 1], [], []>} : vector<16x4xbf16>, vector<4x8xbf16>, vector<16x8xf32> -> vector<16x8xf32>
    %370 = arith.addf %335, %369 : vector<16x8xf32>
    %c1_173 = arith.constant 1 : index
    %c0_174 = arith.constant 0 : index
    %c0_175 = arith.constant 0 : index
    %371 = vector.load %arg15[%c1_173, %c0_174, %c0_175] : memref<3x4x8xbf16, #tpu.memory_space<vmem>>, vector<1x4x8xbf16>
    %372 = vector.shape_cast %371 : vector<1x4x8xbf16> to vector<4x8xbf16>
    %cst_176 = arith.constant dense<0.000000e+00> : vector<16x8xf32>
    %373 = tpu.matmul %334, %372, %cst_176 {dimension_numbers = #tpu.dot_dimension_numbers<[1], [0], [0], [1], [0, 0, 1, 1], [], []>} : vector<16x4xbf16>, vector<4x8xbf16>, vector<16x8xf32> -> vector<16x8xf32>
    %374 = arith.addf %370, %373 : vector<16x8xf32>
    %cst_177 = arith.constant 0.000000e+00 : bf16
    %375 = vector.broadcast %cst_177 : bf16 to vector<1x4xbf16>
    %376 = vector.extract_strided_slice %334 {offsets = [1, 0], sizes = [15, 4], strides = [1, 1]} : vector<16x4xbf16> to vector<15x4xbf16>
    %377 = tpu.concatenate %376, %375 in 0 : vector<15x4xbf16>, vector<1x4xbf16> -> vector<16x4xbf16>
    %378 = tpu.iota {dimensions = array<i32: 0>} : vector<16x4xi32>
    %c8_i32_178 = arith.constant 8 : i32
    %c0_i32_179 = arith.constant 0 : i32
    %379 = arith.cmpi eq, %c8_i32_178, %c0_i32_179 : i32
    %c1_i32_180 = arith.constant 1 : i32
    %380 = arith.select %379, %c1_i32_180, %c8_i32_178 : i32
    %381 = vector.broadcast %380 : i32 to vector<16x4xi32>
    %382 = arith.remsi %378, %381 : vector<16x4xi32>
    %c0_i32_181 = arith.constant 0 : i32
    %383 = vector.broadcast %c0_i32_181 : i32 to vector<16x4xi32>
    %384 = arith.cmpi ne, %382, %383 : vector<16x4xi32>
    %c0_i32_182 = arith.constant 0 : i32
    %385 = vector.broadcast %c0_i32_182 : i32 to vector<16x4xi32>
    %386 = arith.cmpi slt, %382, %385 : vector<16x4xi32>
    %c0_i32_183 = arith.constant 0 : i32
    %387 = arith.cmpi slt, %380, %c0_i32_183 : i32
    %388 = vector.broadcast %387 : i1 to vector<16x4xi1>
    %389 = vector.broadcast %388 : vector<16x4xi1> to vector<16x4xi1>
    %390 = arith.xori %386, %389 : vector<16x4xi1>
    %391 = arith.andi %390, %384 : vector<16x4xi1>
    %392 = vector.broadcast %380 : i32 to vector<16x4xi32>
    %393 = arith.addi %382, %392 : vector<16x4xi32>
    %394 = arith.select %391, %393, %382 : vector<16x4xi1>, vector<16x4xi32>
    %c1_i32_184 = arith.constant 1 : i32
    %395 = vector.broadcast %c1_i32_184 : i32 to vector<16x4xi32>
    %396 = arith.addi %394, %395 : vector<16x4xi32>
    %c0_i32_185 = arith.constant 0 : i32
    %397 = vector.broadcast %c0_i32_185 : i32 to vector<16x4xi32>
    %398 = arith.cmpi sge, %396, %397 : vector<16x4xi32>
    %c1_i32_186 = arith.constant 1 : i32
    %399 = vector.broadcast %c1_i32_186 : i32 to vector<16x4xi32>
    %400 = arith.addi %394, %399 : vector<16x4xi32>
    %c8_i32_187 = arith.constant 8 : i32
    %401 = vector.broadcast %c8_i32_187 : i32 to vector<16x4xi32>
    %402 = arith.cmpi slt, %400, %401 : vector<16x4xi32>
    %403 = arith.andi %398, %402 : vector<16x4xi1>
    %cst_188 = arith.constant 0.000000e+00 : bf16
    %404 = vector.broadcast %cst_188 : bf16 to vector<16x4xbf16>
    %405 = arith.select %403, %377, %404 : vector<16x4xi1>, vector<16x4xbf16>
    %c2_189 = arith.constant 2 : index
    %c0_190 = arith.constant 0 : index
    %c0_191 = arith.constant 0 : index
    %406 = vector.load %arg15[%c2_189, %c0_190, %c0_191] : memref<3x4x8xbf16, #tpu.memory_space<vmem>>, vector<1x4x8xbf16>
    %407 = vector.shape_cast %406 : vector<1x4x8xbf16> to vector<4x8xbf16>
    %cst_192 = arith.constant dense<0.000000e+00> : vector<16x8xf32>
    %408 = tpu.matmul %405, %407, %cst_192 {dimension_numbers = #tpu.dot_dimension_numbers<[1], [0], [0], [1], [0, 0, 1, 1], [], []>} : vector<16x4xbf16>, vector<4x8xbf16>, vector<16x8xf32> -> vector<16x8xf32>
    %409 = arith.addf %374, %408 : vector<16x8xf32>
    %c0_193 = arith.constant 0 : index
    %c0_194 = arith.constant 0 : index
    %410 = vector.load %arg16[%c0_193, %c0_194] : memref<1x8xf32, #tpu.memory_space<vmem>>, vector<1x8xf32>
    %411 = vector.broadcast %410 : vector<1x8xf32> to vector<16x8xf32>
    %412 = arith.addf %409, %411 : vector<16x8xf32>
    %cst_195 = arith.constant 0.000000e+00 : f32
    %413 = vector.broadcast %cst_195 : f32 to vector<16x8xf32>
    %414 = arith.cmpf ogt, %412, %413 : vector<16x8xf32>
    %cst_196 = arith.constant 0.00999999977 : f32
    %415 = vector.broadcast %cst_196 : f32 to vector<16x8xf32>
    %416 = arith.mulf %415, %412 : vector<16x8xf32>
    %417 = arith.select %414, %412, %416 : vector<16x8xi1>, vector<16x8xf32>
    %418 = arith.truncf %417 : vector<16x8xf32> to vector<16x8xbf16>
    %cst_197 = arith.constant 0.000000e+00 : f32
    %419 = vector.broadcast %cst_197 : f32 to vector<16x4xf32>
    %cst_198 = arith.constant 0.000000e+00 : bf16
    %420 = vector.broadcast %cst_198 : bf16 to vector<1x8xbf16>
    %421 = vector.extract_strided_slice %418 {offsets = [0, 0], sizes = [15, 8], strides = [1, 1]} : vector<16x8xbf16> to vector<15x8xbf16>
    %422 = tpu.concatenate %420, %421 in 0 : vector<1x8xbf16>, vector<15x8xbf16> -> vector<16x8xbf16>
    %423 = tpu.iota {dimensions = array<i32: 0>} : vector<16x8xi32>
    %c8_i32_199 = arith.constant 8 : i32
    %c0_i32_200 = arith.constant 0 : i32
    %424 = arith.cmpi eq, %c8_i32_199, %c0_i32_200 : i32
    %c1_i32_201 = arith.constant 1 : i32
    %425 = arith.select %424, %c1_i32_201, %c8_i32_199 : i32
    %426 = vector.broadcast %425 : i32 to vector<16x8xi32>
    %427 = arith.remsi %423, %426 : vector<16x8xi32>
    %c0_i32_202 = arith.constant 0 : i32
    %428 = vector.broadcast %c0_i32_202 : i32 to vector<16x8xi32>
    %429 = arith.cmpi ne, %427, %428 : vector<16x8xi32>
    %c0_i32_203 = arith.constant 0 : i32
    %430 = vector.broadcast %c0_i32_203 : i32 to vector<16x8xi32>
    %431 = arith.cmpi slt, %427, %430 : vector<16x8xi32>
    %c0_i32_204 = arith.constant 0 : i32
    %432 = arith.cmpi slt, %425, %c0_i32_204 : i32
    %433 = vector.broadcast %432 : i1 to vector<16x8xi1>
    %434 = vector.broadcast %433 : vector<16x8xi1> to vector<16x8xi1>
    %435 = arith.xori %431, %434 : vector<16x8xi1>
    %436 = arith.andi %435, %429 : vector<16x8xi1>
    %437 = vector.broadcast %425 : i32 to vector<16x8xi32>
    %438 = arith.addi %427, %437 : vector<16x8xi32>
    %439 = arith.select %436, %438, %427 : vector<16x8xi1>, vector<16x8xi32>
    %c-1_i32_205 = arith.constant -1 : i32
    %440 = vector.broadcast %c-1_i32_205 : i32 to vector<16x8xi32>
    %441 = arith.addi %439, %440 : vector<16x8xi32>
    %c0_i32_206 = arith.constant 0 : i32
    %442 = vector.broadcast %c0_i32_206 : i32 to vector<16x8xi32>
    %443 = arith.cmpi sge, %441, %442 : vector<16x8xi32>
    %c-1_i32_207 = arith.constant -1 : i32
    %444 = vector.broadcast %c-1_i32_207 : i32 to vector<16x8xi32>
    %445 = arith.addi %439, %444 : vector<16x8xi32>
    %c8_i32_208 = arith.constant 8 : i32
    %446 = vector.broadcast %c8_i32_208 : i32 to vector<16x8xi32>
    %447 = arith.cmpi slt, %445, %446 : vector<16x8xi32>
    %448 = arith.andi %443, %447 : vector<16x8xi1>
    %cst_209 = arith.constant 0.000000e+00 : bf16
    %449 = vector.broadcast %cst_209 : bf16 to vector<16x8xbf16>
    %450 = arith.select %448, %422, %449 : vector<16x8xi1>, vector<16x8xbf16>
    %c0_210 = arith.constant 0 : index
    %c0_211 = arith.constant 0 : index
    %c0_212 = arith.constant 0 : index
    %451 = vector.load %arg17[%c0_210, %c0_211, %c0_212] : memref<3x8x4xbf16, #tpu.memory_space<vmem>>, vector<1x8x4xbf16>
    %452 = vector.shape_cast %451 : vector<1x8x4xbf16> to vector<8x4xbf16>
    %cst_213 = arith.constant dense<0.000000e+00> : vector<16x4xf32>
    %453 = tpu.matmul %450, %452, %cst_213 {dimension_numbers = #tpu.dot_dimension_numbers<[1], [0], [0], [1], [0, 0, 1, 1], [], []>} : vector<16x8xbf16>, vector<8x4xbf16>, vector<16x4xf32> -> vector<16x4xf32>
    %454 = arith.addf %419, %453 : vector<16x4xf32>
    %c1_214 = arith.constant 1 : index
    %c0_215 = arith.constant 0 : index
    %c0_216 = arith.constant 0 : index
    %455 = vector.load %arg17[%c1_214, %c0_215, %c0_216] : memref<3x8x4xbf16, #tpu.memory_space<vmem>>, vector<1x8x4xbf16>
    %456 = vector.shape_cast %455 : vector<1x8x4xbf16> to vector<8x4xbf16>
    %cst_217 = arith.constant dense<0.000000e+00> : vector<16x4xf32>
    %457 = tpu.matmul %418, %456, %cst_217 {dimension_numbers = #tpu.dot_dimension_numbers<[1], [0], [0], [1], [0, 0, 1, 1], [], []>} : vector<16x8xbf16>, vector<8x4xbf16>, vector<16x4xf32> -> vector<16x4xf32>
    %458 = arith.addf %454, %457 : vector<16x4xf32>
    %cst_218 = arith.constant 0.000000e+00 : bf16
    %459 = vector.broadcast %cst_218 : bf16 to vector<1x8xbf16>
    %460 = vector.extract_strided_slice %418 {offsets = [1, 0], sizes = [15, 8], strides = [1, 1]} : vector<16x8xbf16> to vector<15x8xbf16>
    %461 = tpu.concatenate %460, %459 in 0 : vector<15x8xbf16>, vector<1x8xbf16> -> vector<16x8xbf16>
    %462 = tpu.iota {dimensions = array<i32: 0>} : vector<16x8xi32>
    %c8_i32_219 = arith.constant 8 : i32
    %c0_i32_220 = arith.constant 0 : i32
    %463 = arith.cmpi eq, %c8_i32_219, %c0_i32_220 : i32
    %c1_i32_221 = arith.constant 1 : i32
    %464 = arith.select %463, %c1_i32_221, %c8_i32_219 : i32
    %465 = vector.broadcast %464 : i32 to vector<16x8xi32>
    %466 = arith.remsi %462, %465 : vector<16x8xi32>
    %c0_i32_222 = arith.constant 0 : i32
    %467 = vector.broadcast %c0_i32_222 : i32 to vector<16x8xi32>
    %468 = arith.cmpi ne, %466, %467 : vector<16x8xi32>
    %c0_i32_223 = arith.constant 0 : i32
    %469 = vector.broadcast %c0_i32_223 : i32 to vector<16x8xi32>
    %470 = arith.cmpi slt, %466, %469 : vector<16x8xi32>
    %c0_i32_224 = arith.constant 0 : i32
    %471 = arith.cmpi slt, %464, %c0_i32_224 : i32
    %472 = vector.broadcast %471 : i1 to vector<16x8xi1>
    %473 = vector.broadcast %472 : vector<16x8xi1> to vector<16x8xi1>
    %474 = arith.xori %470, %473 : vector<16x8xi1>
    %475 = arith.andi %474, %468 : vector<16x8xi1>
    %476 = vector.broadcast %464 : i32 to vector<16x8xi32>
    %477 = arith.addi %466, %476 : vector<16x8xi32>
    %478 = arith.select %475, %477, %466 : vector<16x8xi1>, vector<16x8xi32>
    %c1_i32_225 = arith.constant 1 : i32
    %479 = vector.broadcast %c1_i32_225 : i32 to vector<16x8xi32>
    %480 = arith.addi %478, %479 : vector<16x8xi32>
    %c0_i32_226 = arith.constant 0 : i32
    %481 = vector.broadcast %c0_i32_226 : i32 to vector<16x8xi32>
    %482 = arith.cmpi sge, %480, %481 : vector<16x8xi32>
    %c1_i32_227 = arith.constant 1 : i32
    %483 = vector.broadcast %c1_i32_227 : i32 to vector<16x8xi32>
    %484 = arith.addi %478, %483 : vector<16x8xi32>
    %c8_i32_228 = arith.constant 8 : i32
    %485 = vector.broadcast %c8_i32_228 : i32 to vector<16x8xi32>
    %486 = arith.cmpi slt, %484, %485 : vector<16x8xi32>
    %487 = arith.andi %482, %486 : vector<16x8xi1>
    %cst_229 = arith.constant 0.000000e+00 : bf16
    %488 = vector.broadcast %cst_229 : bf16 to vector<16x8xbf16>
    %489 = arith.select %487, %461, %488 : vector<16x8xi1>, vector<16x8xbf16>
    %c2_230 = arith.constant 2 : index
    %c0_231 = arith.constant 0 : index
    %c0_232 = arith.constant 0 : index
    %490 = vector.load %arg17[%c2_230, %c0_231, %c0_232] : memref<3x8x4xbf16, #tpu.memory_space<vmem>>, vector<1x8x4xbf16>
    %491 = vector.shape_cast %490 : vector<1x8x4xbf16> to vector<8x4xbf16>
    %cst_233 = arith.constant dense<0.000000e+00> : vector<16x4xf32>
    %492 = tpu.matmul %489, %491, %cst_233 {dimension_numbers = #tpu.dot_dimension_numbers<[1], [0], [0], [1], [0, 0, 1, 1], [], []>} : vector<16x8xbf16>, vector<8x4xbf16>, vector<16x4xf32> -> vector<16x4xf32>
    %493 = arith.addf %458, %492 : vector<16x4xf32>
    %c0_234 = arith.constant 0 : index
    %c0_235 = arith.constant 0 : index
    %494 = vector.load %arg18[%c0_234, %c0_235] : memref<1x4xf32, #tpu.memory_space<vmem>>, vector<1x4xf32>
    %495 = vector.broadcast %494 : vector<1x4xf32> to vector<16x4xf32>
    %496 = arith.addf %493, %495 : vector<16x4xf32>
    %497 = math.tanh %496 : vector<16x4xf32>
    %498 = arith.addf %333, %497 : vector<16x4xf32>
    %499 = arith.truncf %498 : vector<16x4xf32> to vector<16x4xbf16>
    %c0_236 = arith.constant 0 : index
    %c0_237 = arith.constant 0 : index
    %500 = vector.load %arg19[%c0_236, %c0_237] : memref<16x4xbf16, #tpu.memory_space<vmem>>, vector<16x4xbf16>
    tpu.vector_store %arg19[%c0_236, %c0_237], %499 {strides = array<i32>} : memref<16x4xbf16, #tpu.memory_space<vmem>>, vector<16x4xbf16>,
    %501 = arith.truncf %333 : vector<16x4xf32> to vector<16x4xbf16>
    %cst_238 = arith.constant 0.000000e+00 : f32
    %502 = vector.broadcast %cst_238 : f32 to vector<16x8xf32>
    %cst_239 = arith.constant 0.000000e+00 : bf16
    %503 = vector.broadcast %cst_239 : bf16 to vector<1x4xbf16>
    %504 = vector.extract_strided_slice %501 {offsets = [0, 0], sizes = [15, 4], strides = [1, 1]} : vector<16x4xbf16> to vector<15x4xbf16>
    %505 = tpu.concatenate %503, %504 in 0 : vector<1x4xbf16>, vector<15x4xbf16> -> vector<16x4xbf16>
    %506 = tpu.iota {dimensions = array<i32: 0>} : vector<16x4xi32>
    %c8_i32_240 = arith.constant 8 : i32
    %c0_i32_241 = arith.constant 0 : i32
    %507 = arith.cmpi eq, %c8_i32_240, %c0_i32_241 : i32
    %c1_i32_242 = arith.constant 1 : i32
    %508 = arith.select %507, %c1_i32_242, %c8_i32_240 : i32
    %509 = vector.broadcast %508 : i32 to vector<16x4xi32>
    %510 = arith.remsi %506, %509 : vector<16x4xi32>
    %c0_i32_243 = arith.constant 0 : i32
    %511 = vector.broadcast %c0_i32_243 : i32 to vector<16x4xi32>
    %512 = arith.cmpi ne, %510, %511 : vector<16x4xi32>
    %c0_i32_244 = arith.constant 0 : i32
    %513 = vector.broadcast %c0_i32_244 : i32 to vector<16x4xi32>
    %514 = arith.cmpi slt, %510, %513 : vector<16x4xi32>
    %c0_i32_245 = arith.constant 0 : i32
    %515 = arith.cmpi slt, %508, %c0_i32_245 : i32
    %516 = vector.broadcast %515 : i1 to vector<16x4xi1>
    %517 = vector.broadcast %516 : vector<16x4xi1> to vector<16x4xi1>
    %518 = arith.xori %514, %517 : vector<16x4xi1>
    %519 = arith.andi %518, %512 : vector<16x4xi1>
    %520 = vector.broadcast %508 : i32 to vector<16x4xi32>
    %521 = arith.addi %510, %520 : vector<16x4xi32>
    %522 = arith.select %519, %521, %510 : vector<16x4xi1>, vector<16x4xi32>
    %c-1_i32_246 = arith.constant -1 : i32
    %523 = vector.broadcast %c-1_i32_246 : i32 to vector<16x4xi32>
    %524 = arith.addi %522, %523 : vector<16x4xi32>
    %c0_i32_247 = arith.constant 0 : i32
    %525 = vector.broadcast %c0_i32_247 : i32 to vector<16x4xi32>
    %526 = arith.cmpi sge, %524, %525 : vector<16x4xi32>
    %c-1_i32_248 = arith.constant -1 : i32
    %527 = vector.broadcast %c-1_i32_248 : i32 to vector<16x4xi32>
    %528 = arith.addi %522, %527 : vector<16x4xi32>
    %c8_i32_249 = arith.constant 8 : i32
    %529 = vector.broadcast %c8_i32_249 : i32 to vector<16x4xi32>
    %530 = arith.cmpi slt, %528, %529 : vector<16x4xi32>
    %531 = arith.andi %526, %530 : vector<16x4xi1>
    %cst_250 = arith.constant 0.000000e+00 : bf16
    %532 = vector.broadcast %cst_250 : bf16 to vector<16x4xbf16>
    %533 = arith.select %531, %505, %532 : vector<16x4xi1>, vector<16x4xbf16>
    %c0_251 = arith.constant 0 : index
    %c0_252 = arith.constant 0 : index
    %c0_253 = arith.constant 0 : index
    %534 = vector.load %arg11[%c0_251, %c0_252, %c0_253] : memref<3x4x8xbf16, #tpu.memory_space<vmem>>, vector<1x4x8xbf16>
    %535 = vector.shape_cast %534 : vector<1x4x8xbf16> to vector<4x8xbf16>
    %cst_254 = arith.constant dense<0.000000e+00> : vector<16x8xf32>
    %536 = tpu.matmul %533, %535, %cst_254 {dimension_numbers = #tpu.dot_dimension_numbers<[1], [0], [0], [1], [0, 0, 1, 1], [], []>} : vector<16x4xbf16>, vector<4x8xbf16>, vector<16x8xf32> -> vector<16x8xf32>
    %537 = arith.addf %502, %536 : vector<16x8xf32>
    %c1_255 = arith.constant 1 : index
    %c0_256 = arith.constant 0 : index
    %c0_257 = arith.constant 0 : index
    %538 = vector.load %arg11[%c1_255, %c0_256, %c0_257] : memref<3x4x8xbf16, #tpu.memory_space<vmem>>, vector<1x4x8xbf16>
    %539 = vector.shape_cast %538 : vector<1x4x8xbf16> to vector<4x8xbf16>
    %cst_258 = arith.constant dense<0.000000e+00> : vector<16x8xf32>
    %540 = tpu.matmul %501, %539, %cst_258 {dimension_numbers = #tpu.dot_dimension_numbers<[1], [0], [0], [1], [0, 0, 1, 1], [], []>} : vector<16x4xbf16>, vector<4x8xbf16>, vector<16x8xf32> -> vector<16x8xf32>
    %541 = arith.addf %537, %540 : vector<16x8xf32>
    %cst_259 = arith.constant 0.000000e+00 : bf16
    %542 = vector.broadcast %cst_259 : bf16 to vector<1x4xbf16>
    %543 = vector.extract_strided_slice %501 {offsets = [1, 0], sizes = [15, 4], strides = [1, 1]} : vector<16x4xbf16> to vector<15x4xbf16>
    %544 = tpu.concatenate %543, %542 in 0 : vector<15x4xbf16>, vector<1x4xbf16> -> vector<16x4xbf16>
    %545 = tpu.iota {dimensions = array<i32: 0>} : vector<16x4xi32>
    %c8_i32_260 = arith.constant 8 : i32
    %c0_i32_261 = arith.constant 0 : i32
    %546 = arith.cmpi eq, %c8_i32_260, %c0_i32_261 : i32
    %c1_i32_262 = arith.constant 1 : i32
    %547 = arith.select %546, %c1_i32_262, %c8_i32_260 : i32
    %548 = vector.broadcast %547 : i32 to vector<16x4xi32>
    %549 = arith.remsi %545, %548 : vector<16x4xi32>
    %c0_i32_263 = arith.constant 0 : i32
    %550 = vector.broadcast %c0_i32_263 : i32 to vector<16x4xi32>
    %551 = arith.cmpi ne, %549, %550 : vector<16x4xi32>
    %c0_i32_264 = arith.constant 0 : i32
    %552 = vector.broadcast %c0_i32_264 : i32 to vector<16x4xi32>
    %553 = arith.cmpi slt, %549, %552 : vector<16x4xi32>
    %c0_i32_265 = arith.constant 0 : i32
    %554 = arith.cmpi slt, %547, %c0_i32_265 : i32
    %555 = vector.broadcast %554 : i1 to vector<16x4xi1>
    %556 = vector.broadcast %555 : vector<16x4xi1> to vector<16x4xi1>
    %557 = arith.xori %553, %556 : vector<16x4xi1>
    %558 = arith.andi %557, %551 : vector<16x4xi1>
    %559 = vector.broadcast %547 : i32 to vector<16x4xi32>
    %560 = arith.addi %549, %559 : vector<16x4xi32>
    %561 = arith.select %558, %560, %549 : vector<16x4xi1>, vector<16x4xi32>
    %c1_i32_266 = arith.constant 1 : i32
    %562 = vector.broadcast %c1_i32_266 : i32 to vector<16x4xi32>
    %563 = arith.addi %561, %562 : vector<16x4xi32>
    %c0_i32_267 = arith.constant 0 : i32
    %564 = vector.broadcast %c0_i32_267 : i32 to vector<16x4xi32>
    %565 = arith.cmpi sge, %563, %564 : vector<16x4xi32>
    %c1_i32_268 = arith.constant 1 : i32
    %566 = vector.broadcast %c1_i32_268 : i32 to vector<16x4xi32>
    %567 = arith.addi %561, %566 : vector<16x4xi32>
    %c8_i32_269 = arith.constant 8 : i32
    %568 = vector.broadcast %c8_i32_269 : i32 to vector<16x4xi32>
    %569 = arith.cmpi slt, %567, %568 : vector<16x4xi32>
    %570 = arith.andi %565, %569 : vector<16x4xi1>
    %cst_270 = arith.constant 0.000000e+00 : bf16
    %571 = vector.broadcast %cst_270 : bf16 to vector<16x4xbf16>
    %572 = arith.select %570, %544, %571 : vector<16x4xi1>, vector<16x4xbf16>
    %c2_271 = arith.constant 2 : index
    %c0_272 = arith.constant 0 : index
    %c0_273 = arith.constant 0 : index
    %573 = vector.load %arg11[%c2_271, %c0_272, %c0_273] : memref<3x4x8xbf16, #tpu.memory_space<vmem>>, vector<1x4x8xbf16>
    %574 = vector.shape_cast %573 : vector<1x4x8xbf16> to vector<4x8xbf16>
    %cst_274 = arith.constant dense<0.000000e+00> : vector<16x8xf32>
    %575 = tpu.matmul %572, %574, %cst_274 {dimension_numbers = #tpu.dot_dimension_numbers<[1], [0], [0], [1], [0, 0, 1, 1], [], []>} : vector<16x4xbf16>, vector<4x8xbf16>, vector<16x8xf32> -> vector<16x8xf32>
    %576 = arith.addf %541, %575 : vector<16x8xf32>
    %c0_275 = arith.constant 0 : index
    %c0_276 = arith.constant 0 : index
    %577 = vector.load %arg12[%c0_275, %c0_276] : memref<1x8xf32, #tpu.memory_space<vmem>>, vector<1x8xf32>
    %578 = vector.broadcast %577 : vector<1x8xf32> to vector<16x8xf32>
    %579 = arith.addf %576, %578 : vector<16x8xf32>
    %cst_277 = arith.constant 0.000000e+00 : f32
    %580 = vector.broadcast %cst_277 : f32 to vector<16x8xf32>
    %581 = arith.cmpf ogt, %579, %580 : vector<16x8xf32>
    %cst_278 = arith.constant 0.00999999977 : f32
    %582 = vector.broadcast %cst_278 : f32 to vector<16x8xf32>
    %583 = arith.mulf %582, %579 : vector<16x8xf32>
    %584 = arith.select %581, %579, %583 : vector<16x8xi1>, vector<16x8xf32>
    %585 = arith.truncf %584 : vector<16x8xf32> to vector<16x8xbf16>
    %cst_279 = arith.constant 0.000000e+00 : f32
    %586 = vector.broadcast %cst_279 : f32 to vector<16x4xf32>
    %cst_280 = arith.constant 0.000000e+00 : bf16
    %587 = vector.broadcast %cst_280 : bf16 to vector<1x8xbf16>
    %588 = vector.extract_strided_slice %585 {offsets = [0, 0], sizes = [15, 8], strides = [1, 1]} : vector<16x8xbf16> to vector<15x8xbf16>
    %589 = tpu.concatenate %587, %588 in 0 : vector<1x8xbf16>, vector<15x8xbf16> -> vector<16x8xbf16>
    %590 = tpu.iota {dimensions = array<i32: 0>} : vector<16x8xi32>
    %c8_i32_281 = arith.constant 8 : i32
    %c0_i32_282 = arith.constant 0 : i32
    %591 = arith.cmpi eq, %c8_i32_281, %c0_i32_282 : i32
    %c1_i32_283 = arith.constant 1 : i32
    %592 = arith.select %591, %c1_i32_283, %c8_i32_281 : i32
    %593 = vector.broadcast %592 : i32 to vector<16x8xi32>
    %594 = arith.remsi %590, %593 : vector<16x8xi32>
    %c0_i32_284 = arith.constant 0 : i32
    %595 = vector.broadcast %c0_i32_284 : i32 to vector<16x8xi32>
    %596 = arith.cmpi ne, %594, %595 : vector<16x8xi32>
    %c0_i32_285 = arith.constant 0 : i32
    %597 = vector.broadcast %c0_i32_285 : i32 to vector<16x8xi32>
    %598 = arith.cmpi slt, %594, %597 : vector<16x8xi32>
    %c0_i32_286 = arith.constant 0 : i32
    %599 = arith.cmpi slt, %592, %c0_i32_286 : i32
    %600 = vector.broadcast %599 : i1 to vector<16x8xi1>
    %601 = vector.broadcast %600 : vector<16x8xi1> to vector<16x8xi1>
    %602 = arith.xori %598, %601 : vector<16x8xi1>
    %603 = arith.andi %602, %596 : vector<16x8xi1>
    %604 = vector.broadcast %592 : i32 to vector<16x8xi32>
    %605 = arith.addi %594, %604 : vector<16x8xi32>
    %606 = arith.select %603, %605, %594 : vector<16x8xi1>, vector<16x8xi32>
    %c-1_i32_287 = arith.constant -1 : i32
    %607 = vector.broadcast %c-1_i32_287 : i32 to vector<16x8xi32>
    %608 = arith.addi %606, %607 : vector<16x8xi32>
    %c0_i32_288 = arith.constant 0 : i32
    %609 = vector.broadcast %c0_i32_288 : i32 to vector<16x8xi32>
    %610 = arith.cmpi sge, %608, %609 : vector<16x8xi32>
    %c-1_i32_289 = arith.constant -1 : i32
    %611 = vector.broadcast %c-1_i32_289 : i32 to vector<16x8xi32>
    %612 = arith.addi %606, %611 : vector<16x8xi32>
    %c8_i32_290 = arith.constant 8 : i32
    %613 = vector.broadcast %c8_i32_290 : i32 to vector<16x8xi32>
    %614 = arith.cmpi slt, %612, %613 : vector<16x8xi32>
    %615 = arith.andi %610, %614 : vector<16x8xi1>
    %cst_291 = arith.constant 0.000000e+00 : bf16
    %616 = vector.broadcast %cst_291 : bf16 to vector<16x8xbf16>
    %617 = arith.select %615, %589, %616 : vector<16x8xi1>, vector<16x8xbf16>
    %c0_292 = arith.constant 0 : index
    %c0_293 = arith.constant 0 : index
    %c0_294 = arith.constant 0 : index
    %618 = vector.load %arg13[%c0_292, %c0_293, %c0_294] : memref<3x8x4xbf16, #tpu.memory_space<vmem>>, vector<1x8x4xbf16>
    %619 = vector.shape_cast %618 : vector<1x8x4xbf16> to vector<8x4xbf16>
    %cst_295 = arith.constant dense<0.000000e+00> : vector<16x4xf32>
    %620 = tpu.matmul %617, %619, %cst_295 {dimension_numbers = #tpu.dot_dimension_numbers<[1], [0], [0], [1], [0, 0, 1, 1], [], []>} : vector<16x8xbf16>, vector<8x4xbf16>, vector<16x4xf32> -> vector<16x4xf32>
    %621 = arith.addf %586, %620 : vector<16x4xf32>
    %c1_296 = arith.constant 1 : index
    %c0_297 = arith.constant 0 : index
    %c0_298 = arith.constant 0 : index
    %622 = vector.load %arg13[%c1_296, %c0_297, %c0_298] : memref<3x8x4xbf16, #tpu.memory_space<vmem>>, vector<1x8x4xbf16>
    %623 = vector.shape_cast %622 : vector<1x8x4xbf16> to vector<8x4xbf16>
    %cst_299 = arith.constant dense<0.000000e+00> : vector<16x4xf32>
    %624 = tpu.matmul %585, %623, %cst_299 {dimension_numbers = #tpu.dot_dimension_numbers<[1], [0], [0], [1], [0, 0, 1, 1], [], []>} : vector<16x8xbf16>, vector<8x4xbf16>, vector<16x4xf32> -> vector<16x4xf32>
    %625 = arith.addf %621, %624 : vector<16x4xf32>
    %cst_300 = arith.constant 0.000000e+00 : bf16
    %626 = vector.broadcast %cst_300 : bf16 to vector<1x8xbf16>
    %627 = vector.extract_strided_slice %585 {offsets = [1, 0], sizes = [15, 8], strides = [1, 1]} : vector<16x8xbf16> to vector<15x8xbf16>
    %628 = tpu.concatenate %627, %626 in 0 : vector<15x8xbf16>, vector<1x8xbf16> -> vector<16x8xbf16>
    %629 = tpu.iota {dimensions = array<i32: 0>} : vector<16x8xi32>
    %c8_i32_301 = arith.constant 8 : i32
    %c0_i32_302 = arith.constant 0 : i32
    %630 = arith.cmpi eq, %c8_i32_301, %c0_i32_302 : i32
    %c1_i32_303 = arith.constant 1 : i32
    %631 = arith.select %630, %c1_i32_303, %c8_i32_301 : i32
    %632 = vector.broadcast %631 : i32 to vector<16x8xi32>
    %633 = arith.remsi %629, %632 : vector<16x8xi32>
    %c0_i32_304 = arith.constant 0 : i32
    %634 = vector.broadcast %c0_i32_304 : i32 to vector<16x8xi32>
    %635 = arith.cmpi ne, %633, %634 : vector<16x8xi32>
    %c0_i32_305 = arith.constant 0 : i32
    %636 = vector.broadcast %c0_i32_305 : i32 to vector<16x8xi32>
    %637 = arith.cmpi slt, %633, %636 : vector<16x8xi32>
    %c0_i32_306 = arith.constant 0 : i32
    %638 = arith.cmpi slt, %631, %c0_i32_306 : i32
    %639 = vector.broadcast %638 : i1 to vector<16x8xi1>
    %640 = vector.broadcast %639 : vector<16x8xi1> to vector<16x8xi1>
    %641 = arith.xori %637, %640 : vector<16x8xi1>
    %642 = arith.andi %641, %635 : vector<16x8xi1>
    %643 = vector.broadcast %631 : i32 to vector<16x8xi32>
    %644 = arith.addi %633, %643 : vector<16x8xi32>
    %645 = arith.select %642, %644, %633 : vector<16x8xi1>, vector<16x8xi32>
    %c1_i32_307 = arith.constant 1 : i32
    %646 = vector.broadcast %c1_i32_307 : i32 to vector<16x8xi32>
    %647 = arith.addi %645, %646 : vector<16x8xi32>
    %c0_i32_308 = arith.constant 0 : i32
    %648 = vector.broadcast %c0_i32_308 : i32 to vector<16x8xi32>
    %649 = arith.cmpi sge, %647, %648 : vector<16x8xi32>
    %c1_i32_309 = arith.constant 1 : i32
    %650 = vector.broadcast %c1_i32_309 : i32 to vector<16x8xi32>
    %651 = arith.addi %645, %650 : vector<16x8xi32>
    %c8_i32_310 = arith.constant 8 : i32
    %652 = vector.broadcast %c8_i32_310 : i32 to vector<16x8xi32>
    %653 = arith.cmpi slt, %651, %652 : vector<16x8xi32>
    %654 = arith.andi %649, %653 : vector<16x8xi1>
    %cst_311 = arith.constant 0.000000e+00 : bf16
    %655 = vector.broadcast %cst_311 : bf16 to vector<16x8xbf16>
    %656 = arith.select %654, %628, %655 : vector<16x8xi1>, vector<16x8xbf16>
    %c2_312 = arith.constant 2 : index
    %c0_313 = arith.constant 0 : index
    %c0_314 = arith.constant 0 : index
    %657 = vector.load %arg13[%c2_312, %c0_313, %c0_314] : memref<3x8x4xbf16, #tpu.memory_space<vmem>>, vector<1x8x4xbf16>
    %658 = vector.shape_cast %657 : vector<1x8x4xbf16> to vector<8x4xbf16>
    %cst_315 = arith.constant dense<0.000000e+00> : vector<16x4xf32>
    %659 = tpu.matmul %656, %658, %cst_315 {dimension_numbers = #tpu.dot_dimension_numbers<[1], [0], [0], [1], [0, 0, 1, 1], [], []>} : vector<16x8xbf16>, vector<8x4xbf16>, vector<16x4xf32> -> vector<16x4xf32>
    %660 = arith.addf %625, %659 : vector<16x4xf32>
    %c0_316 = arith.constant 0 : index
    %c0_317 = arith.constant 0 : index
    %661 = vector.load %arg14[%c0_316, %c0_317] : memref<1x4xf32, #tpu.memory_space<vmem>>, vector<1x4xf32>
    %662 = vector.broadcast %661 : vector<1x4xf32> to vector<16x4xf32>
    %663 = arith.addf %660, %662 : vector<16x4xf32>
    %664 = math.tanh %663 : vector<16x4xf32>
    %665 = arith.subf %167, %664 : vector<16x4xf32>
    %666 = arith.truncf %665 : vector<16x4xf32> to vector<16x4xbf16>
    %c0_318 = arith.constant 0 : index
    %c0_319 = arith.constant 0 : index
    %667 = vector.load %arg20[%c0_318, %c0_319] : memref<16x4xbf16, #tpu.memory_space<vmem>>, vector<16x4xbf16>
    tpu.vector_store %arg20[%c0_318, %c0_319], %666 {strides = array<i32>} : memref<16x4xbf16, #tpu.memory_space<vmem>>, vector<16x4xbf16>,
    return
  }
  func.func @transform_0(%arg0: i32) -> (i32, i32) {
    %c0_i32 = arith.constant 0 : i32
    %c0_i32_0 = arith.constant 0 : i32
    return %arg0, %c0_i32 : i32, i32
  }
  func.func @transform_1(%arg0: i32) -> (i32, i32) {
    %c0_i32 = arith.constant 0 : i32
    %c0_i32_0 = arith.constant 0 : i32
    return %arg0, %c0_i32 : i32, i32
  }
  func.func @transform_2(%arg0: i32) -> (i32, i32, i32) {
    %c0_i32 = arith.constant 0 : i32
    %c0_i32_0 = arith.constant 0 : i32
    %c0_i32_1 = arith.constant 0 : i32
    %c0_i32_2 = arith.constant 0 : i32
    return %c0_i32, %c0_i32_0, %c0_i32_1 : i32, i32, i32
  }
  func.func @transform_3(%arg0: i32) -> (i32, i32) {
    %c0_i32 = arith.constant 0 : i32
    %c0_i32_0 = arith.constant 0 : i32
    %c0_i32_1 = arith.constant 0 : i32
    return %c0_i32, %c0_i32_0 : i32, i32
  }
  func.func @transform_4(%arg0: i32) -> (i32, i32, i32) {
    %c0_i32 = arith.constant 0 : i32
    %c0_i32_0 = arith.constant 0 : i32
    %c0_i32_1 = arith.constant 0 : i32
    %c0_i32_2 = arith.constant 0 : i32
    return %c0_i32, %c0_i32_0, %c0_i32_1 : i32, i32, i32
  }
  func.func @transform_5(%arg0: i32) -> (i32, i32) {
    %c0_i32 = arith.constant 0 : i32
    %c0_i32_0 = arith.constant 0 : i32
    %c0_i32_1 = arith.constant 0 : i32
    return %c0_i32, %c0_i32_0 : i32, i32
  }
  func.func @transform_6(%arg0: i32) -> (i32, i32, i32) {
    %c0_i32 = arith.constant 0 : i32
    %c0_i32_0 = arith.constant 0 : i32
    %c0_i32_1 = arith.constant 0 : i32
    %c0_i32_2 = arith.constant 0 : i32
    return %c0_i32, %c0_i32_0, %c0_i32_1 : i32, i32, i32
  }
  func.func @transform_7(%arg0: i32) -> (i32, i32) {
    %c0_i32 = arith.constant 0 : i32
    %c0_i32_0 = arith.constant 0 : i32
    %c0_i32_1 = arith.constant 0 : i32
    return %c0_i32, %c0_i32_0 : i32, i32
  }
  func.func @transform_8(%arg0: i32) -> (i32, i32, i32) {
    %c0_i32 = arith.constant 0 : i32
    %c0_i32_0 = arith.constant 0 : i32
    %c0_i32_1 = arith.constant 0 : i32
    %c0_i32_2 = arith.constant 0 : i32
    return %c0_i32, %c0_i32_0, %c0_i32_1 : i32, i32, i32
  }
  func.func @transform_9(%arg0: i32) -> (i32, i32) {
    %c0_i32 = arith.constant 0 : i32
    %c0_i32_0 = arith.constant 0 : i32
    %c0_i32_1 = arith.constant 0 : i32
    return %c0_i32, %c0_i32_0 : i32, i32
  }
  func.func @transform_10(%arg0: i32) -> (i32, i32, i32) {
    %c0_i32 = arith.constant 0 : i32
    %c0_i32_0 = arith.constant 0 : i32
    %c0_i32_1 = arith.constant 0 : i32
    %c0_i32_2 = arith.constant 0 : i32
    return %c0_i32, %c0_i32_0, %c0_i32_1 : i32, i32, i32
  }
  func.func @transform_11(%arg0: i32) -> (i32, i32) {
    %c0_i32 = arith.constant 0 : i32
    %c0_i32_0 = arith.constant 0 : i32
    %c0_i32_1 = arith.constant 0 : i32
    return %c0_i32, %c0_i32_0 : i32, i32
  }
  func.func @transform_12(%arg0: i32) -> (i32, i32, i32) {
    %c0_i32 = arith.constant 0 : i32
    %c0_i32_0 = arith.constant 0 : i32
    %c0_i32_1 = arith.constant 0 : i32
    %c0_i32_2 = arith.constant 0 : i32
    return %c0_i32, %c0_i32_0, %c0_i32_1 : i32, i32, i32
  }
  func.func @transform_13(%arg0: i32) -> (i32, i32) {
    %c0_i32 = arith.constant 0 : i32
    %c0_i32_0 = arith.constant 0 : i32
    %c0_i32_1 = arith.constant 0 : i32
    return %c0_i32, %c0_i32_0 : i32, i32
  }
  func.func @transform_14(%arg0: i32) -> (i32, i32, i32) {
    %c0_i32 = arith.constant 0 : i32
    %c0_i32_0 = arith.constant 0 : i32
    %c0_i32_1 = arith.constant 0 : i32
    %c0_i32_2 = arith.constant 0 : i32
    return %c0_i32, %c0_i32_0, %c0_i32_1 : i32, i32, i32
  }
  func.func @transform_15(%arg0: i32) -> (i32, i32) {
    %c0_i32 = arith.constant 0 : i32
    %c0_i32_0 = arith.constant 0 : i32
    %c0_i32_1 = arith.constant 0 : i32
    return %c0_i32, %c0_i32_0 : i32, i32
  }
  func.func @transform_16(%arg0: i32) -> (i32, i32, i32) {
    %c0_i32 = arith.constant 0 : i32
    %c0_i32_0 = arith.constant 0 : i32
    %c0_i32_1 = arith.constant 0 : i32
    %c0_i32_2 = arith.constant 0 : i32
    return %c0_i32, %c0_i32_0, %c0_i32_1 : i32, i32, i32
  }
  func.func @transform_17(%arg0: i32) -> (i32, i32) {
    %c0_i32 = arith.constant 0 : i32
    %c0_i32_0 = arith.constant 0 : i32
    %c0_i32_1 = arith.constant 0 : i32
    return %c0_i32, %c0_i32_0 : i32, i32
  }
  func.func @transform_18(%arg0: i32) -> (i32, i32) {
    %c0_i32 = arith.constant 0 : i32
    %c0_i32_0 = arith.constant 0 : i32
    return %arg0, %c0_i32 : i32, i32
  }
  func.func @transform_19(%arg0: i32) -> (i32, i32) {
    %c0_i32 = arith.constant 0 : i32
    %c0_i32_0 = arith.constant 0 : i32
    return %arg0, %c0_i32 : i32, i32
  }
}

module attributes {stable_mosaic.version = 11 : i64} {
  func.func @sci_block_kernel(%arg0: i32, %arg1: memref<16x4xbf16, #tpu.memory_space<vmem>>, %arg2: memref<16x4xbf16, #tpu.memory_space<vmem>>, %arg3: memref<3x4x8xbf16, #tpu.memory_space<vmem>>, %arg4: memref<1x8xf32, #tpu.memory_space<vmem>>, %arg5: memref<3x8x4xbf16, #tpu.memory_space<vmem>>, %arg6: memref<1x4xf32, #tpu.memory_space<vmem>>, %arg7: memref<3x4x8xbf16, #tpu.memory_space<vmem>>, %arg8: memref<1x8xf32, #tpu.memory_space<vmem>>, %arg9: memref<3x8x4xbf16, #tpu.memory_space<vmem>>, %arg10: memref<1x4xf32, #tpu.memory_space<vmem>>, %arg11: memref<3x4x8xbf16, #tpu.memory_space<vmem>>, %arg12: memref<1x8xf32, #tpu.memory_space<vmem>>, %arg13: memref<3x8x4xbf16, #tpu.memory_space<vmem>>, %arg14: memref<1x4xf32, #tpu.memory_space<vmem>>, %arg15: memref<3x4x8xbf16, #tpu.memory_space<vmem>>, %arg16: memref<1x8xf32, #tpu.memory_space<vmem>>, %arg17: memref<3x8x4xbf16, #tpu.memory_space<vmem>>, %arg18: memref<1x4xf32, #tpu.memory_space<vmem>>, %arg19: memref<16x4xbf16, #tpu.memory_space<vmem>>, %arg20: memref<16x4xbf16, #tpu.memory_space<vmem>>) attributes {dimension_semantics = [#tpu.dimension_semantics<parallel>], iteration_bounds = array<i64: 1>, scalar_prefetch = 0 : i64, scratch_operands = 0 : i64, tpu.core_type = #tpu.core_type<tc>, window_params = [{transform_indices = @transform_0, window_bounds = array<i64: 16, 4>}, {transform_indices = @transform_1, window_bounds = array<i64: 16, 4>}, {pipeline_mode = #tpu.pipeline_mode<synchronous>, transform_indices = @transform_2, window_bounds = array<i64: 3, 4, 8>}, {pipeline_mode = #tpu.pipeline_mode<synchronous>, transform_indices = @transform_3, window_bounds = array<i64: 1, 8>}, {pipeline_mode = #tpu.pipeline_mode<synchronous>, transform_indices = @transform_4, window_bounds = array<i64: 3, 8, 4>}, {pipeline_mode = #tpu.pipeline_mode<synchronous>, transform_indices = @transform_5, window_bounds = array<i64: 1, 4>}, {pipeline_mode = #tpu.pipeline_mode<synchronous>, transform_indices = @transform_6, window_bounds = array<i64: 3, 4, 8>}, {pipeline_mode = #tpu.pipeline_mode<synchronous>, transform_indices = @transform_7, window_bounds = array<i64: 1, 8>}, {pipeline_mode = #tpu.pipeline_mode<synchronous>, transform_indices = @transform_8, window_bounds = array<i64: 3, 8, 4>}, {pipeline_mode = #tpu.pipeline_mode<synchronous>, transform_indices = @transform_9, window_bounds = array<i64: 1, 4>}, {pipeline_mode = #tpu.pipeline_mode<synchronous>, transform_indices = @transform_10, window_bounds = array<i64: 3, 4, 8>}, {pipeline_mode = #tpu.pipeline_mode<synchronous>, transform_indices = @transform_11, window_bounds = array<i64: 1, 8>}, {pipeline_mode = #tpu.pipeline_mode<synchronous>, transform_indices = @transform_12, window_bounds = array<i64: 3, 8, 4>}, {pipeline_mode = #tpu.pipeline_mode<synchronous>, transform_indices = @transform_13, window_bounds = array<i64: 1, 4>}, {pipeline_mode = #tpu.pipeline_mode<synchronous>, transform_indices = @transform_14, window_bounds = array<i64: 3, 4, 8>}, {pipeline_mode = #tpu.pipeline_mode<synchronous>, transform_indices = @transform_15, window_bounds = array<i64: 1, 8>}, {pipeline_mode = #tpu.pipeline_mode<synchronous>, transform_indices = @transform_16, window_bounds = array<i64: 3, 8, 4>}, {pipeline_mode = #tpu.pipeline_mode<synchronous>, transform_indices = @transform_17, window_bounds = array<i64: 1, 4>}, {transform_indices = @transform_18, window_bounds = array<i64: 16, 4>}, {transform_indices = @transform_19, window_bounds = array<i64: 16, 4>}]} {
    %c0 = arith.constant 0 : index
    %c0_0 = arith.constant 0 : index
    %0 = vector.load %arg1[%c0, %c0_0] : memref<16x4xbf16, #tpu.memory_space<vmem>>, vector<16x4xbf16>
    %c0_1 = arith.constant 0 : index
    %c0_2 = arith.constant 0 : index
    %1 = vector.load %arg2[%c0_1, %c0_2] : memref<16x4xbf16, #tpu.memory_space<vmem>>, vector<16x4xbf16>
    %2 = arith.extf %1 : vector<16x4xbf16> to vector<16x4xf32>
    %cst = arith.constant 0.000000e+00 : f32
    %3 = vector.broadcast %cst : f32 to vector<16x8xf32>
    %cst_3 = arith.constant 0.000000e+00 : bf16
    %4 = vector.broadcast %cst_3 : bf16 to vector<1x4xbf16>
    %5 = vector.extract_strided_slice %0 {offsets = [0, 0], sizes = [15, 4], strides = [1, 1]} : vector<16x4xbf16> to vector<15x4xbf16>
    %6 = tpu.concatenate %4, %5 in 0 : vector<1x4xbf16>, vector<15x4xbf16> -> vector<16x4xbf16>
    %7 = tpu.iota {dimensions = array<i32: 0>} : vector<16x4xi32>
    %c4_i32 = arith.constant 4 : i32
    %c0_i32 = arith.constant 0 : i32
    %8 = arith.cmpi eq, %c4_i32, %c0_i32 : i32
    %c1_i32 = arith.constant 1 : i32
    %9 = arith.select %8, %c1_i32, %c4_i32 : i32
    %10 = vector.broadcast %9 : i32 to vector<16x4xi32>
    %11 = arith.remsi %7, %10 : vector<16x4xi32>
    %c0_i32_4 = arith.constant 0 : i32
    %12 = vector.broadcast %c0_i32_4 : i32 to vector<16x4xi32>
    %13 = arith.cmpi ne, %11, %12 : vector<16x4xi32>
    %c0_i32_5 = arith.constant 0 : i32
    %14 = vector.broadcast %c0_i32_5 : i32 to vector<16x4xi32>
    %15 = arith.cmpi slt, %11, %14 : vector<16x4xi32>
    %c0_i32_6 = arith.constant 0 : i32
    %16 = arith.cmpi slt, %9, %c0_i32_6 : i32
    %17 = vector.broadcast %16 : i1 to vector<16x4xi1>
    %18 = vector.broadcast %17 : vector<16x4xi1> to vector<16x4xi1>
    %19 = arith.xori %15, %18 : vector<16x4xi1>
    %20 = arith.andi %19, %13 : vector<16x4xi1>
    %21 = vector.broadcast %9 : i32 to vector<16x4xi32>
    %22 = arith.addi %11, %21 : vector<16x4xi32>
    %23 = arith.select %20, %22, %11 : vector<16x4xi1>, vector<16x4xi32>
    %c-1_i32 = arith.constant -1 : i32
    %24 = vector.broadcast %c-1_i32 : i32 to vector<16x4xi32>
    %25 = arith.addi %23, %24 : vector<16x4xi32>
    %c0_i32_7 = arith.constant 0 : i32
    %26 = vector.broadcast %c0_i32_7 : i32 to vector<16x4xi32>
    %27 = arith.cmpi sge, %25, %26 : vector<16x4xi32>
    %c-1_i32_8 = arith.constant -1 : i32
    %28 = vector.broadcast %c-1_i32_8 : i32 to vector<16x4xi32>
    %29 = arith.addi %23, %28 : vector<16x4xi32>
    %c4_i32_9 = arith.constant 4 : i32
    %30 = vector.broadcast %c4_i32_9 : i32 to vector<16x4xi32>
    %31 = arith.cmpi slt, %29, %30 : vector<16x4xi32>
    %32 = arith.andi %27, %31 : vector<16x4xi1>
    %cst_10 = arith.constant 0.000000e+00 : bf16
    %33 = vector.broadcast %cst_10 : bf16 to vector<16x4xbf16>
    %34 = arith.select %32, %6, %33 : vector<16x4xi1>, vector<16x4xbf16>
    %c0_11 = arith.constant 0 : index
    %c0_12 = arith.constant 0 : index
    %c0_13 = arith.constant 0 : index
    %35 = vector.load %arg3[%c0_11, %c0_12, %c0_13] : memref<3x4x8xbf16, #tpu.memory_space<vmem>>, vector<1x4x8xbf16>
    %36 = vector.shape_cast %35 : vector<1x4x8xbf16> to vector<4x8xbf16>
    %cst_14 = arith.constant dense<0.000000e+00> : vector<16x8xf32>
    %37 = tpu.matmul %34, %36, %cst_14 {dimension_numbers = #tpu.dot_dimension_numbers<[1], [0], [0], [1], [0, 0, 1, 1], [], []>} : vector<16x4xbf16>, vector<4x8xbf16>, vector<16x8xf32> -> vector<16x8xf32>
    %38 = arith.addf %3, %37 : vector<16x8xf32>
    %c1 = arith.constant 1 : index
    %c0_15 = arith.constant 0 : index
    %c0_16 = arith.constant 0 : index
    %39 = vector.load %arg3[%c1, %c0_15, %c0_16] : memref<3x4x8xbf16, #tpu.memory_space<vmem>>, vector<1x4x8xbf16>
    %40 = vector.shape_cast %39 : vector<1x4x8xbf16> to vector<4x8xbf16>
    %cst_17 = arith.constant dense<0.000000e+00> : vector<16x8xf32>
    %41 = tpu.matmul %0, %40, %cst_17 {dimension_numbers = #tpu.dot_dimension_numbers<[1], [0], [0], [1], [0, 0, 1, 1], [], []>} : vector<16x4xbf16>, vector<4x8xbf16>, vector<16x8xf32> -> vector<16x8xf32>
    %42 = arith.addf %38, %41 : vector<16x8xf32>
    %cst_18 = arith.constant 0.000000e+00 : bf16
    %43 = vector.broadcast %cst_18 : bf16 to vector<1x4xbf16>
    %44 = vector.extract_strided_slice %0 {offsets = [1, 0], sizes = [15, 4], strides = [1, 1]} : vector<16x4xbf16> to vector<15x4xbf16>
    %45 = tpu.concatenate %44, %43 in 0 : vector<15x4xbf16>, vector<1x4xbf16> -> vector<16x4xbf16>
    %46 = tpu.iota {dimensions = array<i32: 0>} : vector<16x4xi32>
    %c4_i32_19 = arith.constant 4 : i32
    %c0_i32_20 = arith.constant 0 : i32
    %47 = arith.cmpi eq, %c4_i32_19, %c0_i32_20 : i32
    %c1_i32_21 = arith.constant 1 : i32
    %48 = arith.select %47, %c1_i32_21, %c4_i32_19 : i32
    %49 = vector.broadcast %48 : i32 to vector<16x4xi32>
    %50 = arith.remsi %46, %49 : vector<16x4xi32>
    %c0_i32_22 = arith.constant 0 : i32
    %51 = vector.broadcast %c0_i32_22 : i32 to vector<16x4xi32>
    %52 = arith.cmpi ne, %50, %51 : vector<16x4xi32>
    %c0_i32_23 = arith.constant 0 : i32
    %53 = vector.broadcast %c0_i32_23 : i32 to vector<16x4xi32>
    %54 = arith.cmpi slt, %50, %53 : vector<16x4xi32>
    %c0_i32_24 = arith.constant 0 : i32
    %55 = arith.cmpi slt, %48, %c0_i32_24 : i32
    %56 = vector.broadcast %55 : i1 to vector<16x4xi1>
    %57 = vector.broadcast %56 : vector<16x4xi1> to vector<16x4xi1>
    %58 = arith.xori %54, %57 : vector<16x4xi1>
    %59 = arith.andi %58, %52 : vector<16x4xi1>
    %60 = vector.broadcast %48 : i32 to vector<16x4xi32>
    %61 = arith.addi %50, %60 : vector<16x4xi32>
    %62 = arith.select %59, %61, %50 : vector<16x4xi1>, vector<16x4xi32>
    %c1_i32_25 = arith.constant 1 : i32
    %63 = vector.broadcast %c1_i32_25 : i32 to vector<16x4xi32>
    %64 = arith.addi %62, %63 : vector<16x4xi32>
    %c0_i32_26 = arith.constant 0 : i32
    %65 = vector.broadcast %c0_i32_26 : i32 to vector<16x4xi32>
    %66 = arith.cmpi sge, %64, %65 : vector<16x4xi32>
    %c1_i32_27 = arith.constant 1 : i32
    %67 = vector.broadcast %c1_i32_27 : i32 to vector<16x4xi32>
    %68 = arith.addi %62, %67 : vector<16x4xi32>
    %c4_i32_28 = arith.constant 4 : i32
    %69 = vector.broadcast %c4_i32_28 : i32 to vector<16x4xi32>
    %70 = arith.cmpi slt, %68, %69 : vector<16x4xi32>
    %71 = arith.andi %66, %70 : vector<16x4xi1>
    %cst_29 = arith.constant 0.000000e+00 : bf16
    %72 = vector.broadcast %cst_29 : bf16 to vector<16x4xbf16>
    %73 = arith.select %71, %45, %72 : vector<16x4xi1>, vector<16x4xbf16>
    %c2 = arith.constant 2 : index
    %c0_30 = arith.constant 0 : index
    %c0_31 = arith.constant 0 : index
    %74 = vector.load %arg3[%c2, %c0_30, %c0_31] : memref<3x4x8xbf16, #tpu.memory_space<vmem>>, vector<1x4x8xbf16>
    %75 = vector.shape_cast %74 : vector<1x4x8xbf16> to vector<4x8xbf16>
    %cst_32 = arith.constant dense<0.000000e+00> : vector<16x8xf32>
    %76 = tpu.matmul %73, %75, %cst_32 {dimension_numbers = #tpu.dot_dimension_numbers<[1], [0], [0], [1], [0, 0, 1, 1], [], []>} : vector<16x4xbf16>, vector<4x8xbf16>, vector<16x8xf32> -> vector<16x8xf32>
    %77 = arith.addf %42, %76 : vector<16x8xf32>
    %c0_33 = arith.constant 0 : index
    %c0_34 = arith.constant 0 : index
    %78 = vector.load %arg4[%c0_33, %c0_34] : memref<1x8xf32, #tpu.memory_space<vmem>>, vector<1x8xf32>
    %79 = vector.broadcast %78 : vector<1x8xf32> to vector<16x8xf32>
    %80 = arith.addf %77, %79 : vector<16x8xf32>
    %cst_35 = arith.constant 0.000000e+00 : f32
    %81 = vector.broadcast %cst_35 : f32 to vector<16x8xf32>
    %82 = arith.cmpf ogt, %80, %81 : vector<16x8xf32>
    %cst_36 = arith.constant 0.00999999977 : f32
    %83 = vector.broadcast %cst_36 : f32 to vector<16x8xf32>
    %84 = arith.mulf %83, %80 : vector<16x8xf32>
    %85 = arith.select %82, %80, %84 : vector<16x8xi1>, vector<16x8xf32>
    %86 = arith.truncf %85 : vector<16x8xf32> to vector<16x8xbf16>
    %cst_37 = arith.constant 0.000000e+00 : f32
    %87 = vector.broadcast %cst_37 : f32 to vector<16x4xf32>
    %cst_38 = arith.constant 0.000000e+00 : bf16
    %88 = vector.broadcast %cst_38 : bf16 to vector<1x8xbf16>
    %89 = vector.extract_strided_slice %86 {offsets = [0, 0], sizes = [15, 8], strides = [1, 1]} : vector<16x8xbf16> to vector<15x8xbf16>
    %90 = tpu.concatenate %88, %89 in 0 : vector<1x8xbf16>, vector<15x8xbf16> -> vector<16x8xbf16>
    %91 = tpu.iota {dimensions = array<i32: 0>} : vector<16x8xi32>
    %c4_i32_39 = arith.constant 4 : i32
    %c0_i32_40 = arith.constant 0 : i32
    %92 = arith.cmpi eq, %c4_i32_39, %c0_i32_40 : i32
    %c1_i32_41 = arith.constant 1 : i32
    %93 = arith.select %92, %c1_i32_41, %c4_i32_39 : i32
    %94 = vector.broadcast %93 : i32 to vector<16x8xi32>
    %95 = arith.remsi %91, %94 : vector<16x8xi32>
    %c0_i32_42 = arith.constant 0 : i32
    %96 = vector.broadcast %c0_i32_42 : i32 to vector<16x8xi32>
    %97 = arith.cmpi ne, %95, %96 : vector<16x8xi32>
    %c0_i32_43 = arith.constant 0 : i32
    %98 = vector.broadcast %c0_i32_43 : i32 to vector<16x8xi32>
    %99 = arith.cmpi slt, %95, %98 : vector<16x8xi32>
    %c0_i32_44 = arith.constant 0 : i32
    %100 = arith.cmpi slt, %93, %c0_i32_44 : i32
    %101 = vector.broadcast %100 : i1 to vector<16x8xi1>
    %102 = vector.broadcast %101 : vector<16x8xi1> to vector<16x8xi1>
    %103 = arith.xori %99, %102 : vector<16x8xi1>
    %104 = arith.andi %103, %97 : vector<16x8xi1>
    %105 = vector.broadcast %93 : i32 to vector<16x8xi32>
    %106 = arith.addi %95, %105 : vector<16x8xi32>
    %107 = arith.select %104, %106, %95 : vector<16x8xi1>, vector<16x8xi32>
    %c-1_i32_45 = arith.constant -1 : i32
    %108 = vector.broadcast %c-1_i32_45 : i32 to vector<16x8xi32>
    %109 = arith.addi %107, %108 : vector<16x8xi32>
    %c0_i32_46 = arith.constant 0 : i32
    %110 = vector.broadcast %c0_i32_46 : i32 to vector<16x8xi32>
    %111 = arith.cmpi sge, %109, %110 : vector<16x8xi32>
    %c-1_i32_47 = arith.constant -1 : i32
    %112 = vector.broadcast %c-1_i32_47 : i32 to vector<16x8xi32>
    %113 = arith.addi %107, %112 : vector<16x8xi32>
    %c4_i32_48 = arith.constant 4 : i32
    %114 = vector.broadcast %c4_i32_48 : i32 to vector<16x8xi32>
    %115 = arith.cmpi slt, %113, %114 : vector<16x8xi32>
    %116 = arith.andi %111, %115 : vector<16x8xi1>
    %cst_49 = arith.constant 0.000000e+00 : bf16
    %117 = vector.broadcast %cst_49 : bf16 to vector<16x8xbf16>
    %118 = arith.select %116, %90, %117 : vector<16x8xi1>, vector<16x8xbf16>
    %c0_50 = arith.constant 0 : index
    %c0_51 = arith.constant 0 : index
    %c0_52 = arith.constant 0 : index
    %119 = vector.load %arg5[%c0_50, %c0_51, %c0_52] : memref<3x8x4xbf16, #tpu.memory_space<vmem>>, vector<1x8x4xbf16>
    %120 = vector.shape_cast %119 : vector<1x8x4xbf16> to vector<8x4xbf16>
    %cst_53 = arith.constant dense<0.000000e+00> : vector<16x4xf32>
    %121 = tpu.matmul %118, %120, %cst_53 {dimension_numbers = #tpu.dot_dimension_numbers<[1], [0], [0], [1], [0, 0, 1, 1], [], []>} : vector<16x8xbf16>, vector<8x4xbf16>, vector<16x4xf32> -> vector<16x4xf32>
    %122 = arith.addf %87, %121 : vector<16x4xf32>
    %c1_54 = arith.constant 1 : index
    %c0_55 = arith.constant 0 : index
    %c0_56 = arith.constant 0 : index
    %123 = vector.load %arg5[%c1_54, %c0_55, %c0_56] : memref<3x8x4xbf16, #tpu.memory_space<vmem>>, vector<1x8x4xbf16>
    %124 = vector.shape_cast %123 : vector<1x8x4xbf16> to vector<8x4xbf16>
    %cst_57 = arith.constant dense<0.000000e+00> : vector<16x4xf32>
    %125 = tpu.matmul %86, %124, %cst_57 {dimension_numbers = #tpu.dot_dimension_numbers<[1], [0], [0], [1], [0, 0, 1, 1], [], []>} : vector<16x8xbf16>, vector<8x4xbf16>, vector<16x4xf32> -> vector<16x4xf32>
    %126 = arith.addf %122, %125 : vector<16x4xf32>
    %cst_58 = arith.constant 0.000000e+00 : bf16
    %127 = vector.broadcast %cst_58 : bf16 to vector<1x8xbf16>
    %128 = vector.extract_strided_slice %86 {offsets = [1, 0], sizes = [15, 8], strides = [1, 1]} : vector<16x8xbf16> to vector<15x8xbf16>
    %129 = tpu.concatenate %128, %127 in 0 : vector<15x8xbf16>, vector<1x8xbf16> -> vector<16x8xbf16>
    %130 = tpu.iota {dimensions = array<i32: 0>} : vector<16x8xi32>
    %c4_i32_59 = arith.constant 4 : i32
    %c0_i32_60 = arith.constant 0 : i32
    %131 = arith.cmpi eq, %c4_i32_59, %c0_i32_60 : i32
    %c1_i32_61 = arith.constant 1 : i32
    %132 = arith.select %131, %c1_i32_61, %c4_i32_59 : i32
    %133 = vector.broadcast %132 : i32 to vector<16x8xi32>
    %134 = arith.remsi %130, %133 : vector<16x8xi32>
    %c0_i32_62 = arith.constant 0 : i32
    %135 = vector.broadcast %c0_i32_62 : i32 to vector<16x8xi32>
    %136 = arith.cmpi ne, %134, %135 : vector<16x8xi32>
    %c0_i32_63 = arith.constant 0 : i32
    %137 = vector.broadcast %c0_i32_63 : i32 to vector<16x8xi32>
    %138 = arith.cmpi slt, %134, %137 : vector<16x8xi32>
    %c0_i32_64 = arith.constant 0 : i32
    %139 = arith.cmpi slt, %132, %c0_i32_64 : i32
    %140 = vector.broadcast %139 : i1 to vector<16x8xi1>
    %141 = vector.broadcast %140 : vector<16x8xi1> to vector<16x8xi1>
    %142 = arith.xori %138, %141 : vector<16x8xi1>
    %143 = arith.andi %142, %136 : vector<16x8xi1>
    %144 = vector.broadcast %132 : i32 to vector<16x8xi32>
    %145 = arith.addi %134, %144 : vector<16x8xi32>
    %146 = arith.select %143, %145, %134 : vector<16x8xi1>, vector<16x8xi32>
    %c1_i32_65 = arith.constant 1 : i32
    %147 = vector.broadcast %c1_i32_65 : i32 to vector<16x8xi32>
    %148 = arith.addi %146, %147 : vector<16x8xi32>
    %c0_i32_66 = arith.constant 0 : i32
    %149 = vector.broadcast %c0_i32_66 : i32 to vector<16x8xi32>
    %150 = arith.cmpi sge, %148, %149 : vector<16x8xi32>
    %c1_i32_67 = arith.constant 1 : i32
    %151 = vector.broadcast %c1_i32_67 : i32 to vector<16x8xi32>
    %152 = arith.addi %146, %151 : vector<16x8xi32>
    %c4_i32_68 = arith.constant 4 : i32
    %153 = vector.broadcast %c4_i32_68 : i32 to vector<16x8xi32>
    %154 = arith.cmpi slt, %152, %153 : vector<16x8xi32>
    %155 = arith.andi %150, %154 : vector<16x8xi1>
    %cst_69 = arith.constant 0.000000e+00 : bf16
    %156 = vector.broadcast %cst_69 : bf16 to vector<16x8xbf16>
    %157 = arith.select %155, %129, %156 : vector<16x8xi1>, vector<16x8xbf16>
    %c2_70 = arith.constant 2 : index
    %c0_71 = arith.constant 0 : index
    %c0_72 = arith.constant 0 : index
    %158 = vector.load %arg5[%c2_70, %c0_71, %c0_72] : memref<3x8x4xbf16, #tpu.memory_space<vmem>>, vector<1x8x4xbf16>
    %159 = vector.shape_cast %158 : vector<1x8x4xbf16> to vector<8x4xbf16>
    %cst_73 = arith.constant dense<0.000000e+00> : vector<16x4xf32>
    %160 = tpu.matmul %157, %159, %cst_73 {dimension_numbers = #tpu.dot_dimension_numbers<[1], [0], [0], [1], [0, 0, 1, 1], [], []>} : vector<16x8xbf16>, vector<8x4xbf16>, vector<16x4xf32> -> vector<16x4xf32>
    %161 = arith.addf %126, %160 : vector<16x4xf32>
    %c0_74 = arith.constant 0 : index
    %c0_75 = arith.constant 0 : index
    %162 = vector.load %arg6[%c0_74, %c0_75] : memref<1x4xf32, #tpu.memory_space<vmem>>, vector<1x4xf32>
    %163 = vector.broadcast %162 : vector<1x4xf32> to vector<16x4xf32>
    %164 = arith.addf %161, %163 : vector<16x4xf32>
    %165 = math.tanh %164 : vector<16x4xf32>
    %166 = math.exp %165 : vector<16x4xf32>
    %167 = arith.mulf %2, %166 : vector<16x4xf32>
    %168 = arith.extf %0 : vector<16x4xbf16> to vector<16x4xf32>
    %cst_76 = arith.constant 0.000000e+00 : f32
    %169 = vector.broadcast %cst_76 : f32 to vector<16x8xf32>
    %cst_77 = arith.constant 0.000000e+00 : bf16
    %170 = vector.broadcast %cst_77 : bf16 to vector<1x4xbf16>
    %171 = vector.extract_strided_slice %1 {offsets = [0, 0], sizes = [15, 4], strides = [1, 1]} : vector<16x4xbf16> to vector<15x4xbf16>
    %172 = tpu.concatenate %170, %171 in 0 : vector<1x4xbf16>, vector<15x4xbf16> -> vector<16x4xbf16>
    %173 = tpu.iota {dimensions = array<i32: 0>} : vector<16x4xi32>
    %c4_i32_78 = arith.constant 4 : i32
    %c0_i32_79 = arith.constant 0 : i32
    %174 = arith.cmpi eq, %c4_i32_78, %c0_i32_79 : i32
    %c1_i32_80 = arith.constant 1 : i32
    %175 = arith.select %174, %c1_i32_80, %c4_i32_78 : i32
    %176 = vector.broadcast %175 : i32 to vector<16x4xi32>
    %177 = arith.remsi %173, %176 : vector<16x4xi32>
    %c0_i32_81 = arith.constant 0 : i32
    %178 = vector.broadcast %c0_i32_81 : i32 to vector<16x4xi32>
    %179 = arith.cmpi ne, %177, %178 : vector<16x4xi32>
    %c0_i32_82 = arith.constant 0 : i32
    %180 = vector.broadcast %c0_i32_82 : i32 to vector<16x4xi32>
    %181 = arith.cmpi slt, %177, %180 : vector<16x4xi32>
    %c0_i32_83 = arith.constant 0 : i32
    %182 = arith.cmpi slt, %175, %c0_i32_83 : i32
    %183 = vector.broadcast %182 : i1 to vector<16x4xi1>
    %184 = vector.broadcast %183 : vector<16x4xi1> to vector<16x4xi1>
    %185 = arith.xori %181, %184 : vector<16x4xi1>
    %186 = arith.andi %185, %179 : vector<16x4xi1>
    %187 = vector.broadcast %175 : i32 to vector<16x4xi32>
    %188 = arith.addi %177, %187 : vector<16x4xi32>
    %189 = arith.select %186, %188, %177 : vector<16x4xi1>, vector<16x4xi32>
    %c-1_i32_84 = arith.constant -1 : i32
    %190 = vector.broadcast %c-1_i32_84 : i32 to vector<16x4xi32>
    %191 = arith.addi %189, %190 : vector<16x4xi32>
    %c0_i32_85 = arith.constant 0 : i32
    %192 = vector.broadcast %c0_i32_85 : i32 to vector<16x4xi32>
    %193 = arith.cmpi sge, %191, %192 : vector<16x4xi32>
    %c-1_i32_86 = arith.constant -1 : i32
    %194 = vector.broadcast %c-1_i32_86 : i32 to vector<16x4xi32>
    %195 = arith.addi %189, %194 : vector<16x4xi32>
    %c4_i32_87 = arith.constant 4 : i32
    %196 = vector.broadcast %c4_i32_87 : i32 to vector<16x4xi32>
    %197 = arith.cmpi slt, %195, %196 : vector<16x4xi32>
    %198 = arith.andi %193, %197 : vector<16x4xi1>
    %cst_88 = arith.constant 0.000000e+00 : bf16
    %199 = vector.broadcast %cst_88 : bf16 to vector<16x4xbf16>
    %200 = arith.select %198, %172, %199 : vector<16x4xi1>, vector<16x4xbf16>
    %c0_89 = arith.constant 0 : index
    %c0_90 = arith.constant 0 : index
    %c0_91 = arith.constant 0 : index
    %201 = vector.load %arg7[%c0_89, %c0_90, %c0_91] : memref<3x4x8xbf16, #tpu.memory_space<vmem>>, vector<1x4x8xbf16>
    %202 = vector.shape_cast %201 : vector<1x4x8xbf16> to vector<4x8xbf16>
    %cst_92 = arith.constant dense<0.000000e+00> : vector<16x8xf32>
    %203 = tpu.matmul %200, %202, %cst_92 {dimension_numbers = #tpu.dot_dimension_numbers<[1], [0], [0], [1], [0, 0, 1, 1], [], []>} : vector<16x4xbf16>, vector<4x8xbf16>, vector<16x8xf32> -> vector<16x8xf32>
    %204 = arith.addf %169, %203 : vector<16x8xf32>
    %c1_93 = arith.constant 1 : index
    %c0_94 = arith.constant 0 : index
    %c0_95 = arith.constant 0 : index
    %205 = vector.load %arg7[%c1_93, %c0_94, %c0_95] : memref<3x4x8xbf16, #tpu.memory_space<vmem>>, vector<1x4x8xbf16>
    %206 = vector.shape_cast %205 : vector<1x4x8xbf16> to vector<4x8xbf16>
    %cst_96 = arith.constant dense<0.000000e+00> : vector<16x8xf32>
    %207 = tpu.matmul %1, %206, %cst_96 {dimension_numbers = #tpu.dot_dimension_numbers<[1], [0], [0], [1], [0, 0, 1, 1], [], []>} : vector<16x4xbf16>, vector<4x8xbf16>, vector<16x8xf32> -> vector<16x8xf32>
    %208 = arith.addf %204, %207 : vector<16x8xf32>
    %cst_97 = arith.constant 0.000000e+00 : bf16
    %209 = vector.broadcast %cst_97 : bf16 to vector<1x4xbf16>
    %210 = vector.extract_strided_slice %1 {offsets = [1, 0], sizes = [15, 4], strides = [1, 1]} : vector<16x4xbf16> to vector<15x4xbf16>
    %211 = tpu.concatenate %210, %209 in 0 : vector<15x4xbf16>, vector<1x4xbf16> -> vector<16x4xbf16>
    %212 = tpu.iota {dimensions = array<i32: 0>} : vector<16x4xi32>
    %c4_i32_98 = arith.constant 4 : i32
    %c0_i32_99 = arith.constant 0 : i32
    %213 = arith.cmpi eq, %c4_i32_98, %c0_i32_99 : i32
    %c1_i32_100 = arith.constant 1 : i32
    %214 = arith.select %213, %c1_i32_100, %c4_i32_98 : i32
    %215 = vector.broadcast %214 : i32 to vector<16x4xi32>
    %216 = arith.remsi %212, %215 : vector<16x4xi32>
    %c0_i32_101 = arith.constant 0 : i32
    %217 = vector.broadcast %c0_i32_101 : i32 to vector<16x4xi32>
    %218 = arith.cmpi ne, %216, %217 : vector<16x4xi32>
    %c0_i32_102 = arith.constant 0 : i32
    %219 = vector.broadcast %c0_i32_102 : i32 to vector<16x4xi32>
    %220 = arith.cmpi slt, %216, %219 : vector<16x4xi32>
    %c0_i32_103 = arith.constant 0 : i32
    %221 = arith.cmpi slt, %214, %c0_i32_103 : i32
    %222 = vector.broadcast %221 : i1 to vector<16x4xi1>
    %223 = vector.broadcast %222 : vector<16x4xi1> to vector<16x4xi1>
    %224 = arith.xori %220, %223 : vector<16x4xi1>
    %225 = arith.andi %224, %218 : vector<16x4xi1>
    %226 = vector.broadcast %214 : i32 to vector<16x4xi32>
    %227 = arith.addi %216, %226 : vector<16x4xi32>
    %228 = arith.select %225, %227, %216 : vector<16x4xi1>, vector<16x4xi32>
    %c1_i32_104 = arith.constant 1 : i32
    %229 = vector.broadcast %c1_i32_104 : i32 to vector<16x4xi32>
    %230 = arith.addi %228, %229 : vector<16x4xi32>
    %c0_i32_105 = arith.constant 0 : i32
    %231 = vector.broadcast %c0_i32_105 : i32 to vector<16x4xi32>
    %232 = arith.cmpi sge, %230, %231 : vector<16x4xi32>
    %c1_i32_106 = arith.constant 1 : i32
    %233 = vector.broadcast %c1_i32_106 : i32 to vector<16x4xi32>
    %234 = arith.addi %228, %233 : vector<16x4xi32>
    %c4_i32_107 = arith.constant 4 : i32
    %235 = vector.broadcast %c4_i32_107 : i32 to vector<16x4xi32>
    %236 = arith.cmpi slt, %234, %235 : vector<16x4xi32>
    %237 = arith.andi %232, %236 : vector<16x4xi1>
    %cst_108 = arith.constant 0.000000e+00 : bf16
    %238 = vector.broadcast %cst_108 : bf16 to vector<16x4xbf16>
    %239 = arith.select %237, %211, %238 : vector<16x4xi1>, vector<16x4xbf16>
    %c2_109 = arith.constant 2 : index
    %c0_110 = arith.constant 0 : index
    %c0_111 = arith.constant 0 : index
    %240 = vector.load %arg7[%c2_109, %c0_110, %c0_111] : memref<3x4x8xbf16, #tpu.memory_space<vmem>>, vector<1x4x8xbf16>
    %241 = vector.shape_cast %240 : vector<1x4x8xbf16> to vector<4x8xbf16>
    %cst_112 = arith.constant dense<0.000000e+00> : vector<16x8xf32>
    %242 = tpu.matmul %239, %241, %cst_112 {dimension_numbers = #tpu.dot_dimension_numbers<[1], [0], [0], [1], [0, 0, 1, 1], [], []>} : vector<16x4xbf16>, vector<4x8xbf16>, vector<16x8xf32> -> vector<16x8xf32>
    %243 = arith.addf %208, %242 : vector<16x8xf32>
    %c0_113 = arith.constant 0 : index
    %c0_114 = arith.constant 0 : index
    %244 = vector.load %arg8[%c0_113, %c0_114] : memref<1x8xf32, #tpu.memory_space<vmem>>, vector<1x8xf32>
    %245 = vector.broadcast %244 : vector<1x8xf32> to vector<16x8xf32>
    %246 = arith.addf %243, %245 : vector<16x8xf32>
    %cst_115 = arith.constant 0.000000e+00 : f32
    %247 = vector.broadcast %cst_115 : f32 to vector<16x8xf32>
    %248 = arith.cmpf ogt, %246, %247 : vector<16x8xf32>
    %cst_116 = arith.constant 0.00999999977 : f32
    %249 = vector.broadcast %cst_116 : f32 to vector<16x8xf32>
    %250 = arith.mulf %249, %246 : vector<16x8xf32>
    %251 = arith.select %248, %246, %250 : vector<16x8xi1>, vector<16x8xf32>
    %252 = arith.truncf %251 : vector<16x8xf32> to vector<16x8xbf16>
    %cst_117 = arith.constant 0.000000e+00 : f32
    %253 = vector.broadcast %cst_117 : f32 to vector<16x4xf32>
    %cst_118 = arith.constant 0.000000e+00 : bf16
    %254 = vector.broadcast %cst_118 : bf16 to vector<1x8xbf16>
    %255 = vector.extract_strided_slice %252 {offsets = [0, 0], sizes = [15, 8], strides = [1, 1]} : vector<16x8xbf16> to vector<15x8xbf16>
    %256 = tpu.concatenate %254, %255 in 0 : vector<1x8xbf16>, vector<15x8xbf16> -> vector<16x8xbf16>
    %257 = tpu.iota {dimensions = array<i32: 0>} : vector<16x8xi32>
    %c4_i32_119 = arith.constant 4 : i32
    %c0_i32_120 = arith.constant 0 : i32
    %258 = arith.cmpi eq, %c4_i32_119, %c0_i32_120 : i32
    %c1_i32_121 = arith.constant 1 : i32
    %259 = arith.select %258, %c1_i32_121, %c4_i32_119 : i32
    %260 = vector.broadcast %259 : i32 to vector<16x8xi32>
    %261 = arith.remsi %257, %260 : vector<16x8xi32>
    %c0_i32_122 = arith.constant 0 : i32
    %262 = vector.broadcast %c0_i32_122 : i32 to vector<16x8xi32>
    %263 = arith.cmpi ne, %261, %262 : vector<16x8xi32>
    %c0_i32_123 = arith.constant 0 : i32
    %264 = vector.broadcast %c0_i32_123 : i32 to vector<16x8xi32>
    %265 = arith.cmpi slt, %261, %264 : vector<16x8xi32>
    %c0_i32_124 = arith.constant 0 : i32
    %266 = arith.cmpi slt, %259, %c0_i32_124 : i32
    %267 = vector.broadcast %266 : i1 to vector<16x8xi1>
    %268 = vector.broadcast %267 : vector<16x8xi1> to vector<16x8xi1>
    %269 = arith.xori %265, %268 : vector<16x8xi1>
    %270 = arith.andi %269, %263 : vector<16x8xi1>
    %271 = vector.broadcast %259 : i32 to vector<16x8xi32>
    %272 = arith.addi %261, %271 : vector<16x8xi32>
    %273 = arith.select %270, %272, %261 : vector<16x8xi1>, vector<16x8xi32>
    %c-1_i32_125 = arith.constant -1 : i32
    %274 = vector.broadcast %c-1_i32_125 : i32 to vector<16x8xi32>
    %275 = arith.addi %273, %274 : vector<16x8xi32>
    %c0_i32_126 = arith.constant 0 : i32
    %276 = vector.broadcast %c0_i32_126 : i32 to vector<16x8xi32>
    %277 = arith.cmpi sge, %275, %276 : vector<16x8xi32>
    %c-1_i32_127 = arith.constant -1 : i32
    %278 = vector.broadcast %c-1_i32_127 : i32 to vector<16x8xi32>
    %279 = arith.addi %273, %278 : vector<16x8xi32>
    %c4_i32_128 = arith.constant 4 : i32
    %280 = vector.broadcast %c4_i32_128 : i32 to vector<16x8xi32>
    %281 = arith.cmpi slt, %279, %280 : vector<16x8xi32>
    %282 = arith.andi %277, %281 : vector<16x8xi1>
    %cst_129 = arith.constant 0.000000e+00 : bf16
    %283 = vector.broadcast %cst_129 : bf16 to vector<16x8xbf16>
    %284 = arith.select %282, %256, %283 : vector<16x8xi1>, vector<16x8xbf16>
    %c0_130 = arith.constant 0 : index
    %c0_131 = arith.constant 0 : index
    %c0_132 = arith.constant 0 : index
    %285 = vector.load %arg9[%c0_130, %c0_131, %c0_132] : memref<3x8x4xbf16, #tpu.memory_space<vmem>>, vector<1x8x4xbf16>
    %286 = vector.shape_cast %285 : vector<1x8x4xbf16> to vector<8x4xbf16>
    %cst_133 = arith.constant dense<0.000000e+00> : vector<16x4xf32>
    %287 = tpu.matmul %284, %286, %cst_133 {dimension_numbers = #tpu.dot_dimension_numbers<[1], [0], [0], [1], [0, 0, 1, 1], [], []>} : vector<16x8xbf16>, vector<8x4xbf16>, vector<16x4xf32> -> vector<16x4xf32>
    %288 = arith.addf %253, %287 : vector<16x4xf32>
    %c1_134 = arith.constant 1 : index
    %c0_135 = arith.constant 0 : index
    %c0_136 = arith.constant 0 : index
    %289 = vector.load %arg9[%c1_134, %c0_135, %c0_136] : memref<3x8x4xbf16, #tpu.memory_space<vmem>>, vector<1x8x4xbf16>
    %290 = vector.shape_cast %289 : vector<1x8x4xbf16> to vector<8x4xbf16>
    %cst_137 = arith.constant dense<0.000000e+00> : vector<16x4xf32>
    %291 = tpu.matmul %252, %290, %cst_137 {dimension_numbers = #tpu.dot_dimension_numbers<[1], [0], [0], [1], [0, 0, 1, 1], [], []>} : vector<16x8xbf16>, vector<8x4xbf16>, vector<16x4xf32> -> vector<16x4xf32>
    %292 = arith.addf %288, %291 : vector<16x4xf32>
    %cst_138 = arith.constant 0.000000e+00 : bf16
    %293 = vector.broadcast %cst_138 : bf16 to vector<1x8xbf16>
    %294 = vector.extract_strided_slice %252 {offsets = [1, 0], sizes = [15, 8], strides = [1, 1]} : vector<16x8xbf16> to vector<15x8xbf16>
    %295 = tpu.concatenate %294, %293 in 0 : vector<15x8xbf16>, vector<1x8xbf16> -> vector<16x8xbf16>
    %296 = tpu.iota {dimensions = array<i32: 0>} : vector<16x8xi32>
    %c4_i32_139 = arith.constant 4 : i32
    %c0_i32_140 = arith.constant 0 : i32
    %297 = arith.cmpi eq, %c4_i32_139, %c0_i32_140 : i32
    %c1_i32_141 = arith.constant 1 : i32
    %298 = arith.select %297, %c1_i32_141, %c4_i32_139 : i32
    %299 = vector.broadcast %298 : i32 to vector<16x8xi32>
    %300 = arith.remsi %296, %299 : vector<16x8xi32>
    %c0_i32_142 = arith.constant 0 : i32
    %301 = vector.broadcast %c0_i32_142 : i32 to vector<16x8xi32>
    %302 = arith.cmpi ne, %300, %301 : vector<16x8xi32>
    %c0_i32_143 = arith.constant 0 : i32
    %303 = vector.broadcast %c0_i32_143 : i32 to vector<16x8xi32>
    %304 = arith.cmpi slt, %300, %303 : vector<16x8xi32>
    %c0_i32_144 = arith.constant 0 : i32
    %305 = arith.cmpi slt, %298, %c0_i32_144 : i32
    %306 = vector.broadcast %305 : i1 to vector<16x8xi1>
    %307 = vector.broadcast %306 : vector<16x8xi1> to vector<16x8xi1>
    %308 = arith.xori %304, %307 : vector<16x8xi1>
    %309 = arith.andi %308, %302 : vector<16x8xi1>
    %310 = vector.broadcast %298 : i32 to vector<16x8xi32>
    %311 = arith.addi %300, %310 : vector<16x8xi32>
    %312 = arith.select %309, %311, %300 : vector<16x8xi1>, vector<16x8xi32>
    %c1_i32_145 = arith.constant 1 : i32
    %313 = vector.broadcast %c1_i32_145 : i32 to vector<16x8xi32>
    %314 = arith.addi %312, %313 : vector<16x8xi32>
    %c0_i32_146 = arith.constant 0 : i32
    %315 = vector.broadcast %c0_i32_146 : i32 to vector<16x8xi32>
    %316 = arith.cmpi sge, %314, %315 : vector<16x8xi32>
    %c1_i32_147 = arith.constant 1 : i32
    %317 = vector.broadcast %c1_i32_147 : i32 to vector<16x8xi32>
    %318 = arith.addi %312, %317 : vector<16x8xi32>
    %c4_i32_148 = arith.constant 4 : i32
    %319 = vector.broadcast %c4_i32_148 : i32 to vector<16x8xi32>
    %320 = arith.cmpi slt, %318, %319 : vector<16x8xi32>
    %321 = arith.andi %316, %320 : vector<16x8xi1>
    %cst_149 = arith.constant 0.000000e+00 : bf16
    %322 = vector.broadcast %cst_149 : bf16 to vector<16x8xbf16>
    %323 = arith.select %321, %295, %322 : vector<16x8xi1>, vector<16x8xbf16>
    %c2_150 = arith.constant 2 : index
    %c0_151 = arith.constant 0 : index
    %c0_152 = arith.constant 0 : index
    %324 = vector.load %arg9[%c2_150, %c0_151, %c0_152] : memref<3x8x4xbf16, #tpu.memory_space<vmem>>, vector<1x8x4xbf16>
    %325 = vector.shape_cast %324 : vector<1x8x4xbf16> to vector<8x4xbf16>
    %cst_153 = arith.constant dense<0.000000e+00> : vector<16x4xf32>
    %326 = tpu.matmul %323, %325, %cst_153 {dimension_numbers = #tpu.dot_dimension_numbers<[1], [0], [0], [1], [0, 0, 1, 1], [], []>} : vector<16x8xbf16>, vector<8x4xbf16>, vector<16x4xf32> -> vector<16x4xf32>
    %327 = arith.addf %292, %326 : vector<16x4xf32>
    %c0_154 = arith.constant 0 : index
    %c0_155 = arith.constant 0 : index
    %328 = vector.load %arg10[%c0_154, %c0_155] : memref<1x4xf32, #tpu.memory_space<vmem>>, vector<1x4xf32>
    %329 = vector.broadcast %328 : vector<1x4xf32> to vector<16x4xf32>
    %330 = arith.addf %327, %329 : vector<16x4xf32>
    %331 = math.tanh %330 : vector<16x4xf32>
    %332 = math.exp %331 : vector<16x4xf32>
    %333 = arith.mulf %168, %332 : vector<16x4xf32>
    %334 = arith.truncf %167 : vector<16x4xf32> to vector<16x4xbf16>
    %cst_156 = arith.constant 0.000000e+00 : f32
    %335 = vector.broadcast %cst_156 : f32 to vector<16x8xf32>
    %cst_157 = arith.constant 0.000000e+00 : bf16
    %336 = vector.broadcast %cst_157 : bf16 to vector<1x4xbf16>
    %337 = vector.extract_strided_slice %334 {offsets = [0, 0], sizes = [15, 4], strides = [1, 1]} : vector<16x4xbf16> to vector<15x4xbf16>
    %338 = tpu.concatenate %336, %337 in 0 : vector<1x4xbf16>, vector<15x4xbf16> -> vector<16x4xbf16>
    %339 = tpu.iota {dimensions = array<i32: 0>} : vector<16x4xi32>
    %c4_i32_158 = arith.constant 4 : i32
    %c0_i32_159 = arith.constant 0 : i32
    %340 = arith.cmpi eq, %c4_i32_158, %c0_i32_159 : i32
    %c1_i32_160 = arith.constant 1 : i32
    %341 = arith.select %340, %c1_i32_160, %c4_i32_158 : i32
    %342 = vector.broadcast %341 : i32 to vector<16x4xi32>
    %343 = arith.remsi %339, %342 : vector<16x4xi32>
    %c0_i32_161 = arith.constant 0 : i32
    %344 = vector.broadcast %c0_i32_161 : i32 to vector<16x4xi32>
    %345 = arith.cmpi ne, %343, %344 : vector<16x4xi32>
    %c0_i32_162 = arith.constant 0 : i32
    %346 = vector.broadcast %c0_i32_162 : i32 to vector<16x4xi32>
    %347 = arith.cmpi slt, %343, %346 : vector<16x4xi32>
    %c0_i32_163 = arith.constant 0 : i32
    %348 = arith.cmpi slt, %341, %c0_i32_163 : i32
    %349 = vector.broadcast %348 : i1 to vector<16x4xi1>
    %350 = vector.broadcast %349 : vector<16x4xi1> to vector<16x4xi1>
    %351 = arith.xori %347, %350 : vector<16x4xi1>
    %352 = arith.andi %351, %345 : vector<16x4xi1>
    %353 = vector.broadcast %341 : i32 to vector<16x4xi32>
    %354 = arith.addi %343, %353 : vector<16x4xi32>
    %355 = arith.select %352, %354, %343 : vector<16x4xi1>, vector<16x4xi32>
    %c-1_i32_164 = arith.constant -1 : i32
    %356 = vector.broadcast %c-1_i32_164 : i32 to vector<16x4xi32>
    %357 = arith.addi %355, %356 : vector<16x4xi32>
    %c0_i32_165 = arith.constant 0 : i32
    %358 = vector.broadcast %c0_i32_165 : i32 to vector<16x4xi32>
    %359 = arith.cmpi sge, %357, %358 : vector<16x4xi32>
    %c-1_i32_166 = arith.constant -1 : i32
    %360 = vector.broadcast %c-1_i32_166 : i32 to vector<16x4xi32>
    %361 = arith.addi %355, %360 : vector<16x4xi32>
    %c4_i32_167 = arith.constant 4 : i32
    %362 = vector.broadcast %c4_i32_167 : i32 to vector<16x4xi32>
    %363 = arith.cmpi slt, %361, %362 : vector<16x4xi32>
    %364 = arith.andi %359, %363 : vector<16x4xi1>
    %cst_168 = arith.constant 0.000000e+00 : bf16
    %365 = vector.broadcast %cst_168 : bf16 to vector<16x4xbf16>
    %366 = arith.select %364, %338, %365 : vector<16x4xi1>, vector<16x4xbf16>
    %c0_169 = arith.constant 0 : index
    %c0_170 = arith.constant 0 : index
    %c0_171 = arith.constant 0 : index
    %367 = vector.load %arg15[%c0_169, %c0_170, %c0_171] : memref<3x4x8xbf16, #tpu.memory_space<vmem>>, vector<1x4x8xbf16>
    %368 = vector.shape_cast %367 : vector<1x4x8xbf16> to vector<4x8xbf16>
    %cst_172 = arith.constant dense<0.000000e+00> : vector<16x8xf32>
    %369 = tpu.matmul %366, %368, %cst_172 {dimension_numbers = #tpu.dot_dimension_numbers<[1], [0], [0], [1], [0, 0, 1, 1], [], []>} : vector<16x4xbf16>, vector<4x8xbf16>, vector<16x8xf32> -> vector<16x8xf32>
    %370 = arith.addf %335, %369 : vector<16x8xf32>
    %c1_173 = arith.constant 1 : index
    %c0_174 = arith.constant 0 : index
    %c0_175 = arith.constant 0 : index
    %371 = vector.load %arg15[%c1_173, %c0_174, %c0_175] : memref<3x4x8xbf16, #tpu.memory_space<vmem>>, vector<1x4x8xbf16>
    %372 = vector.shape_cast %371 : vector<1x4x8xbf16> to vector<4x8xbf16>
    %cst_176 = arith.constant dense<0.000000e+00> : vector<16x8xf32>
    %373 = tpu.matmul %334, %372, %cst_176 {dimension_numbers = #tpu.dot_dimension_numbers<[1], [0], [0], [1], [0, 0, 1, 1], [], []>} : vector<16x4xbf16>, vector<4x8xbf16>, vector<16x8xf32> -> vector<16x8xf32>
    %374 = arith.addf %370, %373 : vector<16x8xf32>
    %cst_177 = arith.constant 0.000000e+00 : bf16
    %375 = vector.broadcast %cst_177 : bf16 to vector<1x4xbf16>
    %376 = vector.extract_strided_slice %334 {offsets = [1, 0], sizes = [15, 4], strides = [1, 1]} : vector<16x4xbf16> to vector<15x4xbf16>
    %377 = tpu.concatenate %376, %375 in 0 : vector<15x4xbf16>, vector<1x4xbf16> -> vector<16x4xbf16>
    %378 = tpu.iota {dimensions = array<i32: 0>} : vector<16x4xi32>
    %c4_i32_178 = arith.constant 4 : i32
    %c0_i32_179 = arith.constant 0 : i32
    %379 = arith.cmpi eq, %c4_i32_178, %c0_i32_179 : i32
    %c1_i32_180 = arith.constant 1 : i32
    %380 = arith.select %379, %c1_i32_180, %c4_i32_178 : i32
    %381 = vector.broadcast %380 : i32 to vector<16x4xi32>
    %382 = arith.remsi %378, %381 : vector<16x4xi32>
    %c0_i32_181 = arith.constant 0 : i32
    %383 = vector.broadcast %c0_i32_181 : i32 to vector<16x4xi32>
    %384 = arith.cmpi ne, %382, %383 : vector<16x4xi32>
    %c0_i32_182 = arith.constant 0 : i32
    %385 = vector.broadcast %c0_i32_182 : i32 to vector<16x4xi32>
    %386 = arith.cmpi slt, %382, %385 : vector<16x4xi32>
    %c0_i32_183 = arith.constant 0 : i32
    %387 = arith.cmpi slt, %380, %c0_i32_183 : i32
    %388 = vector.broadcast %387 : i1 to vector<16x4xi1>
    %389 = vector.broadcast %388 : vector<16x4xi1> to vector<16x4xi1>
    %390 = arith.xori %386, %389 : vector<16x4xi1>
    %391 = arith.andi %390, %384 : vector<16x4xi1>
    %392 = vector.broadcast %380 : i32 to vector<16x4xi32>
    %393 = arith.addi %382, %392 : vector<16x4xi32>
    %394 = arith.select %391, %393, %382 : vector<16x4xi1>, vector<16x4xi32>
    %c1_i32_184 = arith.constant 1 : i32
    %395 = vector.broadcast %c1_i32_184 : i32 to vector<16x4xi32>
    %396 = arith.addi %394, %395 : vector<16x4xi32>
    %c0_i32_185 = arith.constant 0 : i32
    %397 = vector.broadcast %c0_i32_185 : i32 to vector<16x4xi32>
    %398 = arith.cmpi sge, %396, %397 : vector<16x4xi32>
    %c1_i32_186 = arith.constant 1 : i32
    %399 = vector.broadcast %c1_i32_186 : i32 to vector<16x4xi32>
    %400 = arith.addi %394, %399 : vector<16x4xi32>
    %c4_i32_187 = arith.constant 4 : i32
    %401 = vector.broadcast %c4_i32_187 : i32 to vector<16x4xi32>
    %402 = arith.cmpi slt, %400, %401 : vector<16x4xi32>
    %403 = arith.andi %398, %402 : vector<16x4xi1>
    %cst_188 = arith.constant 0.000000e+00 : bf16
    %404 = vector.broadcast %cst_188 : bf16 to vector<16x4xbf16>
    %405 = arith.select %403, %377, %404 : vector<16x4xi1>, vector<16x4xbf16>
    %c2_189 = arith.constant 2 : index
    %c0_190 = arith.constant 0 : index
    %c0_191 = arith.constant 0 : index
    %406 = vector.load %arg15[%c2_189, %c0_190, %c0_191] : memref<3x4x8xbf16, #tpu.memory_space<vmem>>, vector<1x4x8xbf16>
    %407 = vector.shape_cast %406 : vector<1x4x8xbf16> to vector<4x8xbf16>
    %cst_192 = arith.constant dense<0.000000e+00> : vector<16x8xf32>
    %408 = tpu.matmul %405, %407, %cst_192 {dimension_numbers = #tpu.dot_dimension_numbers<[1], [0], [0], [1], [0, 0, 1, 1], [], []>} : vector<16x4xbf16>, vector<4x8xbf16>, vector<16x8xf32> -> vector<16x8xf32>
    %409 = arith.addf %374, %408 : vector<16x8xf32>
    %c0_193 = arith.constant 0 : index
    %c0_194 = arith.constant 0 : index
    %410 = vector.load %arg16[%c0_193, %c0_194] : memref<1x8xf32, #tpu.memory_space<vmem>>, vector<1x8xf32>
    %411 = vector.broadcast %410 : vector<1x8xf32> to vector<16x8xf32>
    %412 = arith.addf %409, %411 : vector<16x8xf32>
    %cst_195 = arith.constant 0.000000e+00 : f32
    %413 = vector.broadcast %cst_195 : f32 to vector<16x8xf32>
    %414 = arith.cmpf ogt, %412, %413 : vector<16x8xf32>
    %cst_196 = arith.constant 0.00999999977 : f32
    %415 = vector.broadcast %cst_196 : f32 to vector<16x8xf32>
    %416 = arith.mulf %415, %412 : vector<16x8xf32>
    %417 = arith.select %414, %412, %416 : vector<16x8xi1>, vector<16x8xf32>
    %418 = arith.truncf %417 : vector<16x8xf32> to vector<16x8xbf16>
    %cst_197 = arith.constant 0.000000e+00 : f32
    %419 = vector.broadcast %cst_197 : f32 to vector<16x4xf32>
    %cst_198 = arith.constant 0.000000e+00 : bf16
    %420 = vector.broadcast %cst_198 : bf16 to vector<1x8xbf16>
    %421 = vector.extract_strided_slice %418 {offsets = [0, 0], sizes = [15, 8], strides = [1, 1]} : vector<16x8xbf16> to vector<15x8xbf16>
    %422 = tpu.concatenate %420, %421 in 0 : vector<1x8xbf16>, vector<15x8xbf16> -> vector<16x8xbf16>
    %423 = tpu.iota {dimensions = array<i32: 0>} : vector<16x8xi32>
    %c4_i32_199 = arith.constant 4 : i32
    %c0_i32_200 = arith.constant 0 : i32
    %424 = arith.cmpi eq, %c4_i32_199, %c0_i32_200 : i32
    %c1_i32_201 = arith.constant 1 : i32
    %425 = arith.select %424, %c1_i32_201, %c4_i32_199 : i32
    %426 = vector.broadcast %425 : i32 to vector<16x8xi32>
    %427 = arith.remsi %423, %426 : vector<16x8xi32>
    %c0_i32_202 = arith.constant 0 : i32
    %428 = vector.broadcast %c0_i32_202 : i32 to vector<16x8xi32>
    %429 = arith.cmpi ne, %427, %428 : vector<16x8xi32>
    %c0_i32_203 = arith.constant 0 : i32
    %430 = vector.broadcast %c0_i32_203 : i32 to vector<16x8xi32>
    %431 = arith.cmpi slt, %427, %430 : vector<16x8xi32>
    %c0_i32_204 = arith.constant 0 : i32
    %432 = arith.cmpi slt, %425, %c0_i32_204 : i32
    %433 = vector.broadcast %432 : i1 to vector<16x8xi1>
    %434 = vector.broadcast %433 : vector<16x8xi1> to vector<16x8xi1>
    %435 = arith.xori %431, %434 : vector<16x8xi1>
    %436 = arith.andi %435, %429 : vector<16x8xi1>
    %437 = vector.broadcast %425 : i32 to vector<16x8xi32>
    %438 = arith.addi %427, %437 : vector<16x8xi32>
    %439 = arith.select %436, %438, %427 : vector<16x8xi1>, vector<16x8xi32>
    %c-1_i32_205 = arith.constant -1 : i32
    %440 = vector.broadcast %c-1_i32_205 : i32 to vector<16x8xi32>
    %441 = arith.addi %439, %440 : vector<16x8xi32>
    %c0_i32_206 = arith.constant 0 : i32
    %442 = vector.broadcast %c0_i32_206 : i32 to vector<16x8xi32>
    %443 = arith.cmpi sge, %441, %442 : vector<16x8xi32>
    %c-1_i32_207 = arith.constant -1 : i32
    %444 = vector.broadcast %c-1_i32_207 : i32 to vector<16x8xi32>
    %445 = arith.addi %439, %444 : vector<16x8xi32>
    %c4_i32_208 = arith.constant 4 : i32
    %446 = vector.broadcast %c4_i32_208 : i32 to vector<16x8xi32>
    %447 = arith.cmpi slt, %445, %446 : vector<16x8xi32>
    %448 = arith.andi %443, %447 : vector<16x8xi1>
    %cst_209 = arith.constant 0.000000e+00 : bf16
    %449 = vector.broadcast %cst_209 : bf16 to vector<16x8xbf16>
    %450 = arith.select %448, %422, %449 : vector<16x8xi1>, vector<16x8xbf16>
    %c0_210 = arith.constant 0 : index
    %c0_211 = arith.constant 0 : index
    %c0_212 = arith.constant 0 : index
    %451 = vector.load %arg17[%c0_210, %c0_211, %c0_212] : memref<3x8x4xbf16, #tpu.memory_space<vmem>>, vector<1x8x4xbf16>
    %452 = vector.shape_cast %451 : vector<1x8x4xbf16> to vector<8x4xbf16>
    %cst_213 = arith.constant dense<0.000000e+00> : vector<16x4xf32>
    %453 = tpu.matmul %450, %452, %cst_213 {dimension_numbers = #tpu.dot_dimension_numbers<[1], [0], [0], [1], [0, 0, 1, 1], [], []>} : vector<16x8xbf16>, vector<8x4xbf16>, vector<16x4xf32> -> vector<16x4xf32>
    %454 = arith.addf %419, %453 : vector<16x4xf32>
    %c1_214 = arith.constant 1 : index
    %c0_215 = arith.constant 0 : index
    %c0_216 = arith.constant 0 : index
    %455 = vector.load %arg17[%c1_214, %c0_215, %c0_216] : memref<3x8x4xbf16, #tpu.memory_space<vmem>>, vector<1x8x4xbf16>
    %456 = vector.shape_cast %455 : vector<1x8x4xbf16> to vector<8x4xbf16>
    %cst_217 = arith.constant dense<0.000000e+00> : vector<16x4xf32>
    %457 = tpu.matmul %418, %456, %cst_217 {dimension_numbers = #tpu.dot_dimension_numbers<[1], [0], [0], [1], [0, 0, 1, 1], [], []>} : vector<16x8xbf16>, vector<8x4xbf16>, vector<16x4xf32> -> vector<16x4xf32>
    %458 = arith.addf %454, %457 : vector<16x4xf32>
    %cst_218 = arith.constant 0.000000e+00 : bf16
    %459 = vector.broadcast %cst_218 : bf16 to vector<1x8xbf16>
    %460 = vector.extract_strided_slice %418 {offsets = [1, 0], sizes = [15, 8], strides = [1, 1]} : vector<16x8xbf16> to vector<15x8xbf16>
    %461 = tpu.concatenate %460, %459 in 0 : vector<15x8xbf16>, vector<1x8xbf16> -> vector<16x8xbf16>
    %462 = tpu.iota {dimensions = array<i32: 0>} : vector<16x8xi32>
    %c4_i32_219 = arith.constant 4 : i32
    %c0_i32_220 = arith.constant 0 : i32
    %463 = arith.cmpi eq, %c4_i32_219, %c0_i32_220 : i32
    %c1_i32_221 = arith.constant 1 : i32
    %464 = arith.select %463, %c1_i32_221, %c4_i32_219 : i32
    %465 = vector.broadcast %464 : i32 to vector<16x8xi32>
    %466 = arith.remsi %462, %465 : vector<16x8xi32>
    %c0_i32_222 = arith.constant 0 : i32
    %467 = vector.broadcast %c0_i32_222 : i32 to vector<16x8xi32>
    %468 = arith.cmpi ne, %466, %467 : vector<16x8xi32>
    %c0_i32_223 = arith.constant 0 : i32
    %469 = vector.broadcast %c0_i32_223 : i32 to vector<16x8xi32>
    %470 = arith.cmpi slt, %466, %469 : vector<16x8xi32>
    %c0_i32_224 = arith.constant 0 : i32
    %471 = arith.cmpi slt, %464, %c0_i32_224 : i32
    %472 = vector.broadcast %471 : i1 to vector<16x8xi1>
    %473 = vector.broadcast %472 : vector<16x8xi1> to vector<16x8xi1>
    %474 = arith.xori %470, %473 : vector<16x8xi1>
    %475 = arith.andi %474, %468 : vector<16x8xi1>
    %476 = vector.broadcast %464 : i32 to vector<16x8xi32>
    %477 = arith.addi %466, %476 : vector<16x8xi32>
    %478 = arith.select %475, %477, %466 : vector<16x8xi1>, vector<16x8xi32>
    %c1_i32_225 = arith.constant 1 : i32
    %479 = vector.broadcast %c1_i32_225 : i32 to vector<16x8xi32>
    %480 = arith.addi %478, %479 : vector<16x8xi32>
    %c0_i32_226 = arith.constant 0 : i32
    %481 = vector.broadcast %c0_i32_226 : i32 to vector<16x8xi32>
    %482 = arith.cmpi sge, %480, %481 : vector<16x8xi32>
    %c1_i32_227 = arith.constant 1 : i32
    %483 = vector.broadcast %c1_i32_227 : i32 to vector<16x8xi32>
    %484 = arith.addi %478, %483 : vector<16x8xi32>
    %c4_i32_228 = arith.constant 4 : i32
    %485 = vector.broadcast %c4_i32_228 : i32 to vector<16x8xi32>
    %486 = arith.cmpi slt, %484, %485 : vector<16x8xi32>
    %487 = arith.andi %482, %486 : vector<16x8xi1>
    %cst_229 = arith.constant 0.000000e+00 : bf16
    %488 = vector.broadcast %cst_229 : bf16 to vector<16x8xbf16>
    %489 = arith.select %487, %461, %488 : vector<16x8xi1>, vector<16x8xbf16>
    %c2_230 = arith.constant 2 : index
    %c0_231 = arith.constant 0 : index
    %c0_232 = arith.constant 0 : index
    %490 = vector.load %arg17[%c2_230, %c0_231, %c0_232] : memref<3x8x4xbf16, #tpu.memory_space<vmem>>, vector<1x8x4xbf16>
    %491 = vector.shape_cast %490 : vector<1x8x4xbf16> to vector<8x4xbf16>
    %cst_233 = arith.constant dense<0.000000e+00> : vector<16x4xf32>
    %492 = tpu.matmul %489, %491, %cst_233 {dimension_numbers = #tpu.dot_dimension_numbers<[1], [0], [0], [1], [0, 0, 1, 1], [], []>} : vector<16x8xbf16>, vector<8x4xbf16>, vector<16x4xf32> -> vector<16x4xf32>
    %493 = arith.addf %458, %492 : vector<16x4xf32>
    %c0_234 = arith.constant 0 : index
    %c0_235 = arith.constant 0 : index
    %494 = vector.load %arg18[%c0_234, %c0_235] : memref<1x4xf32, #tpu.memory_space<vmem>>, vector<1x4xf32>
    %495 = vector.broadcast %494 : vector<1x4xf32> to vector<16x4xf32>
    %496 = arith.addf %493, %495 : vector<16x4xf32>
    %497 = math.tanh %496 : vector<16x4xf32>
    %498 = arith.addf %333, %497 : vector<16x4xf32>
    %499 = arith.truncf %498 : vector<16x4xf32> to vector<16x4xbf16>
    %c0_236 = arith.constant 0 : index
    %c0_237 = arith.constant 0 : index
    %500 = vector.load %arg19[%c0_236, %c0_237] : memref<16x4xbf16, #tpu.memory_space<vmem>>, vector<16x4xbf16>
    tpu.vector_store %arg19[%c0_236, %c0_237], %499 {strides = array<i32>} : memref<16x4xbf16, #tpu.memory_space<vmem>>, vector<16x4xbf16>,
    %501 = arith.truncf %333 : vector<16x4xf32> to vector<16x4xbf16>
    %cst_238 = arith.constant 0.000000e+00 : f32
    %502 = vector.broadcast %cst_238 : f32 to vector<16x8xf32>
    %cst_239 = arith.constant 0.000000e+00 : bf16
    %503 = vector.broadcast %cst_239 : bf16 to vector<1x4xbf16>
    %504 = vector.extract_strided_slice %501 {offsets = [0, 0], sizes = [15, 4], strides = [1, 1]} : vector<16x4xbf16> to vector<15x4xbf16>
    %505 = tpu.concatenate %503, %504 in 0 : vector<1x4xbf16>, vector<15x4xbf16> -> vector<16x4xbf16>
    %506 = tpu.iota {dimensions = array<i32: 0>} : vector<16x4xi32>
    %c4_i32_240 = arith.constant 4 : i32
    %c0_i32_241 = arith.constant 0 : i32
    %507 = arith.cmpi eq, %c4_i32_240, %c0_i32_241 : i32
    %c1_i32_242 = arith.constant 1 : i32
    %508 = arith.select %507, %c1_i32_242, %c4_i32_240 : i32
    %509 = vector.broadcast %508 : i32 to vector<16x4xi32>
    %510 = arith.remsi %506, %509 : vector<16x4xi32>
    %c0_i32_243 = arith.constant 0 : i32
    %511 = vector.broadcast %c0_i32_243 : i32 to vector<16x4xi32>
    %512 = arith.cmpi ne, %510, %511 : vector<16x4xi32>
    %c0_i32_244 = arith.constant 0 : i32
    %513 = vector.broadcast %c0_i32_244 : i32 to vector<16x4xi32>
    %514 = arith.cmpi slt, %510, %513 : vector<16x4xi32>
    %c0_i32_245 = arith.constant 0 : i32
    %515 = arith.cmpi slt, %508, %c0_i32_245 : i32
    %516 = vector.broadcast %515 : i1 to vector<16x4xi1>
    %517 = vector.broadcast %516 : vector<16x4xi1> to vector<16x4xi1>
    %518 = arith.xori %514, %517 : vector<16x4xi1>
    %519 = arith.andi %518, %512 : vector<16x4xi1>
    %520 = vector.broadcast %508 : i32 to vector<16x4xi32>
    %521 = arith.addi %510, %520 : vector<16x4xi32>
    %522 = arith.select %519, %521, %510 : vector<16x4xi1>, vector<16x4xi32>
    %c-1_i32_246 = arith.constant -1 : i32
    %523 = vector.broadcast %c-1_i32_246 : i32 to vector<16x4xi32>
    %524 = arith.addi %522, %523 : vector<16x4xi32>
    %c0_i32_247 = arith.constant 0 : i32
    %525 = vector.broadcast %c0_i32_247 : i32 to vector<16x4xi32>
    %526 = arith.cmpi sge, %524, %525 : vector<16x4xi32>
    %c-1_i32_248 = arith.constant -1 : i32
    %527 = vector.broadcast %c-1_i32_248 : i32 to vector<16x4xi32>
    %528 = arith.addi %522, %527 : vector<16x4xi32>
    %c4_i32_249 = arith.constant 4 : i32
    %529 = vector.broadcast %c4_i32_249 : i32 to vector<16x4xi32>
    %530 = arith.cmpi slt, %528, %529 : vector<16x4xi32>
    %531 = arith.andi %526, %530 : vector<16x4xi1>
    %cst_250 = arith.constant 0.000000e+00 : bf16
    %532 = vector.broadcast %cst_250 : bf16 to vector<16x4xbf16>
    %533 = arith.select %531, %505, %532 : vector<16x4xi1>, vector<16x4xbf16>
    %c0_251 = arith.constant 0 : index
    %c0_252 = arith.constant 0 : index
    %c0_253 = arith.constant 0 : index
    %534 = vector.load %arg11[%c0_251, %c0_252, %c0_253] : memref<3x4x8xbf16, #tpu.memory_space<vmem>>, vector<1x4x8xbf16>
    %535 = vector.shape_cast %534 : vector<1x4x8xbf16> to vector<4x8xbf16>
    %cst_254 = arith.constant dense<0.000000e+00> : vector<16x8xf32>
    %536 = tpu.matmul %533, %535, %cst_254 {dimension_numbers = #tpu.dot_dimension_numbers<[1], [0], [0], [1], [0, 0, 1, 1], [], []>} : vector<16x4xbf16>, vector<4x8xbf16>, vector<16x8xf32> -> vector<16x8xf32>
    %537 = arith.addf %502, %536 : vector<16x8xf32>
    %c1_255 = arith.constant 1 : index
    %c0_256 = arith.constant 0 : index
    %c0_257 = arith.constant 0 : index
    %538 = vector.load %arg11[%c1_255, %c0_256, %c0_257] : memref<3x4x8xbf16, #tpu.memory_space<vmem>>, vector<1x4x8xbf16>
    %539 = vector.shape_cast %538 : vector<1x4x8xbf16> to vector<4x8xbf16>
    %cst_258 = arith.constant dense<0.000000e+00> : vector<16x8xf32>
    %540 = tpu.matmul %501, %539, %cst_258 {dimension_numbers = #tpu.dot_dimension_numbers<[1], [0], [0], [1], [0, 0, 1, 1], [], []>} : vector<16x4xbf16>, vector<4x8xbf16>, vector<16x8xf32> -> vector<16x8xf32>
    %541 = arith.addf %537, %540 : vector<16x8xf32>
    %cst_259 = arith.constant 0.000000e+00 : bf16
    %542 = vector.broadcast %cst_259 : bf16 to vector<1x4xbf16>
    %543 = vector.extract_strided_slice %501 {offsets = [1, 0], sizes = [15, 4], strides = [1, 1]} : vector<16x4xbf16> to vector<15x4xbf16>
    %544 = tpu.concatenate %543, %542 in 0 : vector<15x4xbf16>, vector<1x4xbf16> -> vector<16x4xbf16>
    %545 = tpu.iota {dimensions = array<i32: 0>} : vector<16x4xi32>
    %c4_i32_260 = arith.constant 4 : i32
    %c0_i32_261 = arith.constant 0 : i32
    %546 = arith.cmpi eq, %c4_i32_260, %c0_i32_261 : i32
    %c1_i32_262 = arith.constant 1 : i32
    %547 = arith.select %546, %c1_i32_262, %c4_i32_260 : i32
    %548 = vector.broadcast %547 : i32 to vector<16x4xi32>
    %549 = arith.remsi %545, %548 : vector<16x4xi32>
    %c0_i32_263 = arith.constant 0 : i32
    %550 = vector.broadcast %c0_i32_263 : i32 to vector<16x4xi32>
    %551 = arith.cmpi ne, %549, %550 : vector<16x4xi32>
    %c0_i32_264 = arith.constant 0 : i32
    %552 = vector.broadcast %c0_i32_264 : i32 to vector<16x4xi32>
    %553 = arith.cmpi slt, %549, %552 : vector<16x4xi32>
    %c0_i32_265 = arith.constant 0 : i32
    %554 = arith.cmpi slt, %547, %c0_i32_265 : i32
    %555 = vector.broadcast %554 : i1 to vector<16x4xi1>
    %556 = vector.broadcast %555 : vector<16x4xi1> to vector<16x4xi1>
    %557 = arith.xori %553, %556 : vector<16x4xi1>
    %558 = arith.andi %557, %551 : vector<16x4xi1>
    %559 = vector.broadcast %547 : i32 to vector<16x4xi32>
    %560 = arith.addi %549, %559 : vector<16x4xi32>
    %561 = arith.select %558, %560, %549 : vector<16x4xi1>, vector<16x4xi32>
    %c1_i32_266 = arith.constant 1 : i32
    %562 = vector.broadcast %c1_i32_266 : i32 to vector<16x4xi32>
    %563 = arith.addi %561, %562 : vector<16x4xi32>
    %c0_i32_267 = arith.constant 0 : i32
    %564 = vector.broadcast %c0_i32_267 : i32 to vector<16x4xi32>
    %565 = arith.cmpi sge, %563, %564 : vector<16x4xi32>
    %c1_i32_268 = arith.constant 1 : i32
    %566 = vector.broadcast %c1_i32_268 : i32 to vector<16x4xi32>
    %567 = arith.addi %561, %566 : vector<16x4xi32>
    %c4_i32_269 = arith.constant 4 : i32
    %568 = vector.broadcast %c4_i32_269 : i32 to vector<16x4xi32>
    %569 = arith.cmpi slt, %567, %568 : vector<16x4xi32>
    %570 = arith.andi %565, %569 : vector<16x4xi1>
    %cst_270 = arith.constant 0.000000e+00 : bf16
    %571 = vector.broadcast %cst_270 : bf16 to vector<16x4xbf16>
    %572 = arith.select %570, %544, %571 : vector<16x4xi1>, vector<16x4xbf16>
    %c2_271 = arith.constant 2 : index
    %c0_272 = arith.constant 0 : index
    %c0_273 = arith.constant 0 : index
    %573 = vector.load %arg11[%c2_271, %c0_272, %c0_273] : memref<3x4x8xbf16, #tpu.memory_space<vmem>>, vector<1x4x8xbf16>
    %574 = vector.shape_cast %573 : vector<1x4x8xbf16> to vector<4x8xbf16>
    %cst_274 = arith.constant dense<0.000000e+00> : vector<16x8xf32>
    %575 = tpu.matmul %572, %574, %cst_274 {dimension_numbers = #tpu.dot_dimension_numbers<[1], [0], [0], [1], [0, 0, 1, 1], [], []>} : vector<16x4xbf16>, vector<4x8xbf16>, vector<16x8xf32> -> vector<16x8xf32>
    %576 = arith.addf %541, %575 : vector<16x8xf32>
    %c0_275 = arith.constant 0 : index
    %c0_276 = arith.constant 0 : index
    %577 = vector.load %arg12[%c0_275, %c0_276] : memref<1x8xf32, #tpu.memory_space<vmem>>, vector<1x8xf32>
    %578 = vector.broadcast %577 : vector<1x8xf32> to vector<16x8xf32>
    %579 = arith.addf %576, %578 : vector<16x8xf32>
    %cst_277 = arith.constant 0.000000e+00 : f32
    %580 = vector.broadcast %cst_277 : f32 to vector<16x8xf32>
    %581 = arith.cmpf ogt, %579, %580 : vector<16x8xf32>
    %cst_278 = arith.constant 0.00999999977 : f32
    %582 = vector.broadcast %cst_278 : f32 to vector<16x8xf32>
    %583 = arith.mulf %582, %579 : vector<16x8xf32>
    %584 = arith.select %581, %579, %583 : vector<16x8xi1>, vector<16x8xf32>
    %585 = arith.truncf %584 : vector<16x8xf32> to vector<16x8xbf16>
    %cst_279 = arith.constant 0.000000e+00 : f32
    %586 = vector.broadcast %cst_279 : f32 to vector<16x4xf32>
    %cst_280 = arith.constant 0.000000e+00 : bf16
    %587 = vector.broadcast %cst_280 : bf16 to vector<1x8xbf16>
    %588 = vector.extract_strided_slice %585 {offsets = [0, 0], sizes = [15, 8], strides = [1, 1]} : vector<16x8xbf16> to vector<15x8xbf16>
    %589 = tpu.concatenate %587, %588 in 0 : vector<1x8xbf16>, vector<15x8xbf16> -> vector<16x8xbf16>
    %590 = tpu.iota {dimensions = array<i32: 0>} : vector<16x8xi32>
    %c4_i32_281 = arith.constant 4 : i32
    %c0_i32_282 = arith.constant 0 : i32
    %591 = arith.cmpi eq, %c4_i32_281, %c0_i32_282 : i32
    %c1_i32_283 = arith.constant 1 : i32
    %592 = arith.select %591, %c1_i32_283, %c4_i32_281 : i32
    %593 = vector.broadcast %592 : i32 to vector<16x8xi32>
    %594 = arith.remsi %590, %593 : vector<16x8xi32>
    %c0_i32_284 = arith.constant 0 : i32
    %595 = vector.broadcast %c0_i32_284 : i32 to vector<16x8xi32>
    %596 = arith.cmpi ne, %594, %595 : vector<16x8xi32>
    %c0_i32_285 = arith.constant 0 : i32
    %597 = vector.broadcast %c0_i32_285 : i32 to vector<16x8xi32>
    %598 = arith.cmpi slt, %594, %597 : vector<16x8xi32>
    %c0_i32_286 = arith.constant 0 : i32
    %599 = arith.cmpi slt, %592, %c0_i32_286 : i32
    %600 = vector.broadcast %599 : i1 to vector<16x8xi1>
    %601 = vector.broadcast %600 : vector<16x8xi1> to vector<16x8xi1>
    %602 = arith.xori %598, %601 : vector<16x8xi1>
    %603 = arith.andi %602, %596 : vector<16x8xi1>
    %604 = vector.broadcast %592 : i32 to vector<16x8xi32>
    %605 = arith.addi %594, %604 : vector<16x8xi32>
    %606 = arith.select %603, %605, %594 : vector<16x8xi1>, vector<16x8xi32>
    %c-1_i32_287 = arith.constant -1 : i32
    %607 = vector.broadcast %c-1_i32_287 : i32 to vector<16x8xi32>
    %608 = arith.addi %606, %607 : vector<16x8xi32>
    %c0_i32_288 = arith.constant 0 : i32
    %609 = vector.broadcast %c0_i32_288 : i32 to vector<16x8xi32>
    %610 = arith.cmpi sge, %608, %609 : vector<16x8xi32>
    %c-1_i32_289 = arith.constant -1 : i32
    %611 = vector.broadcast %c-1_i32_289 : i32 to vector<16x8xi32>
    %612 = arith.addi %606, %611 : vector<16x8xi32>
    %c4_i32_290 = arith.constant 4 : i32
    %613 = vector.broadcast %c4_i32_290 : i32 to vector<16x8xi32>
    %614 = arith.cmpi slt, %612, %613 : vector<16x8xi32>
    %615 = arith.andi %610, %614 : vector<16x8xi1>
    %cst_291 = arith.constant 0.000000e+00 : bf16
    %616 = vector.broadcast %cst_291 : bf16 to vector<16x8xbf16>
    %617 = arith.select %615, %589, %616 : vector<16x8xi1>, vector<16x8xbf16>
    %c0_292 = arith.constant 0 : index
    %c0_293 = arith.constant 0 : index
    %c0_294 = arith.constant 0 : index
    %618 = vector.load %arg13[%c0_292, %c0_293, %c0_294] : memref<3x8x4xbf16, #tpu.memory_space<vmem>>, vector<1x8x4xbf16>
    %619 = vector.shape_cast %618 : vector<1x8x4xbf16> to vector<8x4xbf16>
    %cst_295 = arith.constant dense<0.000000e+00> : vector<16x4xf32>
    %620 = tpu.matmul %617, %619, %cst_295 {dimension_numbers = #tpu.dot_dimension_numbers<[1], [0], [0], [1], [0, 0, 1, 1], [], []>} : vector<16x8xbf16>, vector<8x4xbf16>, vector<16x4xf32> -> vector<16x4xf32>
    %621 = arith.addf %586, %620 : vector<16x4xf32>
    %c1_296 = arith.constant 1 : index
    %c0_297 = arith.constant 0 : index
    %c0_298 = arith.constant 0 : index
    %622 = vector.load %arg13[%c1_296, %c0_297, %c0_298] : memref<3x8x4xbf16, #tpu.memory_space<vmem>>, vector<1x8x4xbf16>
    %623 = vector.shape_cast %622 : vector<1x8x4xbf16> to vector<8x4xbf16>
    %cst_299 = arith.constant dense<0.000000e+00> : vector<16x4xf32>
    %624 = tpu.matmul %585, %623, %cst_299 {dimension_numbers = #tpu.dot_dimension_numbers<[1], [0], [0], [1], [0, 0, 1, 1], [], []>} : vector<16x8xbf16>, vector<8x4xbf16>, vector<16x4xf32> -> vector<16x4xf32>
    %625 = arith.addf %621, %624 : vector<16x4xf32>
    %cst_300 = arith.constant 0.000000e+00 : bf16
    %626 = vector.broadcast %cst_300 : bf16 to vector<1x8xbf16>
    %627 = vector.extract_strided_slice %585 {offsets = [1, 0], sizes = [15, 8], strides = [1, 1]} : vector<16x8xbf16> to vector<15x8xbf16>
    %628 = tpu.concatenate %627, %626 in 0 : vector<15x8xbf16>, vector<1x8xbf16> -> vector<16x8xbf16>
    %629 = tpu.iota {dimensions = array<i32: 0>} : vector<16x8xi32>
    %c4_i32_301 = arith.constant 4 : i32
    %c0_i32_302 = arith.constant 0 : i32
    %630 = arith.cmpi eq, %c4_i32_301, %c0_i32_302 : i32
    %c1_i32_303 = arith.constant 1 : i32
    %631 = arith.select %630, %c1_i32_303, %c4_i32_301 : i32
    %632 = vector.broadcast %631 : i32 to vector<16x8xi32>
    %633 = arith.remsi %629, %632 : vector<16x8xi32>
    %c0_i32_304 = arith.constant 0 : i32
    %634 = vector.broadcast %c0_i32_304 : i32 to vector<16x8xi32>
    %635 = arith.cmpi ne, %633, %634 : vector<16x8xi32>
    %c0_i32_305 = arith.constant 0 : i32
    %636 = vector.broadcast %c0_i32_305 : i32 to vector<16x8xi32>
    %637 = arith.cmpi slt, %633, %636 : vector<16x8xi32>
    %c0_i32_306 = arith.constant 0 : i32
    %638 = arith.cmpi slt, %631, %c0_i32_306 : i32
    %639 = vector.broadcast %638 : i1 to vector<16x8xi1>
    %640 = vector.broadcast %639 : vector<16x8xi1> to vector<16x8xi1>
    %641 = arith.xori %637, %640 : vector<16x8xi1>
    %642 = arith.andi %641, %635 : vector<16x8xi1>
    %643 = vector.broadcast %631 : i32 to vector<16x8xi32>
    %644 = arith.addi %633, %643 : vector<16x8xi32>
    %645 = arith.select %642, %644, %633 : vector<16x8xi1>, vector<16x8xi32>
    %c1_i32_307 = arith.constant 1 : i32
    %646 = vector.broadcast %c1_i32_307 : i32 to vector<16x8xi32>
    %647 = arith.addi %645, %646 : vector<16x8xi32>
    %c0_i32_308 = arith.constant 0 : i32
    %648 = vector.broadcast %c0_i32_308 : i32 to vector<16x8xi32>
    %649 = arith.cmpi sge, %647, %648 : vector<16x8xi32>
    %c1_i32_309 = arith.constant 1 : i32
    %650 = vector.broadcast %c1_i32_309 : i32 to vector<16x8xi32>
    %651 = arith.addi %645, %650 : vector<16x8xi32>
    %c4_i32_310 = arith.constant 4 : i32
    %652 = vector.broadcast %c4_i32_310 : i32 to vector<16x8xi32>
    %653 = arith.cmpi slt, %651, %652 : vector<16x8xi32>
    %654 = arith.andi %649, %653 : vector<16x8xi1>
    %cst_311 = arith.constant 0.000000e+00 : bf16
    %655 = vector.broadcast %cst_311 : bf16 to vector<16x8xbf16>
    %656 = arith.select %654, %628, %655 : vector<16x8xi1>, vector<16x8xbf16>
    %c2_312 = arith.constant 2 : index
    %c0_313 = arith.constant 0 : index
    %c0_314 = arith.constant 0 : index
    %657 = vector.load %arg13[%c2_312, %c0_313, %c0_314] : memref<3x8x4xbf16, #tpu.memory_space<vmem>>, vector<1x8x4xbf16>
    %658 = vector.shape_cast %657 : vector<1x8x4xbf16> to vector<8x4xbf16>
    %cst_315 = arith.constant dense<0.000000e+00> : vector<16x4xf32>
    %659 = tpu.matmul %656, %658, %cst_315 {dimension_numbers = #tpu.dot_dimension_numbers<[1], [0], [0], [1], [0, 0, 1, 1], [], []>} : vector<16x8xbf16>, vector<8x4xbf16>, vector<16x4xf32> -> vector<16x4xf32>
    %660 = arith.addf %625, %659 : vector<16x4xf32>
    %c0_316 = arith.constant 0 : index
    %c0_317 = arith.constant 0 : index
    %661 = vector.load %arg14[%c0_316, %c0_317] : memref<1x4xf32, #tpu.memory_space<vmem>>, vector<1x4xf32>
    %662 = vector.broadcast %661 : vector<1x4xf32> to vector<16x4xf32>
    %663 = arith.addf %660, %662 : vector<16x4xf32>
    %664 = math.tanh %663 : vector<16x4xf32>
    %665 = arith.subf %167, %664 : vector<16x4xf32>
    %666 = arith.truncf %665 : vector<16x4xf32> to vector<16x4xbf16>
    %c0_318 = arith.constant 0 : index
    %c0_319 = arith.constant 0 : index
    %667 = vector.load %arg20[%c0_318, %c0_319] : memref<16x4xbf16, #tpu.memory_space<vmem>>, vector<16x4xbf16>
    tpu.vector_store %arg20[%c0_318, %c0_319], %666 {strides = array<i32>} : memref<16x4xbf16, #tpu.memory_space<vmem>>, vector<16x4xbf16>,
    return
  }
  func.func @transform_0(%arg0: i32) -> (i32, i32) {
    %c0_i32 = arith.constant 0 : i32
    %c0_i32_0 = arith.constant 0 : i32
    return %arg0, %c0_i32 : i32, i32
  }
  func.func @transform_1(%arg0: i32) -> (i32, i32) {
    %c0_i32 = arith.constant 0 : i32
    %c0_i32_0 = arith.constant 0 : i32
    return %arg0, %c0_i32 : i32, i32
  }
  func.func @transform_2(%arg0: i32) -> (i32, i32, i32) {
    %c0_i32 = arith.constant 0 : i32
    %c0_i32_0 = arith.constant 0 : i32
    %c0_i32_1 = arith.constant 0 : i32
    %c0_i32_2 = arith.constant 0 : i32
    return %c0_i32, %c0_i32_0, %c0_i32_1 : i32, i32, i32
  }
  func.func @transform_3(%arg0: i32) -> (i32, i32) {
    %c0_i32 = arith.constant 0 : i32
    %c0_i32_0 = arith.constant 0 : i32
    %c0_i32_1 = arith.constant 0 : i32
    return %c0_i32, %c0_i32_0 : i32, i32
  }
  func.func @transform_4(%arg0: i32) -> (i32, i32, i32) {
    %c0_i32 = arith.constant 0 : i32
    %c0_i32_0 = arith.constant 0 : i32
    %c0_i32_1 = arith.constant 0 : i32
    %c0_i32_2 = arith.constant 0 : i32
    return %c0_i32, %c0_i32_0, %c0_i32_1 : i32, i32, i32
  }
  func.func @transform_5(%arg0: i32) -> (i32, i32) {
    %c0_i32 = arith.constant 0 : i32
    %c0_i32_0 = arith.constant 0 : i32
    %c0_i32_1 = arith.constant 0 : i32
    return %c0_i32, %c0_i32_0 : i32, i32
  }
  func.func @transform_6(%arg0: i32) -> (i32, i32, i32) {
    %c0_i32 = arith.constant 0 : i32
    %c0_i32_0 = arith.constant 0 : i32
    %c0_i32_1 = arith.constant 0 : i32
    %c0_i32_2 = arith.constant 0 : i32
    return %c0_i32, %c0_i32_0, %c0_i32_1 : i32, i32, i32
  }
  func.func @transform_7(%arg0: i32) -> (i32, i32) {
    %c0_i32 = arith.constant 0 : i32
    %c0_i32_0 = arith.constant 0 : i32
    %c0_i32_1 = arith.constant 0 : i32
    return %c0_i32, %c0_i32_0 : i32, i32
  }
  func.func @transform_8(%arg0: i32) -> (i32, i32, i32) {
    %c0_i32 = arith.constant 0 : i32
    %c0_i32_0 = arith.constant 0 : i32
    %c0_i32_1 = arith.constant 0 : i32
    %c0_i32_2 = arith.constant 0 : i32
    return %c0_i32, %c0_i32_0, %c0_i32_1 : i32, i32, i32
  }
  func.func @transform_9(%arg0: i32) -> (i32, i32) {
    %c0_i32 = arith.constant 0 : i32
    %c0_i32_0 = arith.constant 0 : i32
    %c0_i32_1 = arith.constant 0 : i32
    return %c0_i32, %c0_i32_0 : i32, i32
  }
  func.func @transform_10(%arg0: i32) -> (i32, i32, i32) {
    %c0_i32 = arith.constant 0 : i32
    %c0_i32_0 = arith.constant 0 : i32
    %c0_i32_1 = arith.constant 0 : i32
    %c0_i32_2 = arith.constant 0 : i32
    return %c0_i32, %c0_i32_0, %c0_i32_1 : i32, i32, i32
  }
  func.func @transform_11(%arg0: i32) -> (i32, i32) {
    %c0_i32 = arith.constant 0 : i32
    %c0_i32_0 = arith.constant 0 : i32
    %c0_i32_1 = arith.constant 0 : i32
    return %c0_i32, %c0_i32_0 : i32, i32
  }
  func.func @transform_12(%arg0: i32) -> (i32, i32, i32) {
    %c0_i32 = arith.constant 0 : i32
    %c0_i32_0 = arith.constant 0 : i32
    %c0_i32_1 = arith.constant 0 : i32
    %c0_i32_2 = arith.constant 0 : i32
    return %c0_i32, %c0_i32_0, %c0_i32_1 : i32, i32, i32
  }
  func.func @transform_13(%arg0: i32) -> (i32, i32) {
    %c0_i32 = arith.constant 0 : i32
    %c0_i32_0 = arith.constant 0 : i32
    %c0_i32_1 = arith.constant 0 : i32
    return %c0_i32, %c0_i32_0 : i32, i32
  }
  func.func @transform_14(%arg0: i32) -> (i32, i32, i32) {
    %c0_i32 = arith.constant 0 : i32
    %c0_i32_0 = arith.constant 0 : i32
    %c0_i32_1 = arith.constant 0 : i32
    %c0_i32_2 = arith.constant 0 : i32
    return %c0_i32, %c0_i32_0, %c0_i32_1 : i32, i32, i32
  }
  func.func @transform_15(%arg0: i32) -> (i32, i32) {
    %c0_i32 = arith.constant 0 : i32
    %c0_i32_0 = arith.constant 0 : i32
    %c0_i32_1 = arith.constant 0 : i32
    return %c0_i32, %c0_i32_0 : i32, i32
  }
  func.func @transform_16(%arg0: i32) -> (i32, i32, i32) {
    %c0_i32 = arith.constant 0 : i32
    %c0_i32_0 = arith.constant 0 : i32
    %c0_i32_1 = arith.constant 0 : i32
    %c0_i32_2 = arith.constant 0 : i32
    return %c0_i32, %c0_i32_0, %c0_i32_1 : i32, i32, i32
  }
  func.func @transform_17(%arg0: i32) -> (i32, i32) {
    %c0_i32 = arith.constant 0 : i32
    %c0_i32_0 = arith.constant 0 : i32
    %c0_i32_1 = arith.constant 0 : i32
    return %c0_i32, %c0_i32_0 : i32, i32
  }
  func.func @transform_18(%arg0: i32) -> (i32, i32) {
    %c0_i32 = arith.constant 0 : i32
    %c0_i32_0 = arith.constant 0 : i32
    return %arg0, %c0_i32 : i32, i32
  }
  func.func @transform_19(%arg0: i32) -> (i32, i32) {
    %c0_i32 = arith.constant 0 : i32
    %c0_i32_0 = arith.constant 0 : i32
    return %arg0, %c0_i32 : i32, i32
  }
}

module attributes {stable_mosaic.version = 11 : i64} {
  func.func @fc_kernel(%arg0: i32, %arg1: memref<8x16xbf16, #tpu.memory_space<vmem>>, %arg2: memref<8x16xbf16, #tpu.memory_space<vmem>>, %arg3: memref<16x128xbf16, #tpu.memory_space<vmem>>, %arg4: memref<16x128xbf16, #tpu.memory_space<vmem>>, %arg5: memref<1x128xf32, #tpu.memory_space<vmem>>, %arg6: memref<8x128xf32, #tpu.memory_space<vmem>>) attributes {dimension_semantics = [#tpu.dimension_semantics<parallel>], iteration_bounds = array<i64: 1>, scalar_prefetch = 0 : i64, scratch_operands = 0 : i64, tpu.core_type = #tpu.core_type<tc>, window_params = [{transform_indices = @transform_0, window_bounds = array<i64: 8, 16>}, {transform_indices = @transform_1, window_bounds = array<i64: 8, 16>}, {pipeline_mode = #tpu.pipeline_mode<synchronous>, transform_indices = @transform_2, window_bounds = array<i64: 16, 128>}, {pipeline_mode = #tpu.pipeline_mode<synchronous>, transform_indices = @transform_3, window_bounds = array<i64: 16, 128>}, {pipeline_mode = #tpu.pipeline_mode<synchronous>, transform_indices = @transform_4, window_bounds = array<i64: 1, 128>}, {transform_indices = @transform_5, window_bounds = array<i64: 8, 128>}]} {
    %c0 = arith.constant 0 : index
    %c0_0 = arith.constant 0 : index
    %0 = vector.load %arg1[%c0, %c0_0] : memref<8x16xbf16, #tpu.memory_space<vmem>>, vector<8x16xbf16>
    %c0_1 = arith.constant 0 : index
    %c0_2 = arith.constant 0 : index
    %1 = vector.load %arg3[%c0_1, %c0_2] : memref<16x128xbf16, #tpu.memory_space<vmem>>, vector<16x128xbf16>
    %cst = arith.constant dense<0.000000e+00> : vector<8x128xf32>
    %2 = tpu.matmul %0, %1, %cst {dimension_numbers = #tpu.dot_dimension_numbers<[1], [0], [0], [1], [0, 0, 1, 1], [], []>} : vector<8x16xbf16>, vector<16x128xbf16>, vector<8x128xf32> -> vector<8x128xf32>
    %c0_3 = arith.constant 0 : index
    %c0_4 = arith.constant 0 : index
    %3 = vector.load %arg2[%c0_3, %c0_4] : memref<8x16xbf16, #tpu.memory_space<vmem>>, vector<8x16xbf16>
    %c0_5 = arith.constant 0 : index
    %c0_6 = arith.constant 0 : index
    %4 = vector.load %arg4[%c0_5, %c0_6] : memref<16x128xbf16, #tpu.memory_space<vmem>>, vector<16x128xbf16>
    %cst_7 = arith.constant dense<0.000000e+00> : vector<8x128xf32>
    %5 = tpu.matmul %3, %4, %cst_7 {dimension_numbers = #tpu.dot_dimension_numbers<[1], [0], [0], [1], [0, 0, 1, 1], [], []>} : vector<8x16xbf16>, vector<16x128xbf16>, vector<8x128xf32> -> vector<8x128xf32>
    %6 = arith.addf %2, %5 : vector<8x128xf32>
    %c0_8 = arith.constant 0 : index
    %c0_9 = arith.constant 0 : index
    %7 = vector.load %arg5[%c0_8, %c0_9] : memref<1x128xf32, #tpu.memory_space<vmem>>, vector<1x128xf32>
    %8 = vector.broadcast %7 : vector<1x128xf32> to vector<8x128xf32>
    %9 = arith.addf %6, %8 : vector<8x128xf32>
    %c0_10 = arith.constant 0 : index
    %c0_11 = arith.constant 0 : index
    %10 = vector.load %arg6[%c0_10, %c0_11] : memref<8x128xf32, #tpu.memory_space<vmem>>, vector<8x128xf32>
    tpu.vector_store %arg6[%c0_10, %c0_11], %9 {strides = array<i32>} : memref<8x128xf32, #tpu.memory_space<vmem>>, vector<8x128xf32>,
    return
  }
  func.func @transform_0(%arg0: i32) -> (i32, i32) {
    %c0_i32 = arith.constant 0 : i32
    %c0_i32_0 = arith.constant 0 : i32
    return %arg0, %c0_i32 : i32, i32
  }
  func.func @transform_1(%arg0: i32) -> (i32, i32) {
    %c0_i32 = arith.constant 0 : i32
    %c0_i32_0 = arith.constant 0 : i32
    return %arg0, %c0_i32 : i32, i32
  }
  func.func @transform_2(%arg0: i32) -> (i32, i32) {
    %c0_i32 = arith.constant 0 : i32
    %c0_i32_0 = arith.constant 0 : i32
    %c0_i32_1 = arith.constant 0 : i32
    return %c0_i32, %c0_i32_0 : i32, i32
  }
  func.func @transform_3(%arg0: i32) -> (i32, i32) {
    %c0_i32 = arith.constant 0 : i32
    %c0_i32_0 = arith.constant 0 : i32
    %c0_i32_1 = arith.constant 0 : i32
    return %c0_i32, %c0_i32_0 : i32, i32
  }
  func.func @transform_4(%arg0: i32) -> (i32, i32) {
    %c0_i32 = arith.constant 0 : i32
    %c0_i32_0 = arith.constant 0 : i32
    %c0_i32_1 = arith.constant 0 : i32
    return %c0_i32, %c0_i32_0 : i32, i32
  }
  func.func @transform_5(%arg0: i32) -> (i32, i32) {
    %c0_i32 = arith.constant 0 : i32
    %c0_i32_0 = arith.constant 0 : i32
    return %arg0, %c0_i32 : i32, i32
  }
}

</mosaic_0001>

<llo_original>
// kernel: sci_net_forward.5
$region0: #{sci_net_forward.5}
  #allocation0 [shape = 'u32[]', space=smem, size = 0x4, offset = 0x4, fixed_abs, tag = 'smem constant byte address 0x4 - core index']
  #allocation1 [shape = 'u32[144,128]{1,0:T(1,128)}', space=vmem, size = 0x12000, scoped, tag = 'internal scratch']
  %s0 = inlined_call_operand.vmem [shape: bf16[8,16], index: 0, kind: input, shape index: {}]
  %s1 = inlined_call_operand.vmem [shape: bf16[8,16], index: 1, kind: input, shape index: {}]
  %s2 = inlined_call_operand.vmem [shape: bf16[16,128], index: 2, kind: input, shape index: {}]
  %s3 = inlined_call_operand.vmem [shape: bf16[16,128], index: 3, kind: input, shape index: {}]
  %s4 = inlined_call_operand.vmem [shape: f32[1,128], index: 4, kind: input, shape index: {}]
  %s5 = inlined_call_operand.hbm [shape: f32[8,128], index: 5, kind: output, shape index: {}]
  %s6 = sld [smem:[#allocation0]]
  $region30: #{sci_net_forward.5} parent=0
    _
  %s8 = ssub.s32 1, %s6
  %s9 = scalar_select 0, %s8, %s6
  $region1: #{sci_net_forward.5} parent=0
    #allocation2 [shape = 'u8[4096]{0}', space=vmem, size = 0x1000, scoped, tag = 'output window, operand 0, single buffered']
    #allocation3 [shape = 's32[1]{0}', space=sflag, size = 0x4, scoped, tag = 'scoped memory for sci_net_forward.5']
    %10 = vsyncpa [#allocation3], 0
    // Predicated region
    $region2: #{sci_net_forward.5} parent=1 // pred_check
      _
    $region3: #{sci_net_forward.5} parent=1 // pred_check_branch
      %12 = sbr.rel (0) target = $region5
    $region4: #{sci_net_forward.5} parent=1 // pred_region
      _
    $region5: #{sci_net_forward.5} parent=1 // pred_fallthru
      _
    // Predicated region
    $region6: #{sci_net_forward.5} parent=1 // pred_check
      _
    $region7: #{sci_net_forward.5} parent=1 // pred_check_branch
      %14 = sbr.rel (0) target = $region9
    $region8: #{sci_net_forward.5} parent=1 // pred_region
      _
    $region9: #{sci_net_forward.5} parent=1 // pred_fallthru
      _
    // Predicated region
    $region10: #{sci_net_forward.5} parent=1 // pred_check
      _
    $region11: #{sci_net_forward.5} parent=1 // pred_check_branch
      %16 = sbr.rel (0) target = $region13
    $region12: #{sci_net_forward.5} parent=1 // pred_region
      _
    $region13: #{sci_net_forward.5} parent=1 // pred_fallthru
      _
    // Predicated region
    $region14: #{sci_net_forward.5} parent=1 // pred_check
      _
    $region15: #{sci_net_forward.5} parent=1 // pred_check_branch
      %18 = sbr.rel (0) target = $region17
    $region16: #{sci_net_forward.5} parent=1 // pred_region
      _
    $region17: #{sci_net_forward.5} parent=1 // pred_fallthru
      _
    // Predicated region
    $region18: #{sci_net_forward.5} parent=1 // pred_check
      _
    $region19: #{sci_net_forward.5} parent=1 // pred_check_branch
      %20 = sbr.rel (0) target = $region21
    $region20: #{sci_net_forward.5} parent=1 // pred_region
      _
    $region21: #{sci_net_forward.5} parent=1 // pred_fallthru
      _
    %v22 = vld [vmem:[%s0] sm:$0xf]
    %v23 = vld [vmem:[%s2] sm:$0xf]
    %v24 = vld [vmem:[%s2 + $0x4] sm:$0xf]
    %v25 = vld [vmem:[%s1] sm:$0xf]
    %v26 = vld [vmem:[%s3] sm:$0xf]
    %v27 = vld [vmem:[%s3 + $0x4] sm:$0xf]
    %v30 = vunpack.c.l.b16 %v26
    %v31 = vunpack.c.l.b16 %v27
    %v32 = vpack.c.b16 %v31, %v30
    %vm34 = vcmask 130048
    %v36 = vsel %vm34, %v25, 0
    %38 = vmatprep.subr.bf16.mxu0 0
    %39 = vmatpush1.bf16.msra.mxu0 %v32
    %40 = vmatprep.subr.bf16.mxu0 0
    %41 = vmatpush1.bf16.msra.mxu0 0
    %42 = vmatprep.subr.bf16.mxu0 0
    %43 = vmatpush1.bf16.msra.mxu0 0
    %44 = vmatprep.subr.bf16.mxu0 0
    %45 = vmatpush1.bf16.msra.mxu0 0
    %46 = vmatprep.subr.bf16.mxu0 0
    %47 = vmatpush1.bf16.msra.mxu0 0
    %48 = vmatprep.subr.bf16.mxu0 0
    %49 = vmatpush1.bf16.msra.mxu0 0
    %50 = vmatprep.subr.bf16.mxu0 0
    %51 = vmatpush1.bf16.msra.mxu0 0
    %52 = vmatprep.subr.bf16.mxu0 0
    %53 = vmatpush1.bf16.msra.mxu0 0
    %54 = vmatprep.subr.bf16.mxu0 0
    %55 = vmatpush1.bf16.msra.mxu0 0
    %56 = vmatprep.subr.bf16.mxu0 0
    %57 = vmatpush1.bf16.msra.mxu0 0
    %58 = vmatprep.subr.bf16.mxu0 0
    %59 = vmatpush1.bf16.msra.mxu0 0
    %60 = vmatprep.subr.bf16.mxu0 0
    %61 = vmatpush1.bf16.msra.mxu0 0
    %62 = vmatprep.subr.bf16.mxu0 0
    %63 = vmatpush1.bf16.msra.mxu0 0
    %64 = vmatprep.subr.bf16.mxu0 0
    %65 = vmatpush1.bf16.msra.mxu0 0
    %66 = vmatprep.subr.bf16.mxu0 0
    %67 = vmatpush1.bf16.msra.mxu0 0
    %68 = vmatprep.subr.bf16.mxu0 0
    %69 = vmatpush1.bf16.msra.mxu0 0
    %70 = vmatprep.mubr.bf16.mxu0 0
    %71 = vmatmul.mubr.bf16.gmra.mrb[0].mxu0 %v36
    %v72 = vpop.f32.mrb[0].mxu0
    %v73 = vadd.f32 0.0, %v72
    %v74 = vpop.f32.mrb[0].mxu0
    %v75 = vpop.f32.mrb[0].mxu0
    %v76 = vpop.f32.mrb[0].mxu0
    %77 = vdwg.mxu0
    %v80 = vunpack.c.l.b16 %v23
    %v81 = vunpack.c.l.b16 %v24
    %v82 = vpack.c.b16 %v81, %v80
    %v85 = vsel %vm34, %v22, 0
    %87 = vmatprep.subr.bf16.mxu0 0
    %88 = vmatpush1.bf16.msra.mxu0 %v82
    %89 = vmatprep.subr.bf16.mxu0 0
    %90 = vmatpush1.bf16.msra.mxu0 0
    %91 = vmatprep.subr.bf16.mxu0 0
    %92 = vmatpush1.bf16.msra.mxu0 0
    %93 = vmatprep.subr.bf16.mxu0 0
    %94 = vmatpush1.bf16.msra.mxu0 0
    %95 = vmatprep.subr.bf16.mxu0 0
    %96 = vmatpush1.bf16.msra.mxu0 0
    %97 = vmatprep.subr.bf16.mxu0 0
    %98 = vmatpush1.bf16.msra.mxu0 0
    %99 = vmatprep.subr.bf16.mxu0 0
    %100 = vmatpush1.bf16.msra.mxu0 0
    %101 = vmatprep.subr.bf16.mxu0 0
    %102 = vmatpush1.bf16.msra.mxu0 0
    %103 = vmatprep.subr.bf16.mxu0 0
    %104 = vmatpush1.bf16.msra.mxu0 0
    %105 = vmatprep.subr.bf16.mxu0 0
    %106 = vmatpush1.bf16.msra.mxu0 0
    %107 = vmatprep.subr.bf16.mxu0 0
    %108 = vmatpush1.bf16.msra.mxu0 0
    %109 = vmatprep.subr.bf16.mxu0 0
    %110 = vmatpush1.bf16.msra.mxu0 0
    %111 = vmatprep.subr.bf16.mxu0 0
    %112 = vmatpush1.bf16.msra.mxu0 0
    %113 = vmatprep.subr.bf16.mxu0 0
    %114 = vmatpush1.bf16.msra.mxu0 0
    %115 = vmatprep.subr.bf16.mxu0 0
    %116 = vmatpush1.bf16.msra.mxu0 0
    %117 = vmatprep.subr.bf16.mxu0 0
    %118 = vmatpush1.bf16.msra.mxu0 0
    %119 = vmatprep.mubr.bf16.mxu0 0
    %120 = vmatmul.mubr.bf16.gmra.mrb[0].mxu0 %v85
    %v121 = vpop.f32.mrb[0].mxu0
    %v122 = vadd.f32 %v73, %v121
    %v123 = vpop.f32.mrb[0].mxu0
    %v124 = vpop.f32.mrb[0].mxu0
    %v125 = vpop.f32.mrb[0].mxu0
    %126 = vdwg.mxu0
    %v127 = vld [vmem:[%s4] sm:$0x1]
    %v129 = vlaneseq
    %v130 = vshrl.u32 %v129, 7
    %v131 = vsub.s32 0, %v130
    %v132 = vrot.slane %v127, %v131
    %v134 = vadd.f32 %v122, %v132
    %135 = vst [vmem:[#allocation2] sm:$0xff] %v134
    // Predicated region
    $region22: #{sci_net_forward.5} parent=1 // pred_check
      _
    $region23: #{sci_net_forward.5} parent=1 // pred_check_branch
      %137 = sbr.rel (0) target = $region25
    $region24: #{sci_net_forward.5} parent=1 // pred_region
      %s139 = ssub.s32 128, 128
      %140 = vsyncadd [#allocation3], %s139
      %s142 = sshll.u32 [#allocation2], 4
      %s143 = int_to_ptr.vmem [resolvable:$true] %s142
      %145 = dma.vmem_to_hbm [thread:$0]  %s143, 128, %s5, [#allocation3]
    $region25: #{sci_net_forward.5} parent=1 // pred_fallthru
      _
    // Predicated region
    $region26: #{sci_net_forward.5} parent=1 // pred_check
      _
    $region27: #{sci_net_forward.5} parent=1 // pred_check_branch
      %147 = sbr.rel (0) target = $region29
    $region28: #{sci_net_forward.5} parent=1 // pred_region
      %148 = dma.done [#allocation3], 128
    $region29: #{sci_net_forward.5} parent=1 // pred_fallthru
      _
    %149 = vsyncpa [#allocation3], 1

// kernel: sci_net_forward.4
$region0: #{sci_net_forward.4}
  #allocation0 [shape = 'u32[]', space=smem, size = 0x4, offset = 0x4, fixed_abs, tag = 'smem constant byte address 0x4 - core index']
  #allocation1 [shape = 'u32[144,128]{1,0:T(1,128)}', space=vmem, size = 0x12000, scoped, tag = 'internal scratch']
  %s0 = inlined_call_operand.vmem [shape: bf16[16,4], index: 0, kind: input, shape index: {}]
  %s1 = inlined_call_operand.vmem [shape: bf16[16,4], index: 1, kind: input, shape index: {}]
  %s2 = inlined_call_operand.vmem [shape: bf16[3,4,8], index: 2, kind: input, shape index: {}]
  %s3 = inlined_call_operand.vmem [shape: f32[1,8], index: 3, kind: input, shape index: {}]
  %s4 = inlined_call_operand.vmem [shape: bf16[3,8,4], index: 4, kind: input, shape index: {}]
  %s5 = inlined_call_operand.vmem [shape: f32[1,4], index: 5, kind: input, shape index: {}]
  %s6 = inlined_call_operand.vmem [shape: bf16[3,4,8], index: 6, kind: input, shape index: {}]
  %s7 = inlined_call_operand.vmem [shape: f32[1,8], index: 7, kind: input, shape index: {}]
  %s8 = inlined_call_operand.vmem [shape: bf16[3,8,4], index: 8, kind: input, shape index: {}]
  %s9 = inlined_call_operand.vmem [shape: f32[1,4], index: 9, kind: input, shape index: {}]
  %s10 = inlined_call_operand.vmem [shape: bf16[3,4,8], index: 10, kind: input, shape index: {}]
  %s11 = inlined_call_operand.vmem [shape: f32[1,8], index: 11, kind: input, shape index: {}]
  %s12 = inlined_call_operand.vmem [shape: bf16[3,8,4], index: 12, kind: input, shape index: {}]
  %s13 = inlined_call_operand.vmem [shape: f32[1,4], index: 13, kind: input, shape index: {}]
  %s14 = inlined_call_operand.vmem [shape: bf16[3,4,8], index: 14, kind: input, shape index: {}]
  %s15 = inlined_call_operand.vmem [shape: f32[1,8], index: 15, kind: input, shape index: {}]
  %s16 = inlined_call_operand.vmem [shape: bf16[3,8,4], index: 16, kind: input, shape index: {}]
  %s17 = inlined_call_operand.vmem [shape: f32[1,4], index: 17, kind: input, shape index: {}]
  %s18 = inlined_call_operand.vmem [shape: bf16[16,4], index: 18, kind: output, shape index: {0}]
  %s19 = inlined_call_operand.vmem [shape: bf16[16,4], index: 19, kind: output, shape index: {1}]
  %20 = xla_tuple %s18, %s19
  %s21 = sld [smem:[#allocation0]]
  $region90: #{sci_net_forward.4} parent=0
    _
  %s23 = ssub.s32 1, %s21
  %s24 = scalar_select 0, %s23, %s21
  // Predicated region
  $region2: #{sci_net_forward.4} parent=0 // pred_check
    _
  $region3: #{sci_net_forward.4} parent=0 // pred_check_branch
    %26 = sbr.rel (0) target = $region5
  $region4: #{sci_net_forward.4} parent=0 // pred_region
    _
  $region5: #{sci_net_forward.4} parent=0 // pred_fallthru
    _
  // Predicated region
  $region6: #{sci_net_forward.4} parent=0 // pred_check
    _
  $region7: #{sci_net_forward.4} parent=0 // pred_check_branch
    %28 = sbr.rel (0) target = $region9
  $region8: #{sci_net_forward.4} parent=0 // pred_region
    _
  $region9: #{sci_net_forward.4} parent=0 // pred_fallthru
    _
  // Predicated region
  $region10: #{sci_net_forward.4} parent=0 // pred_check
    _
  $region11: #{sci_net_forward.4} parent=0 // pred_check_branch
    %30 = sbr.rel (0) target = $region13
  $region12: #{sci_net_forward.4} parent=0 // pred_region
    _
  $region13: #{sci_net_forward.4} parent=0 // pred_fallthru
    _
  // Predicated region
  $region14: #{sci_net_forward.4} parent=0 // pred_check
    _
  $region15: #{sci_net_forward.4} parent=0 // pred_check_branch
    %32 = sbr.rel (0) target = $region17
  $region16: #{sci_net_forward.4} parent=0 // pred_region
    _
  $region17: #{sci_net_forward.4} parent=0 // pred_fallthru
    _
  // Predicated region
  $region18: #{sci_net_forward.4} parent=0 // pred_check
    _
  $region19: #{sci_net_forward.4} parent=0 // pred_check_branch
    %34 = sbr.rel (0) target = $region21
  $region20: #{sci_net_forward.4} parent=0 // pred_region
    _
  $region21: #{sci_net_forward.4} parent=0 // pred_fallthru
    _
  // Predicated region
  $region22: #{sci_net_forward.4} parent=0 // pred_check
    _
  $region23: #{sci_net_forward.4} parent=0 // pred_check_branch
    %36 = sbr.rel (0) target = $region25
  $region24: #{sci_net_forward.4} parent=0 // pred_region
    _
  $region25: #{sci_net_forward.4} parent=0 // pred_fallthru
    _
  // Predicated region
  $region26: #{sci_net_forward.4} parent=0 // pred_check
    _
  $region27: #{sci_net_forward.4} parent=0 // pred_check_branch
    %38 = sbr.rel (0) target = $region29
  $region28: #{sci_net_forward.4} parent=0 // pred_region
    _
  $region29: #{sci_net_forward.4} parent=0 // pred_fallthru
    _
  // Predicated region
  $region30: #{sci_net_forward.4} parent=0 // pred_check
    _
  $region31: #{sci_net_forward.4} parent=0 // pred_check_branch
    %40 = sbr.rel (0) target = $region33
  $region32: #{sci_net_forward.4} parent=0 // pred_region
    _
  $region33: #{sci_net_forward.4} parent=0 // pred_fallthru
    _
  // Predicated region
  $region34: #{sci_net_forward.4} parent=0 // pred_check
    _
  $region35: #{sci_net_forward.4} parent=0 // pred_check_branch
    %42 = sbr.rel (0) target = $region37
  $region36: #{sci_net_forward.4} parent=0 // pred_region
    _
  $region37: #{sci_net_forward.4} parent=0 // pred_fallthru
    _
  // Predicated region
  $region38: #{sci_net_forward.4} parent=0 // pred_check
    _
  $region39: #{sci_net_forward.4} parent=0 // pred_check_branch
    %44 = sbr.rel (0) target = $region41
  $region40: #{sci_net_forward.4} parent=0 // pred_region
    _
  $region41: #{sci_net_forward.4} parent=0 // pred_fallthru
    _
  // Predicated region
  $region42: #{sci_net_forward.4} parent=0 // pred_check
    _
  $region43: #{sci_net_forward.4} parent=0 // pred_check_branch
    %46 = sbr.rel (0) target = $region45
  $region44: #{sci_net_forward.4} parent=0 // pred_region
    _
  $region45: #{sci_net_forward.4} parent=0 // pred_fallthru
    _
  // Predicated region
  $region46: #{sci_net_forward.4} parent=0 // pred_check
    _
  $region47: #{sci_net_forward.4} parent=0 // pred_check_branch
    %48 = sbr.rel (0) target = $region49
  $region48: #{sci_net_forward.4} parent=0 // pred_region
    _
  $region49: #{sci_net_forward.4} parent=0 // pred_fallthru
    _
  // Predicated region
  $region50: #{sci_net_forward.4} parent=0 // pred_check
    _
  $region51: #{sci_net_forward.4} parent=0 // pred_check_branch
    %50 = sbr.rel (0) target = $region53
  $region52: #{sci_net_forward.4} parent=0 // pred_region
    _
  $region53: #{sci_net_forward.4} parent=0 // pred_fallthru
    _
  // Predicated region
  $region54: #{sci_net_forward.4} parent=0 // pred_check
    _
  $region55: #{sci_net_forward.4} parent=0 // pred_check_branch
    %52 = sbr.rel (0) target = $region57
  $region56: #{sci_net_forward.4} parent=0 // pred_region
    _
  $region57: #{sci_net_forward.4} parent=0 // pred_fallthru
    _
  // Predicated region
  $region58: #{sci_net_forward.4} parent=0 // pred_check
    _
  $region59: #{sci_net_forward.4} parent=0 // pred_check_branch
    %54 = sbr.rel (0) target = $region61
  $region60: #{sci_net_forward.4} parent=0 // pred_region
    _
  $region61: #{sci_net_forward.4} parent=0 // pred_fallthru
    _
  // Predicated region
  $region62: #{sci_net_forward.4} parent=0 // pred_check
    _
  $region63: #{sci_net_forward.4} parent=0 // pred_check_branch
    %56 = sbr.rel (0) target = $region65
  $region64: #{sci_net_forward.4} parent=0 // pred_region
    _
  $region65: #{sci_net_forward.4} parent=0 // pred_fallthru
    _
  // Predicated region
  $region66: #{sci_net_forward.4} parent=0 // pred_check
    _
  $region67: #{sci_net_forward.4} parent=0 // pred_check_branch
    %58 = sbr.rel (0) target = $region69
  $region68: #{sci_net_forward.4} parent=0 // pred_region
    _
  $region69: #{sci_net_forward.4} parent=0 // pred_fallthru
    _
  // Predicated region
  $region70: #{sci_net_forward.4} parent=0 // pred_check
    _
  $region71: #{sci_net_forward.4} parent=0 // pred_check_branch
    %60 = sbr.rel (0) target = $region73
  $region72: #{sci_net_forward.4} parent=0 // pred_region
    _
  $region73: #{sci_net_forward.4} parent=0 // pred_fallthru
    _
  %v64 = vld [vmem:[%s0] sm:$0xf]
  %v65 = vld [vmem:[%s0 + $0x4] sm:$0xf]
  %v66 = vld [vmem:[%s1] sm:$0xf]
  %v67 = vld [vmem:[%s1 + $0x4] sm:$0xf]
  %v68 = vunpack.c.l.bf16 %v66
  %v69 = vunpack.c.l.bf16 %v67
  %v72 = vunpack.c.l.b16 %v64
  %v73 = vunpack.c.l.b16 %v65
  %v74 = vpack.c.b16 %v73, %v72
  %v76 = vshrl.u32 %v74, 16
  %v78 = vrot.slane %v76, 7
  %v79 = vshll.u32 %v74, 16
  %v81 = vor.u32 %v78, %v79
  %vm83 = vcmask 1040384
  %vm84 = vsmask.f32 256
  %vm85 = vmand %vm83, %vm84
  %v86 = vsel %vm85, 0, %v81
  %v87 = vlaneseq
  %v88 = vshrl.u32 %v87, 7
  %v89 = vadd.s32 %v88, 8
  %vm90 = vcmp.lt.s32.totalorder %v88, 0
  %v91 = vsub.s32 0, %v88
  %v92 = vsel %vm90, %v91, %v88
  %v93 = vshrl.u32 %v92, 2
  %v94 = vand.u32 %v92, 3
  %v95 = vsub.s32 0, %v94
  %v96 = vsel %vm90, %v95, %v94
  %vm97 = vcmp.lt.s32.totalorder %v89, 0
  %v98 = vsub.s32 0, %v89
  %v99 = vsel %vm97, %v98, %v89
  %v100 = vshrl.u32 %v99, 2
  %v101 = vand.u32 %v99, 3
  %v102 = vsub.s32 0, %v101
  %v103 = vsel %vm97, %v102, %v101
  %vm104 = vcmp.ne.s32.totalorder %v96, 0
  %vm105 = vcmp.ne.s32.totalorder %v103, 0
  %vm106 = vcmp.lt.s32.totalorder %v96, 0
  %vm107 = vcmp.lt.s32.totalorder %v103, 0
  %vm108 = vmand %vm106, %vm104
  %vm109 = vmand %vm107, %vm105
  %v110 = vadd.s32 %v96, 4
  %v111 = vadd.s32 %v103, 4
  %v112 = vsel %vm108, %v110, %v96
  %v113 = vsel %vm109, %v111, %v103
  %v114 = vadd.s32 %v112, 4294967295
  %v115 = vadd.s32 %v113, 4294967295
  %vm116 = vcmp.ge.s32.totalorder %v114, 0
  %vm117 = vcmp.ge.s32.totalorder %v115, 0
  %vm118 = vcmp.lt.s32.totalorder %v114, 4
  %vm119 = vcmp.lt.s32.totalorder %v115, 4
  %vm120 = vmand %vm116, %vm118
  %vm121 = vmand %vm117, %vm119
  %vm122 = vmpackc.low %vm120, %vm120
  %vm123 = vmpackc.low %vm121, %vm121
  %v124 = vsel %vm122, 65537, 0
  %v125 = vsel %vm123, 65537, 0
  %v126 = vunpack.c.l.b16 %v124
  %v127 = vunpack.c.l.b16 %v125
  %v128 = vpack.c.b16 %v127, %v126
  %vm129 = vcmp.ne.s16.totalorder %v128, 0
  %v130 = vsel %vm129, %v86, 0
  %v131 = vld [vmem:[%s2] sm:$0x3]
  %s132 = scalar_lea.vmem %s2, 2
  %v133 = vld [vmem:[%s132] sm:$0x3]
  %vm134 = vcmask 31744
  %v135 = vsel %vm134, %v74, 0
  %vm137 = vcmask 1041408
  %v139 = vsel %vm137, %v133, 0
  %141 = vmatprep.subr.bf16.mxu0 0
  %142 = vmatpush1.bf16.msra.mxu0 %v139
  %143 = vmatprep.subr.bf16.mxu0 0
  %144 = vmatpush1.bf16.msra.mxu0 0
  %145 = vmatprep.subr.bf16.mxu0 0
  %146 = vmatpush1.bf16.msra.mxu0 0
  %147 = vmatprep.subr.bf16.mxu0 0
  %148 = vmatpush1.bf16.msra.mxu0 0
  %149 = vmatprep.subr.bf16.mxu0 0
  %150 = vmatpush1.bf16.msra.mxu0 0
  %151 = vmatprep.subr.bf16.mxu0 0
  %152 = vmatpush1.bf16.msra.mxu0 0
  %153 = vmatprep.subr.bf16.mxu0 0
  %154 = vmatpush1.bf16.msra.mxu0 0
  %155 = vmatprep.subr.bf16.mxu0 0
  %156 = vmatpush1.bf16.msra.mxu0 0
  %157 = vmatprep.subr.bf16.mxu0 0
  %158 = vmatpush1.bf16.msra.mxu0 0
  %159 = vmatprep.subr.bf16.mxu0 0
  %160 = vmatpush1.bf16.msra.mxu0 0
  %161 = vmatprep.subr.bf16.mxu0 0
  %162 = vmatpush1.bf16.msra.mxu0 0
  %163 = vmatprep.subr.bf16.mxu0 0
  %164 = vmatpush1.bf16.msra.mxu0 0
  %165 = vmatprep.subr.bf16.mxu0 0
  %166 = vmatpush1.bf16.msra.mxu0 0
  %167 = vmatprep.subr.bf16.mxu0 0
  %168 = vmatpush1.bf16.msra.mxu0 0
  %169 = vmatprep.subr.bf16.mxu0 0
  %170 = vmatpush1.bf16.msra.mxu0 0
  %171 = vmatprep.subr.bf16.mxu0 0
  %172 = vmatpush1.bf16.msra.mxu0 0
  %173 = vmatprep.mubr.bf16.mxu0 0
  %174 = vmatmul.mubr.bf16.gmra.mrb[0].mxu0 %v135
  %v175 = vpop.f32.mrb[0].mxu0
  %v176 = vadd.f32 0.0, %v175
  %v177 = vpop.f32.mrb[0].mxu0
  %v178 = vpop.f32.mrb[0].mxu0
  %v179 = vadd.f32 0.0, %v178
  %v180 = vpop.f32.mrb[0].mxu0
  %181 = vdwg.mxu0
  %v183 = vsel %vm134, %v130, 0
  %v186 = vsel %vm137, %v131, 0
  %188 = vmatprep.subr.bf16.mxu0 0
  %189 = vmatpush1.bf16.msra.mxu0 %v186
  %190 = vmatprep.subr.bf16.mxu0 0
  %191 = vmatpush1.bf16.msra.mxu0 0
  %192 = vmatprep.subr.bf16.mxu0 0
  %193 = vmatpush1.bf16.msra.mxu0 0
  %194 = vmatprep.subr.bf16.mxu0 0
  %195 = vmatpush1.bf16.msra.mxu0 0
  %196 = vmatprep.subr.bf16.mxu0 0
  %197 = vmatpush1.bf16.msra.mxu0 0
  %198 = vmatprep.subr.bf16.mxu0 0
  %199 = vmatpush1.bf16.msra.mxu0 0
  %200 = vmatprep.subr.bf16.mxu0 0
  %201 = vmatpush1.bf16.msra.mxu0 0
  %202 = vmatprep.subr.bf16.mxu0 0
  %203 = vmatpush1.bf16.msra.mxu0 0
  %204 = vmatprep.subr.bf16.mxu0 0
  %205 = vmatpush1.bf16.msra.mxu0 0
  %206 = vmatprep.subr.bf16.mxu0 0
  %207 = vmatpush1.bf16.msra.mxu0 0
  %208 = vmatprep.subr.bf16.mxu0 0
  %209 = vmatpush1.bf16.msra.mxu0 0
  %210 = vmatprep.subr.bf16.mxu0 0
  %211 = vmatpush1.bf16.msra.mxu0 0
  %212 = vmatprep.subr.bf16.mxu0 0
  %213 = vmatpush1.bf16.msra.mxu0 0
  %214 = vmatprep.subr.bf16.mxu0 0
  %215 = vmatpush1.bf16.msra.mxu0 0
  %216 = vmatprep.subr.bf16.mxu0 0
  %217 = vmatpush1.bf16.msra.mxu0 0
  %218 = vmatprep.subr.bf16.mxu0 0
  %219 = vmatpush1.bf16.msra.mxu0 0
  %220 = vmatprep.mubr.bf16.mxu0 0
  %221 = vmatmul.mubr.bf16.gmra.mrb[0].mxu0 %v183
  %v222 = vpop.f32.mrb[0].mxu0
  %v223 = vadd.f32 %v176, %v222
  %v224 = vpop.f32.mrb[0].mxu0
  %v225 = vpop.f32.mrb[0].mxu0
  %v226 = vadd.f32 %v179, %v225
  %v227 = vpop.f32.mrb[0].mxu0
  %228 = vdwg.mxu0
  %v229 = vrot.slane %v79, 1
  %v230 = vor.u32 %v76, %v229
  %vm232 = vcmask 1047552
  %vm233 = vsmask.f32 7424
  %vm234 = vmand %vm232, %vm233
  %v235 = vsel %vm234, %v230, 0
  %v236 = vadd.s32 %v112, 1
  %v237 = vadd.s32 %v113, 1
  %vm238 = vcmp.ge.s32.totalorder %v236, 0
  %vm239 = vcmp.ge.s32.totalorder %v237, 0
  %vm240 = vcmp.lt.s32.totalorder %v236, 4
  %vm241 = vcmp.lt.s32.totalorder %v237, 4
  %vm242 = vmand %vm238, %vm240
  %vm243 = vmand %vm239, %vm241
  %vm244 = vmpackc.low %vm242, %vm242
  %vm245 = vmpackc.low %vm243, %vm243
  %v246 = vsel %vm244, 65537, 0
  %v247 = vsel %vm245, 65537, 0
  %v248 = vunpack.c.l.b16 %v246
  %v249 = vunpack.c.l.b16 %v247
  %v250 = vpack.c.b16 %v249, %v248
  %vm251 = vcmp.ne.s16.totalorder %v250, 0
  %v252 = vsel %vm251, %v235, 0
  %s253 = scalar_lea.vmem %s2, 4
  %v254 = vld [vmem:[%s253] sm:$0x3]
  %v256 = vsel %vm134, %v252, 0
  %v259 = vsel %vm137, %v254, 0
  %261 = vmatprep.subr.bf16.mxu0 0
  %262 = vmatpush1.bf16.msra.mxu0 %v259
  %263 = vmatprep.subr.bf16.mxu0 0
  %264 = vmatpush1.bf16.msra.mxu0 0
  %265 = vmatprep.subr.bf16.mxu0 0
  %266 = vmatpush1.bf16.msra.mxu0 0
  %267 = vmatprep.subr.bf16.mxu0 0
  %268 = vmatpush1.bf16.msra.mxu0 0
  %269 = vmatprep.subr.bf16.mxu0 0
  %270 = vmatpush1.bf16.msra.mxu0 0
  %271 = vmatprep.subr.bf16.mxu0 0
  %272 = vmatpush1.bf16.msra.mxu0 0
  %273 = vmatprep.subr.bf16.mxu0 0
  %274 = vmatpush1.bf16.msra.mxu0 0
  %275 = vmatprep.subr.bf16.mxu0 0
  %276 = vmatpush1.bf16.msra.mxu0 0
  %277 = vmatprep.subr.bf16.mxu0 0
  %278 = vmatpush1.bf16.msra.mxu0 0
  %279 = vmatprep.subr.bf16.mxu0 0
  %280 = vmatpush1.bf16.msra.mxu0 0
  %281 = vmatprep.subr.bf16.mxu0 0
  %282 = vmatpush1.bf16.msra.mxu0 0
  %283 = vmatprep.subr.bf16.mxu0 0
  %284 = vmatpush1.bf16.msra.mxu0 0
  %285 = vmatprep.subr.bf16.mxu0 0
  %286 = vmatpush1.bf16.msra.mxu0 0
  %287 = vmatprep.subr.bf16.mxu0 0
  %288 = vmatpush1.bf16.msra.mxu0 0
  %289 = vmatprep.subr.bf16.mxu0 0
  %290 = vmatpush1.bf16.msra.mxu0 0
  %291 = vmatprep.subr.bf16.mxu0 0
  %292 = vmatpush1.bf16.msra.mxu0 0
  %293 = vmatprep.mubr.bf16.mxu0 0
  %294 = vmatmul.mubr.bf16.gmra.mrb[0].mxu0 %v256
  %v295 = vpop.f32.mrb[0].mxu0
  %v296 = vadd.f32 0.0, %v295
  %v297 = vpop.f32.mrb[0].mxu0
  %v298 = vpop.f32.mrb[0].mxu0
  %v299 = vadd.f32 0.0, %v298
  %v300 = vpop.f32.mrb[0].mxu0
  %301 = vdwg.mxu0
  %v302 = vadd.f32 %v223, %v296
  %v303 = vadd.f32 %v226, %v299
  %v304 = vld [vmem:[%s3] sm:$0x1]
  %v306 = vlaneseq
  %v307 = vshrl.u32 %v306, 7
  %v308 = vsub.s32 0, %v307
  %v309 = vrot.slane %v304, %v308
  %v311 = vadd.f32 %v302, %v309
  %v312 = vadd.f32 %v303, %v309
  %vm313 = vcmp.gt.f32.partialorder %v311, 0.0
  %vm314 = vcmp.gt.f32.partialorder %v312, 0.0
  %v315 = vmul.f32 %v311, 0.01
  %v316 = vmul.f32 %v312, 0.01
  %v317 = vsel %vm313, %v311, %v315
  %v318 = vsel %vm314, %v312, %v316
  %v319 = vpack.c.bf16 %v318, %v317
  %v321 = vshrl.u32 %v319, 16
  %v323 = vrot.slane %v321, 7
  %v324 = vshll.u32 %v319, 16
  %v326 = vor.u32 %v323, %v324
  %v328 = vsel %vm85, 0, %v326
  %v329 = vsel %vm129, %v328, 0
  %v330 = vld [vmem:[%s4] sm:$0xf]
  %s331 = scalar_lea.vmem %s4, 4
  %v332 = vld [vmem:[%s331] sm:$0xf]
  %vm333 = vcmask 64512
  %v334 = vsel %vm333, %v319, 0
  %vm336 = vcmask 1043456
  %v338 = vsel %vm336, %v332, 0
  %340 = vmatprep.subr.bf16.mxu0 0
  %341 = vmatpush1.bf16.msra.mxu0 %v338
  %342 = vmatprep.subr.bf16.mxu0 0
  %343 = vmatpush1.bf16.msra.mxu0 0
  %344 = vmatprep.subr.bf16.mxu0 0
  %345 = vmatpush1.bf16.msra.mxu0 0
  %346 = vmatprep.subr.bf16.mxu0 0
  %347 = vmatpush1.bf16.msra.mxu0 0
  %348 = vmatprep.subr.bf16.mxu0 0
  %349 = vmatpush1.bf16.msra.mxu0 0
  %350 = vmatprep.subr.bf16.mxu0 0
  %351 = vmatpush1.bf16.msra.mxu0 0
  %352 = vmatprep.subr.bf16.mxu0 0
  %353 = vmatpush1.bf16.msra.mxu0 0
  %354 = vmatprep.subr.bf16.mxu0 0
  %355 = vmatpush1.bf16.msra.mxu0 0
  %356 = vmatprep.subr.bf16.mxu0 0
  %357 = vmatpush1.bf16.msra.mxu0 0
  %358 = vmatprep.subr.bf16.mxu0 0
  %359 = vmatpush1.bf16.msra.mxu0 0
  %360 = vmatprep.subr.bf16.mxu0 0
  %361 = vmatpush1.bf16.msra.mxu0 0
  %362 = vmatprep.subr.bf16.mxu0 0
  %363 = vmatpush1.bf16.msra.mxu0 0
  %364 = vmatprep.subr.bf16.mxu0 0
  %365 = vmatpush1.bf16.msra.mxu0 0
  %366 = vmatprep.subr.bf16.mxu0 0
  %367 = vmatpush1.bf16.msra.mxu0 0
  %368 = vmatprep.subr.bf16.mxu0 0
  %369 = vmatpush1.bf16.msra.mxu0 0
  %370 = vmatprep.subr.bf16.mxu0 0
  %371 = vmatpush1.bf16.msra.mxu0 0
  %372 = vmatprep.mubr.bf16.mxu0 0
  %373 = vmatmul.mubr.bf16.gmra.mrb[0].mxu0 %v334
  %v374 = vpop.f32.mrb[0].mxu0
  %v375 = vadd.f32 0.0, %v374
  %v376 = vpop.f32.mrb[0].mxu0
  %v377 = vpop.f32.mrb[0].mxu0
  %v378 = vadd.f32 0.0, %v377
  %v379 = vpop.f32.mrb[0].mxu0
  %380 = vdwg.mxu0
  %v382 = vsel %vm333, %v329, 0
  %v385 = vsel %vm336, %v330, 0
  %387 = vmatprep.subr.bf16.mxu0 0
  %388 = vmatpush1.bf16.msra.mxu0 %v385
  %389 = vmatprep.subr.bf16.mxu0 0
  %390 = vmatpush1.bf16.msra.mxu0 0
  %391 = vmatprep.subr.bf16.mxu0 0
  %392 = vmatpush1.bf16.msra.mxu0 0
  %393 = vmatprep.subr.bf16.mxu0 0
  %394 = vmatpush1.bf16.msra.mxu0 0
  %395 = vmatprep.subr.bf16.mxu0 0
  %396 = vmatpush1.bf16.msra.mxu0 0
  %397 = vmatprep.subr.bf16.mxu0 0
  %398 = vmatpush1.bf16.msra.mxu0 0
  %399 = vmatprep.subr.bf16.mxu0 0
  %400 = vmatpush1.bf16.msra.mxu0 0
  %401 = vmatprep.subr.bf16.mxu0 0
  %402 = vmatpush1.bf16.msra.mxu0 0
  %403 = vmatprep.subr.bf16.mxu0 0
  %404 = vmatpush1.bf16.msra.mxu0 0
  %405 = vmatprep.subr.bf16.mxu0 0
  %406 = vmatpush1.bf16.msra.mxu0 0
  %407 = vmatprep.subr.bf16.mxu0 0
  %408 = vmatpush1.bf16.msra.mxu0 0
  %409 = vmatprep.subr.bf16.mxu0 0
  %410 = vmatpush1.bf16.msra.mxu0 0
  %411 = vmatprep.subr.bf16.mxu0 0
  %412 = vmatpush1.bf16.msra.mxu0 0
  %413 = vmatprep.subr.bf16.mxu0 0
  %414 = vmatpush1.bf16.msra.mxu0 0
  %415 = vmatprep.subr.bf16.mxu0 0
  %416 = vmatpush1.bf16.msra.mxu0 0
  %417 = vmatprep.subr.bf16.mxu0 0
  %418 = vmatpush1.bf16.msra.mxu0 0
  %419 = vmatprep.mubr.bf16.mxu0 0
  %420 = vmatmul.mubr.bf16.gmra.mrb[0].mxu0 %v382
  %v421 = vpop.f32.mrb[0].mxu0
  %v422 = vadd.f32 %v375, %v421
  %v423 = vpop.f32.mrb[0].mxu0
  %v424 = vpop.f32.mrb[0].mxu0
  %v425 = vadd.f32 %v378, %v424
  %v426 = vpop.f32.mrb[0].mxu0
  %427 = vdwg.mxu0
  %v428 = vrot.slane %v324, 1
  %v429 = vor.u32 %v321, %v428
  %v431 = vsel %vm234, %v429, 0
  %v432 = vsel %vm251, %v431, 0
  %s433 = scalar_lea.vmem %s4, 8
  %v434 = vld [vmem:[%s433] sm:$0xf]
  %v436 = vsel %vm333, %v432, 0
  %v439 = vsel %vm336, %v434, 0
  %441 = vmatprep.subr.bf16.mxu0 0
  %442 = vmatpush1.bf16.msra.mxu0 %v439
  %443 = vmatprep.subr.bf16.mxu0 0
  %444 = vmatpush1.bf16.msra.mxu0 0
  %445 = vmatprep.subr.bf16.mxu0 0
  %446 = vmatpush1.bf16.msra.mxu0 0
  %447 = vmatprep.subr.bf16.mxu0 0
  %448 = vmatpush1.bf16.msra.mxu0 0
  %449 = vmatprep.subr.bf16.mxu0 0
  %450 = vmatpush1.bf16.msra.mxu0 0
  %451 = vmatprep.subr.bf16.mxu0 0
  %452 = vmatpush1.bf16.msra.mxu0 0
  %453 = vmatprep.subr.bf16.mxu0 0
  %454 = vmatpush1.bf16.msra.mxu0 0
  %455 = vmatprep.subr.bf16.mxu0 0
  %456 = vmatpush1.bf16.msra.mxu0 0
  %457 = vmatprep.subr.bf16.mxu0 0
  %458 = vmatpush1.bf16.msra.mxu0 0
  %459 = vmatprep.subr.bf16.mxu0 0
  %460 = vmatpush1.bf16.msra.mxu0 0
  %461 = vmatprep.subr.bf16.mxu0 0
  %462 = vmatpush1.bf16.msra.mxu0 0
  %463 = vmatprep.subr.bf16.mxu0 0
  %464 = vmatpush1.bf16.msra.mxu0 0
  %465 = vmatprep.subr.bf16.mxu0 0
  %466 = vmatpush1.bf16.msra.mxu0 0
  %467 = vmatprep.subr.bf16.mxu0 0
  %468 = vmatpush1.bf16.msra.mxu0 0
  %469 = vmatprep.subr.bf16.mxu0 0
  %470 = vmatpush1.bf16.msra.mxu0 0
  %471 = vmatprep.subr.bf16.mxu0 0
  %472 = vmatpush1.bf16.msra.mxu0 0
  %473 = vmatprep.mubr.bf16.mxu0 0
  %474 = vmatmul.mubr.bf16.gmra.mrb[0].mxu0 %v436
  %v475 = vpop.f32.mrb[0].mxu0
  %v476 = vadd.f32 0.0, %v475
  %v477 = vpop.f32.mrb[0].mxu0
  %v478 = vpop.f32.mrb[0].mxu0
  %v479 = vadd.f32 0.0, %v478
  %v480 = vpop.f32.mrb[0].mxu0
  %481 = vdwg.mxu0
  %v482 = vadd.f32 %v422, %v476
  %v483 = vadd.f32 %v425, %v479
  %v484 = vld [vmem:[%s5] sm:$0x1]
  %v486 = vlaneseq
  %v487 = vshrl.u32 %v486, 7
  %v488 = vsub.s32 0, %v487
  %v489 = vrot.slane %v484, %v488
  %v491 = vadd.f32 %v482, %v489
  %v492 = vadd.f32 %v483, %v489
  %v493 = vtanh.pop %v491
  %v494 = vtanh.pop %v492
  %v495 = vmul.f32 %v493, 1.442695
  %v496 = vpow.pop %v495
  %v497 = vmul.f32 %v494, 1.442695
  %v498 = vpow.pop %v497
  %v499 = vmul.f32 %v68, %v496
  %v500 = vmul.f32 %v69, %v498
  %v501 = vunpack.c.l.bf16 %v64
  %v502 = vunpack.c.l.bf16 %v65
  %v505 = vunpack.c.l.b16 %v66
  %v506 = vunpack.c.l.b16 %v67
  %v507 = vpack.c.b16 %v506, %v505
  %v509 = vshrl.u32 %v507, 16
  %v511 = vrot.slane %v509, 7
  %v512 = vshll.u32 %v507, 16
  %v514 = vor.u32 %v511, %v512
  %v516 = vsel %vm85, 0, %v514
  %v517 = vsel %vm129, %v516, 0
  %v518 = vld [vmem:[%s6] sm:$0x3]
  %s519 = scalar_lea.vmem %s6, 2
  %v520 = vld [vmem:[%s519] sm:$0x3]
  %v521 = vsel %vm134, %v507, 0
  %v524 = vsel %vm137, %v520, 0
  %526 = vmatprep.subr.bf16.mxu0 0
  %527 = vmatpush1.bf16.msra.mxu0 %v524
  %528 = vmatprep.subr.bf16.mxu0 0
  %529 = vmatpush1.bf16.msra.mxu0 0
  %530 = vmatprep.subr.bf16.mxu0 0
  %531 = vmatpush1.bf16.msra.mxu0 0
  %532 = vmatprep.subr.bf16.mxu0 0
  %533 = vmatpush1.bf16.msra.mxu0 0
  %534 = vmatprep.subr.bf16.mxu0 0
  %535 = vmatpush1.bf16.msra.mxu0 0
  %536 = vmatprep.subr.bf16.mxu0 0
  %537 = vmatpush1.bf16.msra.mxu0 0
  %538 = vmatprep.subr.bf16.mxu0 0
  %539 = vmatpush1.bf16.msra.mxu0 0
  %540 = vmatprep.subr.bf16.mxu0 0
  %541 = vmatpush1.bf16.msra.mxu0 0
  %542 = vmatprep.subr.bf16.mxu0 0
  %543 = vmatpush1.bf16.msra.mxu0 0
  %544 = vmatprep.subr.bf16.mxu0 0
  %545 = vmatpush1.bf16.msra.mxu0 0
  %546 = vmatprep.subr.bf16.mxu0 0
  %547 = vmatpush1.bf16.msra.mxu0 0
  %548 = vmatprep.subr.bf16.mxu0 0
  %549 = vmatpush1.bf16.msra.mxu0 0
  %550 = vmatprep.subr.bf16.mxu0 0
  %551 = vmatpush1.bf16.msra.mxu0 0
  %552 = vmatprep.subr.bf16.mxu0 0
  %553 = vmatpush1.bf16.msra.mxu0 0
  %554 = vmatprep.subr.bf16.mxu0 0
  %555 = vmatpush1.bf16.msra.mxu0 0
  %556 = vmatprep.subr.bf16.mxu0 0
  %557 = vmatpush1.bf16.msra.mxu0 0
  %558 = vmatprep.mubr.bf16.mxu0 0
  %559 = vmatmul.mubr.bf16.gmra.mrb[0].mxu0 %v521
  %v560 = vpop.f32.mrb[0].mxu0
  %v561 = vadd.f32 0.0, %v560
  %v562 = vpop.f32.mrb[0].mxu0
  %v563 = vpop.f32.mrb[0].mxu0
  %v564 = vadd.f32 0.0, %v563
  %v565 = vpop.f32.mrb[0].mxu0
  %566 = vdwg.mxu0
  %v568 = vsel %vm134, %v517, 0
  %v571 = vsel %vm137, %v518, 0
  %573 = vmatprep.subr.bf16.mxu0 0
  %574 = vmatpush1.bf16.msra.mxu0 %v571
  %575 = vmatprep.subr.bf16.mxu0 0
  %576 = vmatpush1.bf16.msra.mxu0 0
  %577 = vmatprep.subr.bf16.mxu0 0
  %578 = vmatpush1.bf16.msra.mxu0 0
  %579 = vmatprep.subr.bf16.mxu0 0
  %580 = vmatpush1.bf16.msra.mxu0 0
  %581 = vmatprep.subr.bf16.mxu0 0
  %582 = vmatpush1.bf16.msra.mxu0 0
  %583 = vmatprep.subr.bf16.mxu0 0
  %584 = vmatpush1.bf16.msra.mxu0 0
  %585 = vmatprep.subr.bf16.mxu0 0
  %586 = vmatpush1.bf16.msra.mxu0 0
  %587 = vmatprep.subr.bf16.mxu0 0
  %588 = vmatpush1.bf16.msra.mxu0 0
  %589 = vmatprep.subr.bf16.mxu0 0
  %590 = vmatpush1.bf16.msra.mxu0 0
  %591 = vmatprep.subr.bf16.mxu0 0
  %592 = vmatpush1.bf16.msra.mxu0 0
  %593 = vmatprep.subr.bf16.mxu0 0
  %594 = vmatpush1.bf16.msra.mxu0 0
  %595 = vmatprep.subr.bf16.mxu0 0
  %596 = vmatpush1.bf16.msra.mxu0 0
  %597 = vmatprep.subr.bf16.mxu0 0
  %598 = vmatpush1.bf16.msra.mxu0 0
  %599 = vmatprep.subr.bf16.mxu0 0
  %600 = vmatpush1.bf16.msra.mxu0 0
  %601 = vmatprep.subr.bf16.mxu0 0
  %602 = vmatpush1.bf16.msra.mxu0 0
  %603 = vmatprep.subr.bf16.mxu0 0
  %604 = vmatpush1.bf16.msra.mxu0 0
  %605 = vmatprep.mubr.bf16.mxu0 0
  %606 = vmatmul.mubr.bf16.gmra.mrb[0].mxu0 %v568
  %v607 = vpop.f32.mrb[0].mxu0
  %v608 = vadd.f32 %v561, %v607
  %v609 = vpop.f32.mrb[0].mxu0
  %v610 = vpop.f32.mrb[0].mxu0
  %v611 = vadd.f32 %v564, %v610
  %v612 = vpop.f32.mrb[0].mxu0
  %613 = vdwg.mxu0
  %v614 = vrot.slane %v512, 1
  %v615 = vor.u32 %v509, %v614
  %v617 = vsel %vm234, %v615, 0
  %v618 = vsel %vm251, %v617, 0
  %s619 = scalar_lea.vmem %s6, 4
  %v620 = vld [vmem:[%s619] sm:$0x3]
  %v622 = vsel %vm134, %v618, 0
  %v625 = vsel %vm137, %v620, 0
  %627 = vmatprep.subr.bf16.mxu0 0
  %628 = vmatpush1.bf16.msra.mxu0 %v625
  %629 = vmatprep.subr.bf16.mxu0 0
  %630 = vmatpush1.bf16.msra.mxu0 0
  %631 = vmatprep.subr.bf16.mxu0 0
  %632 = vmatpush1.bf16.msra.mxu0 0
  %633 = vmatprep.subr.bf16.mxu0 0
  %634 = vmatpush1.bf16.msra.mxu0 0
  %635 = vmatprep.subr.bf16.mxu0 0
  %636 = vmatpush1.bf16.msra.mxu0 0
  %637 = vmatprep.subr.bf16.mxu0 0
  %638 = vmatpush1.bf16.msra.mxu0 0
  %639 = vmatprep.subr.bf16.mxu0 0
  %640 = vmatpush1.bf16.msra.mxu0 0
  %641 = vmatprep.subr.bf16.mxu0 0
  %642 = vmatpush1.bf16.msra.mxu0 0
  %643 = vmatprep.subr.bf16.mxu0 0
  %644 = vmatpush1.bf16.msra.mxu0 0
  %645 = vmatprep.subr.bf16.mxu0 0
  %646 = vmatpush1.bf16.msra.mxu0 0
  %647 = vmatprep.subr.bf16.mxu0 0
  %648 = vmatpush1.bf16.msra.mxu0 0
  %649 = vmatprep.subr.bf16.mxu0 0
  %650 = vmatpush1.bf16.msra.mxu0 0
  %651 = vmatprep.subr.bf16.mxu0 0
  %652 = vmatpush1.bf16.msra.mxu0 0
  %653 = vmatprep.subr.bf16.mxu0 0
  %654 = vmatpush1.bf16.msra.mxu0 0
  %655 = vmatprep.subr.bf16.mxu0 0
  %656 = vmatpush1.bf16.msra.mxu0 0
  %657 = vmatprep.subr.bf16.mxu0 0
  %658 = vmatpush1.bf16.msra.mxu0 0
  %659 = vmatprep.mubr.bf16.mxu0 0
  %660 = vmatmul.mubr.bf16.gmra.mrb[0].mxu0 %v622
  %v661 = vpop.f32.mrb[0].mxu0
  %v662 = vadd.f32 0.0, %v661
  %v663 = vpop.f32.mrb[0].mxu0
  %v664 = vpop.f32.mrb[0].mxu0
  %v665 = vadd.f32 0.0, %v664
  %v666 = vpop.f32.mrb[0].mxu0
  %667 = vdwg.mxu0
  %v668 = vadd.f32 %v608, %v662
  %v669 = vadd.f32 %v611, %v665
  %v670 = vld [vmem:[%s7] sm:$0x1]
  %v672 = vlaneseq
  %v673 = vshrl.u32 %v672, 7
  %v674 = vsub.s32 0, %v673
  %v675 = vrot.slane %v670, %v674
  %v677 = vadd.f32 %v668, %v675
  %v678 = vadd.f32 %v669, %v675
  %vm679 = vcmp.gt.f32.partialorder %v677, 0.0
  %vm680 = vcmp.gt.f32.partialorder %v678, 0.0
  %v681 = vmul.f32 %v677, 0.01
  %v682 = vmul.f32 %v678, 0.01
  %v683 = vsel %vm679, %v677, %v681
  %v684 = vsel %vm680, %v678, %v682
  %v685 = vpack.c.bf16 %v684, %v683
  %v687 = vshrl.u32 %v685, 16
  %v689 = vrot.slane %v687, 7
  %v690 = vshll.u32 %v685, 16
  %v692 = vor.u32 %v689, %v690
  %v694 = vsel %vm85, 0, %v692
  %v695 = vsel %vm129, %v694, 0
  %v696 = vld [vmem:[%s8] sm:$0xf]
  %s697 = scalar_lea.vmem %s8, 4
  %v698 = vld [vmem:[%s697] sm:$0xf]
  %v699 = vsel %vm333, %v685, 0
  %v702 = vsel %vm336, %v698, 0
  %704 = vmatprep.subr.bf16.mxu0 0
  %705 = vmatpush1.bf16.msra.mxu0 %v702
  %706 = vmatprep.subr.bf16.mxu0 0
  %707 = vmatpush1.bf16.msra.mxu0 0
  %708 = vmatprep.subr.bf16.mxu0 0
  %709 = vmatpush1.bf16.msra.mxu0 0
  %710 = vmatprep.subr.bf16.mxu0 0
  %711 = vmatpush1.bf16.msra.mxu0 0
  %712 = vmatprep.subr.bf16.mxu0 0
  %713 = vmatpush1.bf16.msra.mxu0 0
  %714 = vmatprep.subr.bf16.mxu0 0
  %715 = vmatpush1.bf16.msra.mxu0 0
  %716 = vmatprep.subr.bf16.mxu0 0
  %717 = vmatpush1.bf16.msra.mxu0 0
  %718 = vmatprep.subr.bf16.mxu0 0
  %719 = vmatpush1.bf16.msra.mxu0 0
  %720 = vmatprep.subr.bf16.mxu0 0
  %721 = vmatpush1.bf16.msra.mxu0 0
  %722 = vmatprep.subr.bf16.mxu0 0
  %723 = vmatpush1.bf16.msra.mxu0 0
  %724 = vmatprep.subr.bf16.mxu0 0
  %725 = vmatpush1.bf16.msra.mxu0 0
  %726 = vmatprep.subr.bf16.mxu0 0
  %727 = vmatpush1.bf16.msra.mxu0 0
  %728 = vmatprep.subr.bf16.mxu0 0
  %729 = vmatpush1.bf16.msra.mxu0 0
  %730 = vmatprep.subr.bf16.mxu0 0
  %731 = vmatpush1.bf16.msra.mxu0 0
  %732 = vmatprep.subr.bf16.mxu0 0
  %733 = vmatpush1.bf16.msra.mxu0 0
  %734 = vmatprep.subr.bf16.mxu0 0
  %735 = vmatpush1.bf16.msra.mxu0 0
  %736 = vmatprep.mubr.bf16.mxu0 0
  %737 = vmatmul.mubr.bf16.gmra.mrb[0].mxu0 %v699
  %v738 = vpop.f32.mrb[0].mxu0
  %v739 = vadd.f32 0.0, %v738
  %v740 = vpop.f32.mrb[0].mxu0
  %v741 = vpop.f32.mrb[0].mxu0
  %v742 = vadd.f32 0.0, %v741
  %v743 = vpop.f32.mrb[0].mxu0
  %744 = vdwg.mxu0
  %v746 = vsel %vm333, %v695, 0
  %v749 = vsel %vm336, %v696, 0
  %751 = vmatprep.subr.bf16.mxu0 0
  %752 = vmatpush1.bf16.msra.mxu0 %v749
  %753 = vmatprep.subr.bf16.mxu0 0
  %754 = vmatpush1.bf16.msra.mxu0 0
  %755 = vmatprep.subr.bf16.mxu0 0
  %756 = vmatpush1.bf16.msra.mxu0 0
  %757 = vmatprep.subr.bf16.mxu0 0
  %758 = vmatpush1.bf16.msra.mxu0 0
  %759 = vmatprep.subr.bf16.mxu0 0
  %760 = vmatpush1.bf16.msra.mxu0 0
  %761 = vmatprep.subr.bf16.mxu0 0
  %762 = vmatpush1.bf16.msra.mxu0 0
  %763 = vmatprep.subr.bf16.mxu0 0
  %764 = vmatpush1.bf16.msra.mxu0 0
  %765 = vmatprep.subr.bf16.mxu0 0
  %766 = vmatpush1.bf16.msra.mxu0 0
  %767 = vmatprep.subr.bf16.mxu0 0
  %768 = vmatpush1.bf16.msra.mxu0 0
  %769 = vmatprep.subr.bf16.mxu0 0
  %770 = vmatpush1.bf16.msra.mxu0 0
  %771 = vmatprep.subr.bf16.mxu0 0
  %772 = vmatpush1.bf16.msra.mxu0 0
  %773 = vmatprep.subr.bf16.mxu0 0
  %774 = vmatpush1.bf16.msra.mxu0 0
  %775 = vmatprep.subr.bf16.mxu0 0
  %776 = vmatpush1.bf16.msra.mxu0 0
  %777 = vmatprep.subr.bf16.mxu0 0
  %778 = vmatpush1.bf16.msra.mxu0 0
  %779 = vmatprep.subr.bf16.mxu0 0
  %780 = vmatpush1.bf16.msra.mxu0 0
  %781 = vmatprep.subr.bf16.mxu0 0
  %782 = vmatpush1.bf16.msra.mxu0 0
  %783 = vmatprep.mubr.bf16.mxu0 0
  %784 = vmatmul.mubr.bf16.gmra.mrb[0].mxu0 %v746
  %v785 = vpop.f32.mrb[0].mxu0
  %v786 = vadd.f32 %v739, %v785
  %v787 = vpop.f32.mrb[0].mxu0
  %v788 = vpop.f32.mrb[0].mxu0
  %v789 = vadd.f32 %v742, %v788
  %v790 = vpop.f32.mrb[0].mxu0
  %791 = vdwg.mxu0
  %v792 = vrot.slane %v690, 1
  %v793 = vor.u32 %v687, %v792
  %v795 = vsel %vm234, %v793, 0
  %v796 = vsel %vm251, %v795, 0
  %s797 = scalar_lea.vmem %s8, 8
  %v798 = vld [vmem:[%s797] sm:$0xf]
  %v800 = vsel %vm333, %v796, 0
  %v803 = vsel %vm336, %v798, 0
  %805 = vmatprep.subr.bf16.mxu0 0
  %806 = vmatpush1.bf16.msra.mxu0 %v803
  %807 = vmatprep.subr.bf16.mxu0 0
  %808 = vmatpush1.bf16.msra.mxu0 0
  %809 = vmatprep.subr.bf16.mxu0 0
  %810 = vmatpush1.bf16.msra.mxu0 0
  %811 = vmatprep.subr.bf16.mxu0 0
  %812 = vmatpush1.bf16.msra.mxu0 0
  %813 = vmatprep.subr.bf16.mxu0 0
  %814 = vmatpush1.bf16.msra.mxu0 0
  %815 = vmatprep.subr.bf16.mxu0 0
  %816 = vmatpush1.bf16.msra.mxu0 0
  %817 = vmatprep.subr.bf16.mxu0 0
  %818 = vmatpush1.bf16.msra.mxu0 0
  %819 = vmatprep.subr.bf16.mxu0 0
  %820 = vmatpush1.bf16.msra.mxu0 0
  %821 = vmatprep.subr.bf16.mxu0 0
  %822 = vmatpush1.bf16.msra.mxu0 0
  %823 = vmatprep.subr.bf16.mxu0 0
  %824 = vmatpush1.bf16.msra.mxu0 0
  %825 = vmatprep.subr.bf16.mxu0 0
  %826 = vmatpush1.bf16.msra.mxu0 0
  %827 = vmatprep.subr.bf16.mxu0 0
  %828 = vmatpush1.bf16.msra.mxu0 0
  %829 = vmatprep.subr.bf16.mxu0 0
  %830 = vmatpush1.bf16.msra.mxu0 0
  %831 = vmatprep.subr.bf16.mxu0 0
  %832 = vmatpush1.bf16.msra.mxu0 0
  %833 = vmatprep.subr.bf16.mxu0 0
  %834 = vmatpush1.bf16.msra.mxu0 0
  %835 = vmatprep.subr.bf16.mxu0 0
  %836 = vmatpush1.bf16.msra.mxu0 0
  %837 = vmatprep.mubr.bf16.mxu0 0
  %838 = vmatmul.mubr.bf16.gmra.mrb[0].mxu0 %v800
  %v839 = vpop.f32.mrb[0].mxu0
  %v840 = vadd.f32 0.0, %v839
  %v841 = vpop.f32.mrb[0].mxu0
  %v842 = vpop.f32.mrb[0].mxu0
  %v843 = vadd.f32 0.0, %v842
  %v844 = vpop.f32.mrb[0].mxu0
  %845 = vdwg.mxu0
  %v846 = vadd.f32 %v786, %v840
  %v847 = vadd.f32 %v789, %v843
  %v848 = vld [vmem:[%s9] sm:$0x1]
  %v850 = vlaneseq
  %v851 = vshrl.u32 %v850, 7
  %v852 = vsub.s32 0, %v851
  %v853 = vrot.slane %v848, %v852
  %v855 = vadd.f32 %v846, %v853
  %v856 = vadd.f32 %v847, %v853
  %v857 = vtanh.pop %v855
  %v858 = vtanh.pop %v856
  %v859 = vmul.f32 %v857, 1.442695
  %v860 = vpow.pop %v859
  %v861 = vmul.f32 %v858, 1.442695
  %v862 = vpow.pop %v861
  %v863 = vmul.f32 %v501, %v860
  %v864 = vmul.f32 %v502, %v862
  %v865 = vpack.c.bf16 %v500, %v499
  %v867 = vshrl.u32 %v865, 16
  %v869 = vrot.slane %v867, 7
  %v870 = vshll.u32 %v865, 16
  %v872 = vor.u32 %v869, %v870
  %v874 = vsel %vm85, 0, %v872
  %v875 = vsel %vm129, %v874, 0
  %v876 = vld [vmem:[%s14] sm:$0x3]
  %s877 = scalar_lea.vmem %s14, 2
  %v878 = vld [vmem:[%s877] sm:$0x3]
  %v879 = vsel %vm134, %v865, 0
  %v882 = vsel %vm137, %v878, 0
  %884 = vmatprep.subr.bf16.mxu0 0
  %885 = vmatpush1.bf16.msra.mxu0 %v882
  %886 = vmatprep.subr.bf16.mxu0 0
  %887 = vmatpush1.bf16.msra.mxu0 0
  %888 = vmatprep.subr.bf16.mxu0 0
  %889 = vmatpush1.bf16.msra.mxu0 0
  %890 = vmatprep.subr.bf16.mxu0 0
  %891 = vmatpush1.bf16.msra.mxu0 0
  %892 = vmatprep.subr.bf16.mxu0 0
  %893 = vmatpush1.bf16.msra.mxu0 0
  %894 = vmatprep.subr.bf16.mxu0 0
  %895 = vmatpush1.bf16.msra.mxu0 0
  %896 = vmatprep.subr.bf16.mxu0 0
  %897 = vmatpush1.bf16.msra.mxu0 0
  %898 = vmatprep.subr.bf16.mxu0 0
  %899 = vmatpush1.bf16.msra.mxu0 0
  %900 = vmatprep.subr.bf16.mxu0 0
  %901 = vmatpush1.bf16.msra.mxu0 0
  %902 = vmatprep.subr.bf16.mxu0 0
  %903 = vmatpush1.bf16.msra.mxu0 0
  %904 = vmatprep.subr.bf16.mxu0 0
  %905 = vmatpush1.bf16.msra.mxu0 0
  %906 = vmatprep.subr.bf16.mxu0 0
  %907 = vmatpush1.bf16.msra.mxu0 0
  %908 = vmatprep.subr.bf16.mxu0 0
  %909 = vmatpush1.bf16.msra.mxu0 0
  %910 = vmatprep.subr.bf16.mxu0 0
  %911 = vmatpush1.bf16.msra.mxu0 0
  %912 = vmatprep.subr.bf16.mxu0 0
  %913 = vmatpush1.bf16.msra.mxu0 0
  %914 = vmatprep.subr.bf16.mxu0 0
  %915 = vmatpush1.bf16.msra.mxu0 0
  %916 = vmatprep.mubr.bf16.mxu0 0
  %917 = vmatmul.mubr.bf16.gmra.mrb[0].mxu0 %v879
  %v918 = vpop.f32.mrb[0].mxu0
  %v919 = vadd.f32 0.0, %v918
  %v920 = vpop.f32.mrb[0].mxu0
  %v921 = vpop.f32.mrb[0].mxu0
  %v922 = vadd.f32 0.0, %v921
  %v923 = vpop.f32.mrb[0].mxu0
  %924 = vdwg.mxu0
  %v926 = vsel %vm134, %v875, 0
  %v929 = vsel %vm137, %v876, 0
  %931 = vmatprep.subr.bf16.mxu0 0
  %932 = vmatpush1.bf16.msra.mxu0 %v929
  %933 = vmatprep.subr.bf16.mxu0 0
  %934 = vmatpush1.bf16.msra.mxu0 0
  %935 = vmatprep.subr.bf16.mxu0 0
  %936 = vmatpush1.bf16.msra.mxu0 0
  %937 = vmatprep.subr.bf16.mxu0 0
  %938 = vmatpush1.bf16.msra.mxu0 0
  %939 = vmatprep.subr.bf16.mxu0 0
  %940 = vmatpush1.bf16.msra.mxu0 0
  %941 = vmatprep.subr.bf16.mxu0 0
  %942 = vmatpush1.bf16.msra.mxu0 0
  %943 = vmatprep.subr.bf16.mxu0 0
  %944 = vmatpush1.bf16.msra.mxu0 0
  %945 = vmatprep.subr.bf16.mxu0 0
  %946 = vmatpush1.bf16.msra.mxu0 0
  %947 = vmatprep.subr.bf16.mxu0 0
  %948 = vmatpush1.bf16.msra.mxu0 0
  %949 = vmatprep.subr.bf16.mxu0 0
  %950 = vmatpush1.bf16.msra.mxu0 0
  %951 = vmatprep.subr.bf16.mxu0 0
  %952 = vmatpush1.bf16.msra.mxu0 0
  %953 = vmatprep.subr.bf16.mxu0 0
  %954 = vmatpush1.bf16.msra.mxu0 0
  %955 = vmatprep.subr.bf16.mxu0 0
  %956 = vmatpush1.bf16.msra.mxu0 0
  %957 = vmatprep.subr.bf16.mxu0 0
  %958 = vmatpush1.bf16.msra.mxu0 0
  %959 = vmatprep.subr.bf16.mxu0 0
  %960 = vmatpush1.bf16.msra.mxu0 0
  %961 = vmatprep.subr.bf16.mxu0 0
  %962 = vmatpush1.bf16.msra.mxu0 0
  %963 = vmatprep.mubr.bf16.mxu0 0
  %964 = vmatmul.mubr.bf16.gmra.mrb[0].mxu0 %v926
  %v965 = vpop.f32.mrb[0].mxu0
  %v966 = vadd.f32 %v919, %v965
  %v967 = vpop.f32.mrb[0].mxu0
  %v968 = vpop.f32.mrb[0].mxu0
  %v969 = vadd.f32 %v922, %v968
  %v970 = vpop.f32.mrb[0].mxu0
  %971 = vdwg.mxu0
  %v972 = vrot.slane %v870, 1
  %v973 = vor.u32 %v867, %v972
  %v975 = vsel %vm234, %v973, 0
  %v976 = vsel %vm251, %v975, 0
  %s977 = scalar_lea.vmem %s14, 4
  %v978 = vld [vmem:[%s977] sm:$0x3]
  %v980 = vsel %vm134, %v976, 0
  %v983 = vsel %vm137, %v978, 0
  %985 = vmatprep.subr.bf16.mxu0 0
  %986 = vmatpush1.bf16.msra.mxu0 %v983
  %987 = vmatprep.subr.bf16.mxu0 0
  %988 = vmatpush1.bf16.msra.mxu0 0
  %989 = vmatprep.subr.bf16.mxu0 0
  %990 = vmatpush1.bf16.msra.mxu0 0
  %991 = vmatprep.subr.bf16.mxu0 0
  %992 = vmatpush1.bf16.msra.mxu0 0
  %993 = vmatprep.subr.bf16.mxu0 0
  %994 = vmatpush1.bf16.msra.mxu0 0
  %995 = vmatprep.subr.bf16.mxu0 0
  %996 = vmatpush1.bf16.msra.mxu0 0
  %997 = vmatprep.subr.bf16.mxu0 0
  %998 = vmatpush1.bf16.msra.mxu0 0
  %999 = vmatprep.subr.bf16.mxu0 0
  %1000 = vmatpush1.bf16.msra.mxu0 0
  %1001 = vmatprep.subr.bf16.mxu0 0
  %1002 = vmatpush1.bf16.msra.mxu0 0
  %1003 = vmatprep.subr.bf16.mxu0 0
  %1004 = vmatpush1.bf16.msra.mxu0 0
  %1005 = vmatprep.subr.bf16.mxu0 0
  %1006 = vmatpush1.bf16.msra.mxu0 0
  %1007 = vmatprep.subr.bf16.mxu0 0
  %1008 = vmatpush1.bf16.msra.mxu0 0
  %1009 = vmatprep.subr.bf16.mxu0 0
  %1010 = vmatpush1.bf16.msra.mxu0 0
  %1011 = vmatprep.subr.bf16.mxu0 0
  %1012 = vmatpush1.bf16.msra.mxu0 0
  %1013 = vmatprep.subr.bf16.mxu0 0
  %1014 = vmatpush1.bf16.msra.mxu0 0
  %1015 = vmatprep.subr.bf16.mxu0 0
  %1016 = vmatpush1.bf16.msra.mxu0 0
  %1017 = vmatprep.mubr.bf16.mxu0 0
  %1018 = vmatmul.mubr.bf16.gmra.mrb[0].mxu0 %v980
  %v1019 = vpop.f32.mrb[0].mxu0
  %v1020 = vadd.f32 0.0, %v1019
  %v1021 = vpop.f32.mrb[0].mxu0
  %v1022 = vpop.f32.mrb[0].mxu0
  %v1023 = vadd.f32 0.0, %v1022
  %v1024 = vpop.f32.mrb[0].mxu0
  %1025 = vdwg.mxu0
  %v1026 = vadd.f32 %v966, %v1020
  %v1027 = vadd.f32 %v969, %v1023
  %v1028 = vld [vmem:[%s15] sm:$0x1]
  %v1030 = vlaneseq
  %v1031 = vshrl.u32 %v1030, 7
  %v1032 = vsub.s32 0, %v1031
  %v1033 = vrot.slane %v1028, %v1032
  %v1035 = vadd.f32 %v1026, %v1033
  %v1036 = vadd.f32 %v1027, %v1033
  %vm1037 = vcmp.gt.f32.partialorder %v1035, 0.0
  %vm1038 = vcmp.gt.f32.partialorder %v1036, 0.0
  %v1039 = vmul.f32 %v1035, 0.01
  %v1040 = vmul.f32 %v1036, 0.01
  %v1041 = vsel %vm1037, %v1035, %v1039
  %v1042 = vsel %vm1038, %v1036, %v1040
  %v1043 = vpack.c.bf16 %v1042, %v1041
  %v1045 = vshrl.u32 %v1043, 16
  %v1047 = vrot.slane %v1045, 7
  %v1048 = vshll.u32 %v1043, 16
  %v1050 = vor.u32 %v1047, %v1048
  %v1052 = vsel %vm85, 0, %v1050
  %v1053 = vsel %vm129, %v1052, 0
  %v1054 = vld [vmem:[%s16] sm:$0xf]
  %s1055 = scalar_lea.vmem %s16, 4
  %v1056 = vld [vmem:[%s1055] sm:$0xf]
  %v1057 = vsel %vm333, %v1043, 0
  %v1060 = vsel %vm336, %v1056, 0
  %1062 = vmatprep.subr.bf16.mxu0 0
  %1063 = vmatpush1.bf16.msra.mxu0 %v1060
  %1064 = vmatprep.subr.bf16.mxu0 0
  %1065 = vmatpush1.bf16.msra.mxu0 0
  %1066 = vmatprep.subr.bf16.mxu0 0
  %1067 = vmatpush1.bf16.msra.mxu0 0
  %1068 = vmatprep.subr.bf16.mxu0 0
  %1069 = vmatpush1.bf16.msra.mxu0 0
  %1070 = vmatprep.subr.bf16.mxu0 0
  %1071 = vmatpush1.bf16.msra.mxu0 0
  %1072 = vmatprep.subr.bf16.mxu0 0
  %1073 = vmatpush1.bf16.msra.mxu0 0
  %1074 = vmatprep.subr.bf16.mxu0 0
  %1075 = vmatpush1.bf16.msra.mxu0 0
  %1076 = vmatprep.subr.bf16.mxu0 0
  %1077 = vmatpush1.bf16.msra.mxu0 0
  %1078 = vmatprep.subr.bf16.mxu0 0
  %1079 = vmatpush1.bf16.msra.mxu0 0
  %1080 = vmatprep.subr.bf16.mxu0 0
  %1081 = vmatpush1.bf16.msra.mxu0 0
  %1082 = vmatprep.subr.bf16.mxu0 0
  %1083 = vmatpush1.bf16.msra.mxu0 0
  %1084 = vmatprep.subr.bf16.mxu0 0
  %1085 = vmatpush1.bf16.msra.mxu0 0
  %1086 = vmatprep.subr.bf16.mxu0 0
  %1087 = vmatpush1.bf16.msra.mxu0 0
  %1088 = vmatprep.subr.bf16.mxu0 0
  %1089 = vmatpush1.bf16.msra.mxu0 0
  %1090 = vmatprep.subr.bf16.mxu0 0
  %1091 = vmatpush1.bf16.msra.mxu0 0
  %1092 = vmatprep.subr.bf16.mxu0 0
  %1093 = vmatpush1.bf16.msra.mxu0 0
  %1094 = vmatprep.mubr.bf16.mxu0 0
  %1095 = vmatmul.mubr.bf16.gmra.mrb[0].mxu0 %v1057
  %v1096 = vpop.f32.mrb[0].mxu0
  %v1097 = vadd.f32 0.0, %v1096
  %v1098 = vpop.f32.mrb[0].mxu0
  %v1099 = vpop.f32.mrb[0].mxu0
  %v1100 = vadd.f32 0.0, %v1099
  %v1101 = vpop.f32.mrb[0].mxu0
  %1102 = vdwg.mxu0
  %v1104 = vsel %vm333, %v1053, 0
  %v1107 = vsel %vm336, %v1054, 0
  %1109 = vmatprep.subr.bf16.mxu0 0
  %1110 = vmatpush1.bf16.msra.mxu0 %v1107
  %1111 = vmatprep.subr.bf16.mxu0 0
  %1112 = vmatpush1.bf16.msra.mxu0 0
  %1113 = vmatprep.subr.bf16.mxu0 0
  %1114 = vmatpush1.bf16.msra.mxu0 0
  %1115 = vmatprep.subr.bf16.mxu0 0
  %1116 = vmatpush1.bf16.msra.mxu0 0
  %1117 = vmatprep.subr.bf16.mxu0 0
  %1118 = vmatpush1.bf16.msra.mxu0 0
  %1119 = vmatprep.subr.bf16.mxu0 0
  %1120 = vmatpush1.bf16.msra.mxu0 0
  %1121 = vmatprep.subr.bf16.mxu0 0
  %1122 = vmatpush1.bf16.msra.mxu0 0
  %1123 = vmatprep.subr.bf16.mxu0 0
  %1124 = vmatpush1.bf16.msra.mxu0 0
  %1125 = vmatprep.subr.bf16.mxu0 0
  %1126 = vmatpush1.bf16.msra.mxu0 0
  %1127 = vmatprep.subr.bf16.mxu0 0
  %1128 = vmatpush1.bf16.msra.mxu0 0
  %1129 = vmatprep.subr.bf16.mxu0 0
  %1130 = vmatpush1.bf16.msra.mxu0 0
  %1131 = vmatprep.subr.bf16.mxu0 0
  %1132 = vmatpush1.bf16.msra.mxu0 0
  %1133 = vmatprep.subr.bf16.mxu0 0
  %1134 = vmatpush1.bf16.msra.mxu0 0
  %1135 = vmatprep.subr.bf16.mxu0 0
  %1136 = vmatpush1.bf16.msra.mxu0 0
  %1137 = vmatprep.subr.bf16.mxu0 0
  %1138 = vmatpush1.bf16.msra.mxu0 0
  %1139 = vmatprep.subr.bf16.mxu0 0
  %1140 = vmatpush1.bf16.msra.mxu0 0
  %1141 = vmatprep.mubr.bf16.mxu0 0
  %1142 = vmatmul.mubr.bf16.gmra.mrb[0].mxu0 %v1104
  %v1143 = vpop.f32.mrb[0].mxu0
  %v1144 = vadd.f32 %v1097, %v1143
  %v1145 = vpop.f32.mrb[0].mxu0
  %v1146 = vpop.f32.mrb[0].mxu0
  %v1147 = vadd.f32 %v1100, %v1146
  %v1148 = vpop.f32.mrb[0].mxu0
  %1149 = vdwg.mxu0
  %v1150 = vrot.slane %v1048, 1
  %v1151 = vor.u32 %v1045, %v1150
  %v1153 = vsel %vm234, %v1151, 0
  %v1154 = vsel %vm251, %v1153, 0
  %s1155 = scalar_lea.vmem %s16, 8
  %v1156 = vld [vmem:[%s1155] sm:$0xf]
  %v1158 = vsel %vm333, %v1154, 0
  %v1161 = vsel %vm336, %v1156, 0
  %1163 = vmatprep.subr.bf16.mxu0 0
  %1164 = vmatpush1.bf16.msra.mxu0 %v1161
  %1165 = vmatprep.subr.bf16.mxu0 0
  %1166 = vmatpush1.bf16.msra.mxu0 0
  %1167 = vmatprep.subr.bf16.mxu0 0
  %1168 = vmatpush1.bf16.msra.mxu0 0
  %1169 = vmatprep.subr.bf16.mxu0 0
  %1170 = vmatpush1.bf16.msra.mxu0 0
  %1171 = vmatprep.subr.bf16.mxu0 0
  %1172 = vmatpush1.bf16.msra.mxu0 0
  %1173 = vmatprep.subr.bf16.mxu0 0
  %1174 = vmatpush1.bf16.msra.mxu0 0
  %1175 = vmatprep.subr.bf16.mxu0 0
  %1176 = vmatpush1.bf16.msra.mxu0 0
  %1177 = vmatprep.subr.bf16.mxu0 0
  %1178 = vmatpush1.bf16.msra.mxu0 0
  %1179 = vmatprep.subr.bf16.mxu0 0
  %1180 = vmatpush1.bf16.msra.mxu0 0
  %1181 = vmatprep.subr.bf16.mxu0 0
  %1182 = vmatpush1.bf16.msra.mxu0 0
  %1183 = vmatprep.subr.bf16.mxu0 0
  %1184 = vmatpush1.bf16.msra.mxu0 0
  %1185 = vmatprep.subr.bf16.mxu0 0
  %1186 = vmatpush1.bf16.msra.mxu0 0
  %1187 = vmatprep.subr.bf16.mxu0 0
  %1188 = vmatpush1.bf16.msra.mxu0 0
  %1189 = vmatprep.subr.bf16.mxu0 0
  %1190 = vmatpush1.bf16.msra.mxu0 0
  %1191 = vmatprep.subr.bf16.mxu0 0
  %1192 = vmatpush1.bf16.msra.mxu0 0
  %1193 = vmatprep.subr.bf16.mxu0 0
  %1194 = vmatpush1.bf16.msra.mxu0 0
  %1195 = vmatprep.mubr.bf16.mxu0 0
  %1196 = vmatmul.mubr.bf16.gmra.mrb[0].mxu0 %v1158
  %v1197 = vpop.f32.mrb[0].mxu0
  %v1198 = vadd.f32 0.0, %v1197
  %v1199 = vpop.f32.mrb[0].mxu0
  %v1200 = vpop.f32.mrb[0].mxu0
  %v1201 = vadd.f32 0.0, %v1200
  %v1202 = vpop.f32.mrb[0].mxu0
  %1203 = vdwg.mxu0
  %v1204 = vadd.f32 %v1144, %v1198
  %v1205 = vadd.f32 %v1147, %v1201
  %v1206 = vld [vmem:[%s17] sm:$0x1]
  %v1208 = vlaneseq
  %v1209 = vshrl.u32 %v1208, 7
  %v1210 = vsub.s32 0, %v1209
  %v1211 = vrot.slane %v1206, %v1210
  %v1213 = vadd.f32 %v1204, %v1211
  %v1214 = vadd.f32 %v1205, %v1211
  %v1215 = vtanh.pop %v1213
  %v1216 = vtanh.pop %v1214
  %v1217 = vadd.f32 %v863, %v1215
  %v1218 = vadd.f32 %v864, %v1216
  %v1219 = vpack.c.bf16 %v1218, %v1217
  %v1221 = vunpack.c.l.b16 %v1219
  %v1222 = vunpack.c.h.b16 %v1219
  %v1223 = vpack.c.b16 %v1221, %v1221
  %v1224 = vpack.c.b16 %v1222, %v1222
  %vm1227 = vcmask 27648
  %1228 = vst.msk [vmem:[%s18] sm:$0xf] %vm1227, %v1223
  %1229 = vst.msk [vmem:[%s18 + $0x4] sm:$0xf] %vm1227, %v1224
  %v1230 = vpack.c.bf16 %v864, %v863
  %v1232 = vshrl.u32 %v1230, 16
  %v1234 = vrot.slane %v1232, 7
  %v1235 = vshll.u32 %v1230, 16
  %v1237 = vor.u32 %v1234, %v1235
  %v1239 = vsel %vm85, 0, %v1237
  %v1240 = vsel %vm129, %v1239, 0
  %v1241 = vld [vmem:[%s10] sm:$0x3]
  %s1242 = scalar_lea.vmem %s10, 2
  %v1243 = vld [vmem:[%s1242] sm:$0x3]
  %v1244 = vsel %vm134, %v1230, 0
  %v1247 = vsel %vm137, %v1243, 0
  %1249 = vmatprep.subr.bf16.mxu0 0
  %1250 = vmatpush1.bf16.msra.mxu0 %v1247
  %1251 = vmatprep.subr.bf16.mxu0 0
  %1252 = vmatpush1.bf16.msra.mxu0 0
  %1253 = vmatprep.subr.bf16.mxu0 0
  %1254 = vmatpush1.bf16.msra.mxu0 0
  %1255 = vmatprep.subr.bf16.mxu0 0
  %1256 = vmatpush1.bf16.msra.mxu0 0
  %1257 = vmatprep.subr.bf16.mxu0 0
  %1258 = vmatpush1.bf16.msra.mxu0 0
  %1259 = vmatprep.subr.bf16.mxu0 0
  %1260 = vmatpush1.bf16.msra.mxu0 0
  %1261 = vmatprep.subr.bf16.mxu0 0
  %1262 = vmatpush1.bf16.msra.mxu0 0
  %1263 = vmatprep.subr.bf16.mxu0 0
  %1264 = vmatpush1.bf16.msra.mxu0 0
  %1265 = vmatprep.subr.bf16.mxu0 0
  %1266 = vmatpush1.bf16.msra.mxu0 0
  %1267 = vmatprep.subr.bf16.mxu0 0
  %1268 = vmatpush1.bf16.msra.mxu0 0
  %1269 = vmatprep.subr.bf16.mxu0 0
  %1270 = vmatpush1.bf16.msra.mxu0 0
  %1271 = vmatprep.subr.bf16.mxu0 0
  %1272 = vmatpush1.bf16.msra.mxu0 0
  %1273 = vmatprep.subr.bf16.mxu0 0
  %1274 = vmatpush1.bf16.msra.mxu0 0
  %1275 = vmatprep.subr.bf16.mxu0 0
  %1276 = vmatpush1.bf16.msra.mxu0 0
  %1277 = vmatprep.subr.bf16.mxu0 0
  %1278 = vmatpush1.bf16.msra.mxu0 0
  %1279 = vmatprep.subr.bf16.mxu0 0
  %1280 = vmatpush1.bf16.msra.mxu0 0
  %1281 = vmatprep.mubr.bf16.mxu0 0
  %1282 = vmatmul.mubr.bf16.gmra.mrb[0].mxu0 %v1244
  %v1283 = vpop.f32.mrb[0].mxu0
  %v1284 = vadd.f32 0.0, %v1283
  %v1285 = vpop.f32.mrb[0].mxu0
  %v1286 = vpop.f32.mrb[0].mxu0
  %v1287 = vadd.f32 0.0, %v1286
  %v1288 = vpop.f32.mrb[0].mxu0
  %1289 = vdwg.mxu0
  %v1291 = vsel %vm134, %v1240, 0
  %v1294 = vsel %vm137, %v1241, 0
  %1296 = vmatprep.subr.bf16.mxu0 0
  %1297 = vmatpush1.bf16.msra.mxu0 %v1294
  %1298 = vmatprep.subr.bf16.mxu0 0
  %1299 = vmatpush1.bf16.msra.mxu0 0
  %1300 = vmatprep.subr.bf16.mxu0 0
  %1301 = vmatpush1.bf16.msra.mxu0 0
  %1302 = vmatprep.subr.bf16.mxu0 0
  %1303 = vmatpush1.bf16.msra.mxu0 0
  %1304 = vmatprep.subr.bf16.mxu0 0
  %1305 = vmatpush1.bf16.msra.mxu0 0
  %1306 = vmatprep.subr.bf16.mxu0 0
  %1307 = vmatpush1.bf16.msra.mxu0 0
  %1308 = vmatprep.subr.bf16.mxu0 0
  %1309 = vmatpush1.bf16.msra.mxu0 0
  %1310 = vmatprep.subr.bf16.mxu0 0
  %1311 = vmatpush1.bf16.msra.mxu0 0
  %1312 = vmatprep.subr.bf16.mxu0 0
  %1313 = vmatpush1.bf16.msra.mxu0 0
  %1314 = vmatprep.subr.bf16.mxu0 0
  %1315 = vmatpush1.bf16.msra.mxu0 0
  %1316 = vmatprep.subr.bf16.mxu0 0
  %1317 = vmatpush1.bf16.msra.mxu0 0
  %1318 = vmatprep.subr.bf16.mxu0 0
  %1319 = vmatpush1.bf16.msra.mxu0 0
  %1320 = vmatprep.subr.bf16.mxu0 0
  %1321 = vmatpush1.bf16.msra.mxu0 0
  %1322 = vmatprep.subr.bf16.mxu0 0
  %1323 = vmatpush1.bf16.msra.mxu0 0
  %1324 = vmatprep.subr.bf16.mxu0 0
  %1325 = vmatpush1.bf16.msra.mxu0 0
  %1326 = vmatprep.subr.bf16.mxu0 0
  %1327 = vmatpush1.bf16.msra.mxu0 0
  %1328 = vmatprep.mubr.bf16.mxu0 0
  %1329 = vmatmul.mubr.bf16.gmra.mrb[0].mxu0 %v1291
  %v1330 = vpop.f32.mrb[0].mxu0
  %v1331 = vadd.f32 %v1284, %v1330
  %v1332 = vpop.f32.mrb[0].mxu0
  %v1333 = vpop.f32.mrb[0].mxu0
  %v1334 = vadd.f32 %v1287, %v1333
  %v1335 = vpop.f32.mrb[0].mxu0
  %1336 = vdwg.mxu0
  %v1337 = vrot.slane %v1235, 1
  %v1338 = vor.u32 %v1232, %v1337
  %v1340 = vsel %vm234, %v1338, 0
  %v1341 = vsel %vm251, %v1340, 0
  %s1342 = scalar_lea.vmem %s10, 4
  %v1343 = vld [vmem:[%s1342] sm:$0x3]
  %v1345 = vsel %vm134, %v1341, 0
  %v1348 = vsel %vm137, %v1343, 0
  %1350 = vmatprep.subr.bf16.mxu0 0
  %1351 = vmatpush1.bf16.msra.mxu0 %v1348
  %1352 = vmatprep.subr.bf16.mxu0 0
  %1353 = vmatpush1.bf16.msra.mxu0 0
  %1354 = vmatprep.subr.bf16.mxu0 0
  %1355 = vmatpush1.bf16.msra.mxu0 0
  %1356 = vmatprep.subr.bf16.mxu0 0
  %1357 = vmatpush1.bf16.msra.mxu0 0
  %1358 = vmatprep.subr.bf16.mxu0 0
  %1359 = vmatpush1.bf16.msra.mxu0 0
  %1360 = vmatprep.subr.bf16.mxu0 0
  %1361 = vmatpush1.bf16.msra.mxu0 0
  %1362 = vmatprep.subr.bf16.mxu0 0
  %1363 = vmatpush1.bf16.msra.mxu0 0
  %1364 = vmatprep.subr.bf16.mxu0 0
  %1365 = vmatpush1.bf16.msra.mxu0 0
  %1366 = vmatprep.subr.bf16.mxu0 0
  %1367 = vmatpush1.bf16.msra.mxu0 0
  %1368 = vmatprep.subr.bf16.mxu0 0
  %1369 = vmatpush1.bf16.msra.mxu0 0
  %1370 = vmatprep.subr.bf16.mxu0 0
  %1371 = vmatpush1.bf16.msra.mxu0 0
  %1372 = vmatprep.subr.bf16.mxu0 0
  %1373 = vmatpush1.bf16.msra.mxu0 0
  %1374 = vmatprep.subr.bf16.mxu0 0
  %1375 = vmatpush1.bf16.msra.mxu0 0
  %1376 = vmatprep.subr.bf16.mxu0 0
  %1377 = vmatpush1.bf16.msra.mxu0 0
  %1378 = vmatprep.subr.bf16.mxu0 0
  %1379 = vmatpush1.bf16.msra.mxu0 0
  %1380 = vmatprep.subr.bf16.mxu0 0
  %1381 = vmatpush1.bf16.msra.mxu0 0
  %1382 = vmatprep.mubr.bf16.mxu0 0
  %1383 = vmatmul.mubr.bf16.gmra.mrb[0].mxu0 %v1345
  %v1384 = vpop.f32.mrb[0].mxu0
  %v1385 = vadd.f32 0.0, %v1384
  %v1386 = vpop.f32.mrb[0].mxu0
  %v1387 = vpop.f32.mrb[0].mxu0
  %v1388 = vadd.f32 0.0, %v1387
  %v1389 = vpop.f32.mrb[0].mxu0
  %1390 = vdwg.mxu0
  %v1391 = vadd.f32 %v1331, %v1385
  %v1392 = vadd.f32 %v1334, %v1388
  %v1393 = vld [vmem:[%s11] sm:$0x1]
  %v1395 = vlaneseq
  %v1396 = vshrl.u32 %v1395, 7
  %v1397 = vsub.s32 0, %v1396
  %v1398 = vrot.slane %v1393, %v1397
  %v1400 = vadd.f32 %v1391, %v1398
  %v1401 = vadd.f32 %v1392, %v1398
  %vm1402 = vcmp.gt.f32.partialorder %v1400, 0.0
  %vm1403 = vcmp.gt.f32.partialorder %v1401, 0.0
  %v1404 = vmul.f32 %v1400, 0.01
  %v1405 = vmul.f32 %v1401, 0.01
  %v1406 = vsel %vm1402, %v1400, %v1404
  %v1407 = vsel %vm1403, %v1401, %v1405
  %v1408 = vpack.c.bf16 %v1407, %v1406
  %v1410 = vshrl.u32 %v1408, 16
  %v1412 = vrot.slane %v1410, 7
  %v1413 = vshll.u32 %v1408, 16
  %v1415 = vor.u32 %v1412, %v1413
  %v1417 = vsel %vm85, 0, %v1415
  %v1418 = vsel %vm129, %v1417, 0
  %v1419 = vld [vmem:[%s12] sm:$0xf]
  %s1420 = scalar_lea.vmem %s12, 4
  %v1421 = vld [vmem:[%s1420] sm:$0xf]
  %v1422 = vsel %vm333, %v1408, 0
  %v1425 = vsel %vm336, %v1421, 0
  %1427 = vmatprep.subr.bf16.mxu0 0
  %1428 = vmatpush1.bf16.msra.mxu0 %v1425
  %1429 = vmatprep.subr.bf16.mxu0 0
  %1430 = vmatpush1.bf16.msra.mxu0 0
  %1431 = vmatprep.subr.bf16.mxu0 0
  %1432 = vmatpush1.bf16.msra.mxu0 0
  %1433 = vmatprep.subr.bf16.mxu0 0
  %1434 = vmatpush1.bf16.msra.mxu0 0
  %1435 = vmatprep.subr.bf16.mxu0 0
  %1436 = vmatpush1.bf16.msra.mxu0 0
  %1437 = vmatprep.subr.bf16.mxu0 0
  %1438 = vmatpush1.bf16.msra.mxu0 0
  %1439 = vmatprep.subr.bf16.mxu0 0
  %1440 = vmatpush1.bf16.msra.mxu0 0
  %1441 = vmatprep.subr.bf16.mxu0 0
  %1442 = vmatpush1.bf16.msra.mxu0 0
  %1443 = vmatprep.subr.bf16.mxu0 0
  %1444 = vmatpush1.bf16.msra.mxu0 0
  %1445 = vmatprep.subr.bf16.mxu0 0
  %1446 = vmatpush1.bf16.msra.mxu0 0
  %1447 = vmatprep.subr.bf16.mxu0 0
  %1448 = vmatpush1.bf16.msra.mxu0 0
  %1449 = vmatprep.subr.bf16.mxu0 0
  %1450 = vmatpush1.bf16.msra.mxu0 0
  %1451 = vmatprep.subr.bf16.mxu0 0
  %1452 = vmatpush1.bf16.msra.mxu0 0
  %1453 = vmatprep.subr.bf16.mxu0 0
  %1454 = vmatpush1.bf16.msra.mxu0 0
  %1455 = vmatprep.subr.bf16.mxu0 0
  %1456 = vmatpush1.bf16.msra.mxu0 0
  %1457 = vmatprep.subr.bf16.mxu0 0
  %1458 = vmatpush1.bf16.msra.mxu0 0
  %1459 = vmatprep.mubr.bf16.mxu0 0
  %1460 = vmatmul.mubr.bf16.gmra.mrb[0].mxu0 %v1422
  %v1461 = vpop.f32.mrb[0].mxu0
  %v1462 = vadd.f32 0.0, %v1461
  %v1463 = vpop.f32.mrb[0].mxu0
  %v1464 = vpop.f32.mrb[0].mxu0
  %v1465 = vadd.f32 0.0, %v1464
  %v1466 = vpop.f32.mrb[0].mxu0
  %1467 = vdwg.mxu0
  %v1469 = vsel %vm333, %v1418, 0
  %v1472 = vsel %vm336, %v1419, 0
  %1474 = vmatprep.subr.bf16.mxu0 0
  %1475 = vmatpush1.bf16.msra.mxu0 %v1472
  %1476 = vmatprep.subr.bf16.mxu0 0
  %1477 = vmatpush1.bf16.msra.mxu0 0
  %1478 = vmatprep.subr.bf16.mxu0 0
  %1479 = vmatpush1.bf16.msra.mxu0 0
  %1480 = vmatprep.subr.bf16.mxu0 0
  %1481 = vmatpush1.bf16.msra.mxu0 0
  %1482 = vmatprep.subr.bf16.mxu0 0
  %1483 = vmatpush1.bf16.msra.mxu0 0
  %1484 = vmatprep.subr.bf16.mxu0 0
  %1485 = vmatpush1.bf16.msra.mxu0 0
  %1486 = vmatprep.subr.bf16.mxu0 0
  %1487 = vmatpush1.bf16.msra.mxu0 0
  %1488 = vmatprep.subr.bf16.mxu0 0
  %1489 = vmatpush1.bf16.msra.mxu0 0
  %1490 = vmatprep.subr.bf16.mxu0 0
  %1491 = vmatpush1.bf16.msra.mxu0 0
  %1492 = vmatprep.subr.bf16.mxu0 0
  %1493 = vmatpush1.bf16.msra.mxu0 0
  %1494 = vmatprep.subr.bf16.mxu0 0
  %1495 = vmatpush1.bf16.msra.mxu0 0
  %1496 = vmatprep.subr.bf16.mxu0 0
  %1497 = vmatpush1.bf16.msra.mxu0 0
  %1498 = vmatprep.subr.bf16.mxu0 0
  %1499 = vmatpush1.bf16.msra.mxu0 0
  %1500 = vmatprep.subr.bf16.mxu0 0
  %1501 = vmatpush1.bf16.msra.mxu0 0
  %1502 = vmatprep.subr.bf16.mxu0 0
  %1503 = vmatpush1.bf16.msra.mxu0 0
  %1504 = vmatprep.subr.bf16.mxu0 0
  %1505 = vmatpush1.bf16.msra.mxu0 0
  %1506 = vmatprep.mubr.bf16.mxu0 0
  %1507 = vmatmul.mubr.bf16.gmra.mrb[0].mxu0 %v1469
  %v1508 = vpop.f32.mrb[0].mxu0
  %v1509 = vadd.f32 %v1462, %v1508
  %v1510 = vpop.f32.mrb[0].mxu0
  %v1511 = vpop.f32.mrb[0].mxu0
  %v1512 = vadd.f32 %v1465, %v1511
  %v1513 = vpop.f32.mrb[0].mxu0
  %1514 = vdwg.mxu0
  %v1515 = vrot.slane %v1413, 1
  %v1516 = vor.u32 %v1410, %v1515
  %v1518 = vsel %vm234, %v1516, 0
  %v1519 = vsel %vm251, %v1518, 0
  %s1520 = scalar_lea.vmem %s12, 8
  %v1521 = vld [vmem:[%s1520] sm:$0xf]
  %v1523 = vsel %vm333, %v1519, 0
  %v1526 = vsel %vm336, %v1521, 0
  %1528 = vmatprep.subr.bf16.mxu0 0
  %1529 = vmatpush1.bf16.msra.mxu0 %v1526
  %1530 = vmatprep.subr.bf16.mxu0 0
  %1531 = vmatpush1.bf16.msra.mxu0 0
  %1532 = vmatprep.subr.bf16.mxu0 0
  %1533 = vmatpush1.bf16.msra.mxu0 0
  %1534 = vmatprep.subr.bf16.mxu0 0
  %1535 = vmatpush1.bf16.msra.mxu0 0
  %1536 = vmatprep.subr.bf16.mxu0 0
  %1537 = vmatpush1.bf16.msra.mxu0 0
  %1538 = vmatprep.subr.bf16.mxu0 0
  %1539 = vmatpush1.bf16.msra.mxu0 0
  %1540 = vmatprep.subr.bf16.mxu0 0
  %1541 = vmatpush1.bf16.msra.mxu0 0
  %1542 = vmatprep.subr.bf16.mxu0 0
  %1543 = vmatpush1.bf16.msra.mxu0 0
  %1544 = vmatprep.subr.bf16.mxu0 0
  %1545 = vmatpush1.bf16.msra.mxu0 0
  %1546 = vmatprep.subr.bf16.mxu0 0
  %1547 = vmatpush1.bf16.msra.mxu0 0
  %1548 = vmatprep.subr.bf16.mxu0 0
  %1549 = vmatpush1.bf16.msra.mxu0 0
  %1550 = vmatprep.subr.bf16.mxu0 0
  %1551 = vmatpush1.bf16.msra.mxu0 0
  %1552 = vmatprep.subr.bf16.mxu0 0
  %1553 = vmatpush1.bf16.msra.mxu0 0
  %1554 = vmatprep.subr.bf16.mxu0 0
  %1555 = vmatpush1.bf16.msra.mxu0 0
  %1556 = vmatprep.subr.bf16.mxu0 0
  %1557 = vmatpush1.bf16.msra.mxu0 0
  %1558 = vmatprep.subr.bf16.mxu0 0
  %1559 = vmatpush1.bf16.msra.mxu0 0
  %1560 = vmatprep.mubr.bf16.mxu0 0
  %1561 = vmatmul.mubr.bf16.gmra.mrb[0].mxu0 %v1523
  %v1562 = vpop.f32.mrb[0].mxu0
  %v1563 = vadd.f32 0.0, %v1562
  %v1564 = vpop.f32.mrb[0].mxu0
  %v1565 = vpop.f32.mrb[0].mxu0
  %v1566 = vadd.f32 0.0, %v1565
  %v1567 = vpop.f32.mrb[0].mxu0
  %1568 = vdwg.mxu0
  %v1569 = vadd.f32 %v1509, %v1563
  %v1570 = vadd.f32 %v1512, %v1566
  %v1571 = vld [vmem:[%s13] sm:$0x1]
  %v1573 = vlaneseq
  %v1574 = vshrl.u32 %v1573, 7
  %v1575 = vsub.s32 0, %v1574
  %v1576 = vrot.slane %v1571, %v1575
  %v1578 = vadd.f32 %v1569, %v1576
  %v1579 = vadd.f32 %v1570, %v1576
  %v1580 = vtanh.pop %v1578
  %v1581 = vtanh.pop %v1579
  %v1582 = vsub.f32 %v499, %v1580
  %v1583 = vsub.f32 %v500, %v1581
  %v1584 = vpack.c.bf16 %v1583, %v1582
  %v1586 = vunpack.c.l.b16 %v1584
  %v1587 = vunpack.c.h.b16 %v1584
  %v1588 = vpack.c.b16 %v1586, %v1586
  %v1589 = vpack.c.b16 %v1587, %v1587
  %1592 = vst.msk [vmem:[%s19] sm:$0xf] %vm1227, %v1588
  %1593 = vst.msk [vmem:[%s19 + $0x4] sm:$0xf] %vm1227, %v1589
  // Predicated region
  $region74: #{sci_net_forward.4} parent=0 // pred_check
    _
  $region75: #{sci_net_forward.4} parent=0 // pred_check_branch
    %1595 = sbr.rel (0) target = $region77
  $region76: #{sci_net_forward.4} parent=0 // pred_region
    _
  $region77: #{sci_net_forward.4} parent=0 // pred_fallthru
    _
  // Predicated region
  $region78: #{sci_net_forward.4} parent=0 // pred_check
    _
  $region79: #{sci_net_forward.4} parent=0 // pred_check_branch
    %1597 = sbr.rel (0) target = $region81
  $region80: #{sci_net_forward.4} parent=0 // pred_region
    _
  $region81: #{sci_net_forward.4} parent=0 // pred_fallthru
    _
  // Predicated region
  $region82: #{sci_net_forward.4} parent=0 // pred_check
    _
  $region83: #{sci_net_forward.4} parent=0 // pred_check_branch
    %1599 = sbr.rel (0) target = $region85
  $region84: #{sci_net_forward.4} parent=0 // pred_region
    _
  $region85: #{sci_net_forward.4} parent=0 // pred_fallthru
    _
  // Predicated region
  $region86: #{sci_net_forward.4} parent=0 // pred_check
    _
  $region87: #{sci_net_forward.4} parent=0 // pred_check_branch
    %1601 = sbr.rel (0) target = $region89
  $region88: #{sci_net_forward.4} parent=0 // pred_region
    _
  $region89: #{sci_net_forward.4} parent=0 // pred_fallthru
    _

// kernel: sci_net_forward.3
$region0: #{sci_net_forward.3}
  #allocation0 [shape = 'u32[]', space=smem, size = 0x4, offset = 0x4, fixed_abs, tag = 'smem constant byte address 0x4 - core index']
  #allocation1 [shape = 'u32[144,128]{1,0:T(1,128)}', space=vmem, size = 0x12000, scoped, tag = 'internal scratch']
  %s0 = inlined_call_operand.vmem [shape: bf16[16,4], index: 0, kind: input, shape index: {}]
  %s1 = inlined_call_operand.vmem [shape: bf16[16,4], index: 1, kind: input, shape index: {}]
  %s2 = inlined_call_operand.vmem [shape: bf16[3,4,8], index: 2, kind: input, shape index: {}]
  %s3 = inlined_call_operand.vmem [shape: f32[1,8], index: 3, kind: input, shape index: {}]
  %s4 = inlined_call_operand.vmem [shape: bf16[3,8,4], index: 4, kind: input, shape index: {}]
  %s5 = inlined_call_operand.vmem [shape: f32[1,4], index: 5, kind: input, shape index: {}]
  %s6 = inlined_call_operand.vmem [shape: bf16[3,4,8], index: 6, kind: input, shape index: {}]
  %s7 = inlined_call_operand.vmem [shape: f32[1,8], index: 7, kind: input, shape index: {}]
  %s8 = inlined_call_operand.vmem [shape: bf16[3,8,4], index: 8, kind: input, shape index: {}]
  %s9 = inlined_call_operand.vmem [shape: f32[1,4], index: 9, kind: input, shape index: {}]
  %s10 = inlined_call_operand.vmem [shape: bf16[3,4,8], index: 10, kind: input, shape index: {}]
  %s11 = inlined_call_operand.vmem [shape: f32[1,8], index: 11, kind: input, shape index: {}]
  %s12 = inlined_call_operand.vmem [shape: bf16[3,8,4], index: 12, kind: input, shape index: {}]
  %s13 = inlined_call_operand.vmem [shape: f32[1,4], index: 13, kind: input, shape index: {}]
  %s14 = inlined_call_operand.vmem [shape: bf16[3,4,8], index: 14, kind: input, shape index: {}]
  %s15 = inlined_call_operand.vmem [shape: f32[1,8], index: 15, kind: input, shape index: {}]
  %s16 = inlined_call_operand.vmem [shape: bf16[3,8,4], index: 16, kind: input, shape index: {}]
  %s17 = inlined_call_operand.vmem [shape: f32[1,4], index: 17, kind: input, shape index: {}]
  %s18 = inlined_call_operand.vmem [shape: bf16[16,4], index: 18, kind: output, shape index: {0}]
  %s19 = inlined_call_operand.vmem [shape: bf16[16,4], index: 19, kind: output, shape index: {1}]
  %20 = xla_tuple %s18, %s19
  %s21 = sld [smem:[#allocation0]]
  $region90: #{sci_net_forward.3} parent=0
    _
  %s23 = ssub.s32 1, %s21
  %s24 = scalar_select 0, %s23, %s21
  // Predicated region
  $region2: #{sci_net_forward.3} parent=0 // pred_check
    _
  $region3: #{sci_net_forward.3} parent=0 // pred_check_branch
    %26 = sbr.rel (0) target = $region5
  $region4: #{sci_net_forward.3} parent=0 // pred_region
    _
  $region5: #{sci_net_forward.3} parent=0 // pred_fallthru
    _
  // Predicated region
  $region6: #{sci_net_forward.3} parent=0 // pred_check
    _
  $region7: #{sci_net_forward.3} parent=0 // pred_check_branch
    %28 = sbr.rel (0) target = $region9
  $region8: #{sci_net_forward.3} parent=0 // pred_region
    _
  $region9: #{sci_net_forward.3} parent=0 // pred_fallthru
    _
  // Predicated region
  $region10: #{sci_net_forward.3} parent=0 // pred_check
    _
  $region11: #{sci_net_forward.3} parent=0 // pred_check_branch
    %30 = sbr.rel (0) target = $region13
  $region12: #{sci_net_forward.3} parent=0 // pred_region
    _
  $region13: #{sci_net_forward.3} parent=0 // pred_fallthru
    _
  // Predicated region
  $region14: #{sci_net_forward.3} parent=0 // pred_check
    _
  $region15: #{sci_net_forward.3} parent=0 // pred_check_branch
    %32 = sbr.rel (0) target = $region17
  $region16: #{sci_net_forward.3} parent=0 // pred_region
    _
  $region17: #{sci_net_forward.3} parent=0 // pred_fallthru
    _
  // Predicated region
  $region18: #{sci_net_forward.3} parent=0 // pred_check
    _
  $region19: #{sci_net_forward.3} parent=0 // pred_check_branch
    %34 = sbr.rel (0) target = $region21
  $region20: #{sci_net_forward.3} parent=0 // pred_region
    _
  $region21: #{sci_net_forward.3} parent=0 // pred_fallthru
    _
  // Predicated region
  $region22: #{sci_net_forward.3} parent=0 // pred_check
    _
  $region23: #{sci_net_forward.3} parent=0 // pred_check_branch
    %36 = sbr.rel (0) target = $region25
  $region24: #{sci_net_forward.3} parent=0 // pred_region
    _
  $region25: #{sci_net_forward.3} parent=0 // pred_fallthru
    _
  // Predicated region
  $region26: #{sci_net_forward.3} parent=0 // pred_check
    _
  $region27: #{sci_net_forward.3} parent=0 // pred_check_branch
    %38 = sbr.rel (0) target = $region29
  $region28: #{sci_net_forward.3} parent=0 // pred_region
    _
  $region29: #{sci_net_forward.3} parent=0 // pred_fallthru
    _
  // Predicated region
  $region30: #{sci_net_forward.3} parent=0 // pred_check
    _
  $region31: #{sci_net_forward.3} parent=0 // pred_check_branch
    %40 = sbr.rel (0) target = $region33
  $region32: #{sci_net_forward.3} parent=0 // pred_region
    _
  $region33: #{sci_net_forward.3} parent=0 // pred_fallthru
    _
  // Predicated region
  $region34: #{sci_net_forward.3} parent=0 // pred_check
    _
  $region35: #{sci_net_forward.3} parent=0 // pred_check_branch
    %42 = sbr.rel (0) target = $region37
  $region36: #{sci_net_forward.3} parent=0 // pred_region
    _
  $region37: #{sci_net_forward.3} parent=0 // pred_fallthru
    _
  // Predicated region
  $region38: #{sci_net_forward.3} parent=0 // pred_check
    _
  $region39: #{sci_net_forward.3} parent=0 // pred_check_branch
    %44 = sbr.rel (0) target = $region41
  $region40: #{sci_net_forward.3} parent=0 // pred_region
    _
  $region41: #{sci_net_forward.3} parent=0 // pred_fallthru
    _
  // Predicated region
  $region42: #{sci_net_forward.3} parent=0 // pred_check
    _
  $region43: #{sci_net_forward.3} parent=0 // pred_check_branch
    %46 = sbr.rel (0) target = $region45
  $region44: #{sci_net_forward.3} parent=0 // pred_region
    _
  $region45: #{sci_net_forward.3} parent=0 // pred_fallthru
    _
  // Predicated region
  $region46: #{sci_net_forward.3} parent=0 // pred_check
    _
  $region47: #{sci_net_forward.3} parent=0 // pred_check_branch
    %48 = sbr.rel (0) target = $region49
  $region48: #{sci_net_forward.3} parent=0 // pred_region
    _
  $region49: #{sci_net_forward.3} parent=0 // pred_fallthru
    _
  // Predicated region
  $region50: #{sci_net_forward.3} parent=0 // pred_check
    _
  $region51: #{sci_net_forward.3} parent=0 // pred_check_branch
    %50 = sbr.rel (0) target = $region53
  $region52: #{sci_net_forward.3} parent=0 // pred_region
    _
  $region53: #{sci_net_forward.3} parent=0 // pred_fallthru
    _
  // Predicated region
  $region54: #{sci_net_forward.3} parent=0 // pred_check
    _
  $region55: #{sci_net_forward.3} parent=0 // pred_check_branch
    %52 = sbr.rel (0) target = $region57
  $region56: #{sci_net_forward.3} parent=0 // pred_region
    _
  $region57: #{sci_net_forward.3} parent=0 // pred_fallthru
    _
  // Predicated region
  $region58: #{sci_net_forward.3} parent=0 // pred_check
    _
  $region59: #{sci_net_forward.3} parent=0 // pred_check_branch
    %54 = sbr.rel (0) target = $region61
  $region60: #{sci_net_forward.3} parent=0 // pred_region
    _
  $region61: #{sci_net_forward.3} parent=0 // pred_fallthru
    _
  // Predicated region
  $region62: #{sci_net_forward.3} parent=0 // pred_check
    _
  $region63: #{sci_net_forward.3} parent=0 // pred_check_branch
    %56 = sbr.rel (0) target = $region65
  $region64: #{sci_net_forward.3} parent=0 // pred_region
    _
  $region65: #{sci_net_forward.3} parent=0 // pred_fallthru
    _
  // Predicated region
  $region66: #{sci_net_forward.3} parent=0 // pred_check
    _
  $region67: #{sci_net_forward.3} parent=0 // pred_check_branch
    %58 = sbr.rel (0) target = $region69
  $region68: #{sci_net_forward.3} parent=0 // pred_region
    _
  $region69: #{sci_net_forward.3} parent=0 // pred_fallthru
    _
  // Predicated region
  $region70: #{sci_net_forward.3} parent=0 // pred_check
    _
  $region71: #{sci_net_forward.3} parent=0 // pred_check_branch
    %60 = sbr.rel (0) target = $region73
  $region72: #{sci_net_forward.3} parent=0 // pred_region
    _
  $region73: #{sci_net_forward.3} parent=0 // pred_fallthru
    _
  %v64 = vld [vmem:[%s0] sm:$0xf]
  %v65 = vld [vmem:[%s0 + $0x4] sm:$0xf]
  %v66 = vld [vmem:[%s1] sm:$0xf]
  %v67 = vld [vmem:[%s1 + $0x4] sm:$0xf]
  %v68 = vunpack.c.l.bf16 %v66
  %v69 = vunpack.c.l.bf16 %v67
  %v72 = vunpack.c.l.b16 %v64
  %v73 = vunpack.c.l.b16 %v65
  %v74 = vpack.c.b16 %v73, %v72
  %v76 = vshrl.u32 %v74, 16
  %v78 = vrot.slane %v76, 7
  %v79 = vshll.u32 %v74, 16
  %v81 = vor.u32 %v78, %v79
  %vm83 = vcmask 1040384
  %vm84 = vsmask.f32 256
  %vm85 = vmand %vm83, %vm84
  %v86 = vsel %vm85, 0, %v81
  %v87 = vlaneseq
  %v88 = vshrl.u32 %v87, 7
  %v89 = vadd.s32 %v88, 8
  %vm90 = vcmp.lt.s32.totalorder %v88, 0
  %v91 = vsub.s32 0, %v88
  %v92 = vsel %vm90, %v91, %v88
  %v93 = vshrl.u32 %v92, 3
  %v94 = vand.u32 %v92, 7
  %v95 = vsub.s32 0, %v94
  %v96 = vsel %vm90, %v95, %v94
  %vm97 = vcmp.lt.s32.totalorder %v89, 0
  %v98 = vsub.s32 0, %v89
  %v99 = vsel %vm97, %v98, %v89
  %v100 = vshrl.u32 %v99, 3
  %v101 = vand.u32 %v99, 7
  %v102 = vsub.s32 0, %v101
  %v103 = vsel %vm97, %v102, %v101
  %vm104 = vcmp.ne.s32.totalorder %v96, 0
  %vm105 = vcmp.ne.s32.totalorder %v103, 0
  %vm106 = vcmp.lt.s32.totalorder %v96, 0
  %vm107 = vcmp.lt.s32.totalorder %v103, 0
  %vm108 = vmand %vm106, %vm104
  %vm109 = vmand %vm107, %vm105
  %v110 = vadd.s32 %v96, 8
  %v111 = vadd.s32 %v103, 8
  %v112 = vsel %vm108, %v110, %v96
  %v113 = vsel %vm109, %v111, %v103
  %v114 = vadd.s32 %v112, 4294967295
  %v115 = vadd.s32 %v113, 4294967295
  %vm116 = vcmp.ge.s32.totalorder %v114, 0
  %vm117 = vcmp.ge.s32.totalorder %v115, 0
  %vm118 = vcmp.lt.s32.totalorder %v114, 8
  %vm119 = vcmp.lt.s32.totalorder %v115, 8
  %vm120 = vmand %vm116, %vm118
  %vm121 = vmand %vm117, %vm119
  %vm122 = vmpackc.low %vm120, %vm120
  %vm123 = vmpackc.low %vm121, %vm121
  %v124 = vsel %vm122, 65537, 0
  %v125 = vsel %vm123, 65537, 0
  %v126 = vunpack.c.l.b16 %v124
  %v127 = vunpack.c.l.b16 %v125
  %v128 = vpack.c.b16 %v127, %v126
  %vm129 = vcmp.ne.s16.totalorder %v128, 0
  %v130 = vsel %vm129, %v86, 0
  %v131 = vld [vmem:[%s2] sm:$0x3]
  %s132 = scalar_lea.vmem %s2, 2
  %v133 = vld [vmem:[%s132] sm:$0x3]
  %vm134 = vcmask 31744
  %v135 = vsel %vm134, %v74, 0
  %vm137 = vcmask 1041408
  %v139 = vsel %vm137, %v133, 0
  %141 = vmatprep.subr.bf16.mxu0 0
  %142 = vmatpush1.bf16.msra.mxu0 %v139
  %143 = vmatprep.subr.bf16.mxu0 0
  %144 = vmatpush1.bf16.msra.mxu0 0
  %145 = vmatprep.subr.bf16.mxu0 0
  %146 = vmatpush1.bf16.msra.mxu0 0
  %147 = vmatprep.subr.bf16.mxu0 0
  %148 = vmatpush1.bf16.msra.mxu0 0
  %149 = vmatprep.subr.bf16.mxu0 0
  %150 = vmatpush1.bf16.msra.mxu0 0
  %151 = vmatprep.subr.bf16.mxu0 0
  %152 = vmatpush1.bf16.msra.mxu0 0
  %153 = vmatprep.subr.bf16.mxu0 0
  %154 = vmatpush1.bf16.msra.mxu0 0
  %155 = vmatprep.subr.bf16.mxu0 0
  %156 = vmatpush1.bf16.msra.mxu0 0
  %157 = vmatprep.subr.bf16.mxu0 0
  %158 = vmatpush1.bf16.msra.mxu0 0
  %159 = vmatprep.subr.bf16.mxu0 0
  %160 = vmatpush1.bf16.msra.mxu0 0
  %161 = vmatprep.subr.bf16.mxu0 0
  %162 = vmatpush1.bf16.msra.mxu0 0
  %163 = vmatprep.subr.bf16.mxu0 0
  %164 = vmatpush1.bf16.msra.mxu0 0
  %165 = vmatprep.subr.bf16.mxu0 0
  %166 = vmatpush1.bf16.msra.mxu0 0
  %167 = vmatprep.subr.bf16.mxu0 0
  %168 = vmatpush1.bf16.msra.mxu0 0
  %169 = vmatprep.subr.bf16.mxu0 0
  %170 = vmatpush1.bf16.msra.mxu0 0
  %171 = vmatprep.subr.bf16.mxu0 0
  %172 = vmatpush1.bf16.msra.mxu0 0
  %173 = vmatprep.mubr.bf16.mxu0 0
  %174 = vmatmul.mubr.bf16.gmra.mrb[0].mxu0 %v135
  %v175 = vpop.f32.mrb[0].mxu0
  %v176 = vadd.f32 0.0, %v175
  %v177 = vpop.f32.mrb[0].mxu0
  %v178 = vpop.f32.mrb[0].mxu0
  %v179 = vadd.f32 0.0, %v178
  %v180 = vpop.f32.mrb[0].mxu0
  %181 = vdwg.mxu0
  %v183 = vsel %vm134, %v130, 0
  %v186 = vsel %vm137, %v131, 0
  %188 = vmatprep.subr.bf16.mxu0 0
  %189 = vmatpush1.bf16.msra.mxu0 %v186
  %190 = vmatprep.subr.bf16.mxu0 0
  %191 = vmatpush1.bf16.msra.mxu0 0
  %192 = vmatprep.subr.bf16.mxu0 0
  %193 = vmatpush1.bf16.msra.mxu0 0
  %194 = vmatprep.subr.bf16.mxu0 0
  %195 = vmatpush1.bf16.msra.mxu0 0
  %196 = vmatprep.subr.bf16.mxu0 0
  %197 = vmatpush1.bf16.msra.mxu0 0
  %198 = vmatprep.subr.bf16.mxu0 0
  %199 = vmatpush1.bf16.msra.mxu0 0
  %200 = vmatprep.subr.bf16.mxu0 0
  %201 = vmatpush1.bf16.msra.mxu0 0
  %202 = vmatprep.subr.bf16.mxu0 0
  %203 = vmatpush1.bf16.msra.mxu0 0
  %204 = vmatprep.subr.bf16.mxu0 0
  %205 = vmatpush1.bf16.msra.mxu0 0
  %206 = vmatprep.subr.bf16.mxu0 0
  %207 = vmatpush1.bf16.msra.mxu0 0
  %208 = vmatprep.subr.bf16.mxu0 0
  %209 = vmatpush1.bf16.msra.mxu0 0
  %210 = vmatprep.subr.bf16.mxu0 0
  %211 = vmatpush1.bf16.msra.mxu0 0
  %212 = vmatprep.subr.bf16.mxu0 0
  %213 = vmatpush1.bf16.msra.mxu0 0
  %214 = vmatprep.subr.bf16.mxu0 0
  %215 = vmatpush1.bf16.msra.mxu0 0
  %216 = vmatprep.subr.bf16.mxu0 0
  %217 = vmatpush1.bf16.msra.mxu0 0
  %218 = vmatprep.subr.bf16.mxu0 0
  %219 = vmatpush1.bf16.msra.mxu0 0
  %220 = vmatprep.mubr.bf16.mxu0 0
  %221 = vmatmul.mubr.bf16.gmra.mrb[0].mxu0 %v183
  %v222 = vpop.f32.mrb[0].mxu0
  %v223 = vadd.f32 %v176, %v222
  %v224 = vpop.f32.mrb[0].mxu0
  %v225 = vpop.f32.mrb[0].mxu0
  %v226 = vadd.f32 %v179, %v225
  %v227 = vpop.f32.mrb[0].mxu0
  %228 = vdwg.mxu0
  %v229 = vrot.slane %v79, 1
  %v230 = vor.u32 %v76, %v229
  %vm232 = vcmask 1047552
  %vm233 = vsmask.f32 7424
  %vm234 = vmand %vm232, %vm233
  %v235 = vsel %vm234, %v230, 0
  %v236 = vadd.s32 %v112, 1
  %v237 = vadd.s32 %v113, 1
  %vm238 = vcmp.ge.s32.totalorder %v236, 0
  %vm239 = vcmp.ge.s32.totalorder %v237, 0
  %vm240 = vcmp.lt.s32.totalorder %v236, 8
  %vm241 = vcmp.lt.s32.totalorder %v237, 8
  %vm242 = vmand %vm238, %vm240
  %vm243 = vmand %vm239, %vm241
  %vm244 = vmpackc.low %vm242, %vm242
  %vm245 = vmpackc.low %vm243, %vm243
  %v246 = vsel %vm244, 65537, 0
  %v247 = vsel %vm245, 65537, 0
  %v248 = vunpack.c.l.b16 %v246
  %v249 = vunpack.c.l.b16 %v247
  %v250 = vpack.c.b16 %v249, %v248
  %vm251 = vcmp.ne.s16.totalorder %v250, 0
  %v252 = vsel %vm251, %v235, 0
  %s253 = scalar_lea.vmem %s2, 4
  %v254 = vld [vmem:[%s253] sm:$0x3]
  %v256 = vsel %vm134, %v252, 0
  %v259 = vsel %vm137, %v254, 0
  %261 = vmatprep.subr.bf16.mxu0 0
  %262 = vmatpush1.bf16.msra.mxu0 %v259
  %263 = vmatprep.subr.bf16.mxu0 0
  %264 = vmatpush1.bf16.msra.mxu0 0
  %265 = vmatprep.subr.bf16.mxu0 0
  %266 = vmatpush1.bf16.msra.mxu0 0
  %267 = vmatprep.subr.bf16.mxu0 0
  %268 = vmatpush1.bf16.msra.mxu0 0
  %269 = vmatprep.subr.bf16.mxu0 0
  %270 = vmatpush1.bf16.msra.mxu0 0
  %271 = vmatprep.subr.bf16.mxu0 0
  %272 = vmatpush1.bf16.msra.mxu0 0
  %273 = vmatprep.subr.bf16.mxu0 0
  %274 = vmatpush1.bf16.msra.mxu0 0
  %275 = vmatprep.subr.bf16.mxu0 0
  %276 = vmatpush1.bf16.msra.mxu0 0
  %277 = vmatprep.subr.bf16.mxu0 0
  %278 = vmatpush1.bf16.msra.mxu0 0
  %279 = vmatprep.subr.bf16.mxu0 0
  %280 = vmatpush1.bf16.msra.mxu0 0
  %281 = vmatprep.subr.bf16.mxu0 0
  %282 = vmatpush1.bf16.msra.mxu0 0
  %283 = vmatprep.subr.bf16.mxu0 0
  %284 = vmatpush1.bf16.msra.mxu0 0
  %285 = vmatprep.subr.bf16.mxu0 0
  %286 = vmatpush1.bf16.msra.mxu0 0
  %287 = vmatprep.subr.bf16.mxu0 0
  %288 = vmatpush1.bf16.msra.mxu0 0
  %289 = vmatprep.subr.bf16.mxu0 0
  %290 = vmatpush1.bf16.msra.mxu0 0
  %291 = vmatprep.subr.bf16.mxu0 0
  %292 = vmatpush1.bf16.msra.mxu0 0
  %293 = vmatprep.mubr.bf16.mxu0 0
  %294 = vmatmul.mubr.bf16.gmra.mrb[0].mxu0 %v256
  %v295 = vpop.f32.mrb[0].mxu0
  %v296 = vadd.f32 0.0, %v295
  %v297 = vpop.f32.mrb[0].mxu0
  %v298 = vpop.f32.mrb[0].mxu0
  %v299 = vadd.f32 0.0, %v298
  %v300 = vpop.f32.mrb[0].mxu0
  %301 = vdwg.mxu0
  %v302 = vadd.f32 %v223, %v296
  %v303 = vadd.f32 %v226, %v299
  %v304 = vld [vmem:[%s3] sm:$0x1]
  %v306 = vlaneseq
  %v307 = vshrl.u32 %v306, 7
  %v308 = vsub.s32 0, %v307
  %v309 = vrot.slane %v304, %v308
  %v311 = vadd.f32 %v302, %v309
  %v312 = vadd.f32 %v303, %v309
  %vm313 = vcmp.gt.f32.partialorder %v311, 0.0
  %vm314 = vcmp.gt.f32.partialorder %v312, 0.0
  %v315 = vmul.f32 %v311, 0.01
  %v316 = vmul.f32 %v312, 0.01
  %v317 = vsel %vm313, %v311, %v315
  %v318 = vsel %vm314, %v312, %v316
  %v319 = vpack.c.bf16 %v318, %v317
  %v321 = vshrl.u32 %v319, 16
  %v323 = vrot.slane %v321, 7
  %v324 = vshll.u32 %v319, 16
  %v326 = vor.u32 %v323, %v324
  %v328 = vsel %vm85, 0, %v326
  %v329 = vsel %vm129, %v328, 0
  %v330 = vld [vmem:[%s4] sm:$0xf]
  %s331 = scalar_lea.vmem %s4, 4
  %v332 = vld [vmem:[%s331] sm:$0xf]
  %vm333 = vcmask 64512
  %v334 = vsel %vm333, %v319, 0
  %vm336 = vcmask 1043456
  %v338 = vsel %vm336, %v332, 0
  %340 = vmatprep.subr.bf16.mxu0 0
  %341 = vmatpush1.bf16.msra.mxu0 %v338
  %342 = vmatprep.subr.bf16.mxu0 0
  %343 = vmatpush1.bf16.msra.mxu0 0
  %344 = vmatprep.subr.bf16.mxu0 0
  %345 = vmatpush1.bf16.msra.mxu0 0
  %346 = vmatprep.subr.bf16.mxu0 0
  %347 = vmatpush1.bf16.msra.mxu0 0
  %348 = vmatprep.subr.bf16.mxu0 0
  %349 = vmatpush1.bf16.msra.mxu0 0
  %350 = vmatprep.subr.bf16.mxu0 0
  %351 = vmatpush1.bf16.msra.mxu0 0
  %352 = vmatprep.subr.bf16.mxu0 0
  %353 = vmatpush1.bf16.msra.mxu0 0
  %354 = vmatprep.subr.bf16.mxu0 0
  %355 = vmatpush1.bf16.msra.mxu0 0
  %356 = vmatprep.subr.bf16.mxu0 0
  %357 = vmatpush1.bf16.msra.mxu0 0
  %358 = vmatprep.subr.bf16.mxu0 0
  %359 = vmatpush1.bf16.msra.mxu0 0
  %360 = vmatprep.subr.bf16.mxu0 0
  %361 = vmatpush1.bf16.msra.mxu0 0
  %362 = vmatprep.subr.bf16.mxu0 0
  %363 = vmatpush1.bf16.msra.mxu0 0
  %364 = vmatprep.subr.bf16.mxu0 0
  %365 = vmatpush1.bf16.msra.mxu0 0
  %366 = vmatprep.subr.bf16.mxu0 0
  %367 = vmatpush1.bf16.msra.mxu0 0
  %368 = vmatprep.subr.bf16.mxu0 0
  %369 = vmatpush1.bf16.msra.mxu0 0
  %370 = vmatprep.subr.bf16.mxu0 0
  %371 = vmatpush1.bf16.msra.mxu0 0
  %372 = vmatprep.mubr.bf16.mxu0 0
  %373 = vmatmul.mubr.bf16.gmra.mrb[0].mxu0 %v334
  %v374 = vpop.f32.mrb[0].mxu0
  %v375 = vadd.f32 0.0, %v374
  %v376 = vpop.f32.mrb[0].mxu0
  %v377 = vpop.f32.mrb[0].mxu0
  %v378 = vadd.f32 0.0, %v377
  %v379 = vpop.f32.mrb[0].mxu0
  %380 = vdwg.mxu0
  %v382 = vsel %vm333, %v329, 0
  %v385 = vsel %vm336, %v330, 0
  %387 = vmatprep.subr.bf16.mxu0 0
  %388 = vmatpush1.bf16.msra.mxu0 %v385
  %389 = vmatprep.subr.bf16.mxu0 0
  %390 = vmatpush1.bf16.msra.mxu0 0
  %391 = vmatprep.subr.bf16.mxu0 0
  %392 = vmatpush1.bf16.msra.mxu0 0
  %393 = vmatprep.subr.bf16.mxu0 0
  %394 = vmatpush1.bf16.msra.mxu0 0
  %395 = vmatprep.subr.bf16.mxu0 0
  %396 = vmatpush1.bf16.msra.mxu0 0
  %397 = vmatprep.subr.bf16.mxu0 0
  %398 = vmatpush1.bf16.msra.mxu0 0
  %399 = vmatprep.subr.bf16.mxu0 0
  %400 = vmatpush1.bf16.msra.mxu0 0
  %401 = vmatprep.subr.bf16.mxu0 0
  %402 = vmatpush1.bf16.msra.mxu0 0
  %403 = vmatprep.subr.bf16.mxu0 0
  %404 = vmatpush1.bf16.msra.mxu0 0
  %405 = vmatprep.subr.bf16.mxu0 0
  %406 = vmatpush1.bf16.msra.mxu0 0
  %407 = vmatprep.subr.bf16.mxu0 0
  %408 = vmatpush1.bf16.msra.mxu0 0
  %409 = vmatprep.subr.bf16.mxu0 0
  %410 = vmatpush1.bf16.msra.mxu0 0
  %411 = vmatprep.subr.bf16.mxu0 0
  %412 = vmatpush1.bf16.msra.mxu0 0
  %413 = vmatprep.subr.bf16.mxu0 0
  %414 = vmatpush1.bf16.msra.mxu0 0
  %415 = vmatprep.subr.bf16.mxu0 0
  %416 = vmatpush1.bf16.msra.mxu0 0
  %417 = vmatprep.subr.bf16.mxu0 0
  %418 = vmatpush1.bf16.msra.mxu0 0
  %419 = vmatprep.mubr.bf16.mxu0 0
  %420 = vmatmul.mubr.bf16.gmra.mrb[0].mxu0 %v382
  %v421 = vpop.f32.mrb[0].mxu0
  %v422 = vadd.f32 %v375, %v421
  %v423 = vpop.f32.mrb[0].mxu0
  %v424 = vpop.f32.mrb[0].mxu0
  %v425 = vadd.f32 %v378, %v424
  %v426 = vpop.f32.mrb[0].mxu0
  %427 = vdwg.mxu0
  %v428 = vrot.slane %v324, 1
  %v429 = vor.u32 %v321, %v428
  %v431 = vsel %vm234, %v429, 0
  %v432 = vsel %vm251, %v431, 0
  %s433 = scalar_lea.vmem %s4, 8
  %v434 = vld [vmem:[%s433] sm:$0xf]
  %v436 = vsel %vm333, %v432, 0
  %v439 = vsel %vm336, %v434, 0
  %441 = vmatprep.subr.bf16.mxu0 0
  %442 = vmatpush1.bf16.msra.mxu0 %v439
  %443 = vmatprep.subr.bf16.mxu0 0
  %444 = vmatpush1.bf16.msra.mxu0 0
  %445 = vmatprep.subr.bf16.mxu0 0
  %446 = vmatpush1.bf16.msra.mxu0 0
  %447 = vmatprep.subr.bf16.mxu0 0
  %448 = vmatpush1.bf16.msra.mxu0 0
  %449 = vmatprep.subr.bf16.mxu0 0
  %450 = vmatpush1.bf16.msra.mxu0 0
  %451 = vmatprep.subr.bf16.mxu0 0
  %452 = vmatpush1.bf16.msra.mxu0 0
  %453 = vmatprep.subr.bf16.mxu0 0
  %454 = vmatpush1.bf16.msra.mxu0 0
  %455 = vmatprep.subr.bf16.mxu0 0
  %456 = vmatpush1.bf16.msra.mxu0 0
  %457 = vmatprep.subr.bf16.mxu0 0
  %458 = vmatpush1.bf16.msra.mxu0 0
  %459 = vmatprep.subr.bf16.mxu0 0
  %460 = vmatpush1.bf16.msra.mxu0 0
  %461 = vmatprep.subr.bf16.mxu0 0
  %462 = vmatpush1.bf16.msra.mxu0 0
  %463 = vmatprep.subr.bf16.mxu0 0
  %464 = vmatpush1.bf16.msra.mxu0 0
  %465 = vmatprep.subr.bf16.mxu0 0
  %466 = vmatpush1.bf16.msra.mxu0 0
  %467 = vmatprep.subr.bf16.mxu0 0
  %468 = vmatpush1.bf16.msra.mxu0 0
  %469 = vmatprep.subr.bf16.mxu0 0
  %470 = vmatpush1.bf16.msra.mxu0 0
  %471 = vmatprep.subr.bf16.mxu0 0
  %472 = vmatpush1.bf16.msra.mxu0 0
  %473 = vmatprep.mubr.bf16.mxu0 0
  %474 = vmatmul.mubr.bf16.gmra.mrb[0].mxu0 %v436
  %v475 = vpop.f32.mrb[0].mxu0
  %v476 = vadd.f32 0.0, %v475
  %v477 = vpop.f32.mrb[0].mxu0
  %v478 = vpop.f32.mrb[0].mxu0
  %v479 = vadd.f32 0.0, %v478
  %v480 = vpop.f32.mrb[0].mxu0
  %481 = vdwg.mxu0
  %v482 = vadd.f32 %v422, %v476
  %v483 = vadd.f32 %v425, %v479
  %v484 = vld [vmem:[%s5] sm:$0x1]
  %v486 = vlaneseq
  %v487 = vshrl.u32 %v486, 7
  %v488 = vsub.s32 0, %v487
  %v489 = vrot.slane %v484, %v488
  %v491 = vadd.f32 %v482, %v489
  %v492 = vadd.f32 %v483, %v489
  %v493 = vtanh.pop %v491
  %v494 = vtanh.pop %v492
  %v495 = vmul.f32 %v493, 1.442695
  %v496 = vpow.pop %v495
  %v497 = vmul.f32 %v494, 1.442695
  %v498 = vpow.pop %v497
  %v499 = vmul.f32 %v68, %v496
  %v500 = vmul.f32 %v69, %v498
  %v501 = vunpack.c.l.bf16 %v64
  %v502 = vunpack.c.l.bf16 %v65
  %v505 = vunpack.c.l.b16 %v66
  %v506 = vunpack.c.l.b16 %v67
  %v507 = vpack.c.b16 %v506, %v505
  %v509 = vshrl.u32 %v507, 16
  %v511 = vrot.slane %v509, 7
  %v512 = vshll.u32 %v507, 16
  %v514 = vor.u32 %v511, %v512
  %v516 = vsel %vm85, 0, %v514
  %v517 = vsel %vm129, %v516, 0
  %v518 = vld [vmem:[%s6] sm:$0x3]
  %s519 = scalar_lea.vmem %s6, 2
  %v520 = vld [vmem:[%s519] sm:$0x3]
  %v521 = vsel %vm134, %v507, 0
  %v524 = vsel %vm137, %v520, 0
  %526 = vmatprep.subr.bf16.mxu0 0
  %527 = vmatpush1.bf16.msra.mxu0 %v524
  %528 = vmatprep.subr.bf16.mxu0 0
  %529 = vmatpush1.bf16.msra.mxu0 0
  %530 = vmatprep.subr.bf16.mxu0 0
  %531 = vmatpush1.bf16.msra.mxu0 0
  %532 = vmatprep.subr.bf16.mxu0 0
  %533 = vmatpush1.bf16.msra.mxu0 0
  %534 = vmatprep.subr.bf16.mxu0 0
  %535 = vmatpush1.bf16.msra.mxu0 0
  %536 = vmatprep.subr.bf16.mxu0 0
  %537 = vmatpush1.bf16.msra.mxu0 0
  %538 = vmatprep.subr.bf16.mxu0 0
  %539 = vmatpush1.bf16.msra.mxu0 0
  %540 = vmatprep.subr.bf16.mxu0 0
  %541 = vmatpush1.bf16.msra.mxu0 0
  %542 = vmatprep.subr.bf16.mxu0 0
  %543 = vmatpush1.bf16.msra.mxu0 0
  %544 = vmatprep.subr.bf16.mxu0 0
  %545 = vmatpush1.bf16.msra.mxu0 0
  %546 = vmatprep.subr.bf16.mxu0 0
  %547 = vmatpush1.bf16.msra.mxu0 0
  %548 = vmatprep.subr.bf16.mxu0 0
  %549 = vmatpush1.bf16.msra.mxu0 0
  %550 = vmatprep.subr.bf16.mxu0 0
  %551 = vmatpush1.bf16.msra.mxu0 0
  %552 = vmatprep.subr.bf16.mxu0 0
  %553 = vmatpush1.bf16.msra.mxu0 0
  %554 = vmatprep.subr.bf16.mxu0 0
  %555 = vmatpush1.bf16.msra.mxu0 0
  %556 = vmatprep.subr.bf16.mxu0 0
  %557 = vmatpush1.bf16.msra.mxu0 0
  %558 = vmatprep.mubr.bf16.mxu0 0
  %559 = vmatmul.mubr.bf16.gmra.mrb[0].mxu0 %v521
  %v560 = vpop.f32.mrb[0].mxu0
  %v561 = vadd.f32 0.0, %v560
  %v562 = vpop.f32.mrb[0].mxu0
  %v563 = vpop.f32.mrb[0].mxu0
  %v564 = vadd.f32 0.0, %v563
  %v565 = vpop.f32.mrb[0].mxu0
  %566 = vdwg.mxu0
  %v568 = vsel %vm134, %v517, 0
  %v571 = vsel %vm137, %v518, 0
  %573 = vmatprep.subr.bf16.mxu0 0
  %574 = vmatpush1.bf16.msra.mxu0 %v571
  %575 = vmatprep.subr.bf16.mxu0 0
  %576 = vmatpush1.bf16.msra.mxu0 0
  %577 = vmatprep.subr.bf16.mxu0 0
  %578 = vmatpush1.bf16.msra.mxu0 0
  %579 = vmatprep.subr.bf16.mxu0 0
  %580 = vmatpush1.bf16.msra.mxu0 0
  %581 = vmatprep.subr.bf16.mxu0 0
  %582 = vmatpush1.bf16.msra.mxu0 0
  %583 = vmatprep.subr.bf16.mxu0 0
  %584 = vmatpush1.bf16.msra.mxu0 0
  %585 = vmatprep.subr.bf16.mxu0 0
  %586 = vmatpush1.bf16.msra.mxu0 0
  %587 = vmatprep.subr.bf16.mxu0 0
  %588 = vmatpush1.bf16.msra.mxu0 0
  %589 = vmatprep.subr.bf16.mxu0 0
  %590 = vmatpush1.bf16.msra.mxu0 0
  %591 = vmatprep.subr.bf16.mxu0 0
  %592 = vmatpush1.bf16.msra.mxu0 0
  %593 = vmatprep.subr.bf16.mxu0 0
  %594 = vmatpush1.bf16.msra.mxu0 0
  %595 = vmatprep.subr.bf16.mxu0 0
  %596 = vmatpush1.bf16.msra.mxu0 0
  %597 = vmatprep.subr.bf16.mxu0 0
  %598 = vmatpush1.bf16.msra.mxu0 0
  %599 = vmatprep.subr.bf16.mxu0 0
  %600 = vmatpush1.bf16.msra.mxu0 0
  %601 = vmatprep.subr.bf16.mxu0 0
  %602 = vmatpush1.bf16.msra.mxu0 0
  %603 = vmatprep.subr.bf16.mxu0 0
  %604 = vmatpush1.bf16.msra.mxu0 0
  %605 = vmatprep.mubr.bf16.mxu0 0
  %606 = vmatmul.mubr.bf16.gmra.mrb[0].mxu0 %v568
  %v607 = vpop.f32.mrb[0].mxu0
  %v608 = vadd.f32 %v561, %v607
  %v609 = vpop.f32.mrb[0].mxu0
  %v610 = vpop.f32.mrb[0].mxu0
  %v611 = vadd.f32 %v564, %v610
  %v612 = vpop.f32.mrb[0].mxu0
  %613 = vdwg.mxu0
  %v614 = vrot.slane %v512, 1
  %v615 = vor.u32 %v509, %v614
  %v617 = vsel %vm234, %v615, 0
  %v618 = vsel %vm251, %v617, 0
  %s619 = scalar_lea.vmem %s6, 4
  %v620 = vld [vmem:[%s619] sm:$0x3]
  %v622 = vsel %vm134, %v618, 0
  %v625 = vsel %vm137, %v620, 0
  %627 = vmatprep.subr.bf16.mxu0 0
  %628 = vmatpush1.bf16.msra.mxu0 %v625
  %629 = vmatprep.subr.bf16.mxu0 0
  %630 = vmatpush1.bf16.msra.mxu0 0
  %631 = vmatprep.subr.bf16.mxu0 0
  %632 = vmatpush1.bf16.msra.mxu0 0
  %633 = vmatprep.subr.bf16.mxu0 0
  %634 = vmatpush1.bf16.msra.mxu0 0
  %635 = vmatprep.subr.bf16.mxu0 0
  %636 = vmatpush1.bf16.msra.mxu0 0
  %637 = vmatprep.subr.bf16.mxu0 0
  %638 = vmatpush1.bf16.msra.mxu0 0
  %639 = vmatprep.subr.bf16.mxu0 0
  %640 = vmatpush1.bf16.msra.mxu0 0
  %641 = vmatprep.subr.bf16.mxu0 0
  %642 = vmatpush1.bf16.msra.mxu0 0
  %643 = vmatprep.subr.bf16.mxu0 0
  %644 = vmatpush1.bf16.msra.mxu0 0
  %645 = vmatprep.subr.bf16.mxu0 0
  %646 = vmatpush1.bf16.msra.mxu0 0
  %647 = vmatprep.subr.bf16.mxu0 0
  %648 = vmatpush1.bf16.msra.mxu0 0
  %649 = vmatprep.subr.bf16.mxu0 0
  %650 = vmatpush1.bf16.msra.mxu0 0
  %651 = vmatprep.subr.bf16.mxu0 0
  %652 = vmatpush1.bf16.msra.mxu0 0
  %653 = vmatprep.subr.bf16.mxu0 0
  %654 = vmatpush1.bf16.msra.mxu0 0
  %655 = vmatprep.subr.bf16.mxu0 0
  %656 = vmatpush1.bf16.msra.mxu0 0
  %657 = vmatprep.subr.bf16.mxu0 0
  %658 = vmatpush1.bf16.msra.mxu0 0
  %659 = vmatprep.mubr.bf16.mxu0 0
  %660 = vmatmul.mubr.bf16.gmra.mrb[0].mxu0 %v622
  %v661 = vpop.f32.mrb[0].mxu0
  %v662 = vadd.f32 0.0, %v661
  %v663 = vpop.f32.mrb[0].mxu0
  %v664 = vpop.f32.mrb[0].mxu0
  %v665 = vadd.f32 0.0, %v664
  %v666 = vpop.f32.mrb[0].mxu0
  %667 = vdwg.mxu0
  %v668 = vadd.f32 %v608, %v662
  %v669 = vadd.f32 %v611, %v665
  %v670 = vld [vmem:[%s7] sm:$0x1]
  %v672 = vlaneseq
  %v673 = vshrl.u32 %v672, 7
  %v674 = vsub.s32 0, %v673
  %v675 = vrot.slane %v670, %v674
  %v677 = vadd.f32 %v668, %v675
  %v678 = vadd.f32 %v669, %v675
  %vm679 = vcmp.gt.f32.partialorder %v677, 0.0
  %vm680 = vcmp.gt.f32.partialorder %v678, 0.0
  %v681 = vmul.f32 %v677, 0.01
  %v682 = vmul.f32 %v678, 0.01
  %v683 = vsel %vm679, %v677, %v681
  %v684 = vsel %vm680, %v678, %v682
  %v685 = vpack.c.bf16 %v684, %v683
  %v687 = vshrl.u32 %v685, 16
  %v689 = vrot.slane %v687, 7
  %v690 = vshll.u32 %v685, 16
  %v692 = vor.u32 %v689, %v690
  %v694 = vsel %vm85, 0, %v692
  %v695 = vsel %vm129, %v694, 0
  %v696 = vld [vmem:[%s8] sm:$0xf]
  %s697 = scalar_lea.vmem %s8, 4
  %v698 = vld [vmem:[%s697] sm:$0xf]
  %v699 = vsel %vm333, %v685, 0
  %v702 = vsel %vm336, %v698, 0
  %704 = vmatprep.subr.bf16.mxu0 0
  %705 = vmatpush1.bf16.msra.mxu0 %v702
  %706 = vmatprep.subr.bf16.mxu0 0
  %707 = vmatpush1.bf16.msra.mxu0 0
  %708 = vmatprep.subr.bf16.mxu0 0
  %709 = vmatpush1.bf16.msra.mxu0 0
  %710 = vmatprep.subr.bf16.mxu0 0
  %711 = vmatpush1.bf16.msra.mxu0 0
  %712 = vmatprep.subr.bf16.mxu0 0
  %713 = vmatpush1.bf16.msra.mxu0 0
  %714 = vmatprep.subr.bf16.mxu0 0
  %715 = vmatpush1.bf16.msra.mxu0 0
  %716 = vmatprep.subr.bf16.mxu0 0
  %717 = vmatpush1.bf16.msra.mxu0 0
  %718 = vmatprep.subr.bf16.mxu0 0
  %719 = vmatpush1.bf16.msra.mxu0 0
  %720 = vmatprep.subr.bf16.mxu0 0
  %721 = vmatpush1.bf16.msra.mxu0 0
  %722 = vmatprep.subr.bf16.mxu0 0
  %723 = vmatpush1.bf16.msra.mxu0 0
  %724 = vmatprep.subr.bf16.mxu0 0
  %725 = vmatpush1.bf16.msra.mxu0 0
  %726 = vmatprep.subr.bf16.mxu0 0
  %727 = vmatpush1.bf16.msra.mxu0 0
  %728 = vmatprep.subr.bf16.mxu0 0
  %729 = vmatpush1.bf16.msra.mxu0 0
  %730 = vmatprep.subr.bf16.mxu0 0
  %731 = vmatpush1.bf16.msra.mxu0 0
  %732 = vmatprep.subr.bf16.mxu0 0
  %733 = vmatpush1.bf16.msra.mxu0 0
  %734 = vmatprep.subr.bf16.mxu0 0
  %735 = vmatpush1.bf16.msra.mxu0 0
  %736 = vmatprep.mubr.bf16.mxu0 0
  %737 = vmatmul.mubr.bf16.gmra.mrb[0].mxu0 %v699
  %v738 = vpop.f32.mrb[0].mxu0
  %v739 = vadd.f32 0.0, %v738
  %v740 = vpop.f32.mrb[0].mxu0
  %v741 = vpop.f32.mrb[0].mxu0
  %v742 = vadd.f32 0.0, %v741
  %v743 = vpop.f32.mrb[0].mxu0
  %744 = vdwg.mxu0
  %v746 = vsel %vm333, %v695, 0
  %v749 = vsel %vm336, %v696, 0
  %751 = vmatprep.subr.bf16.mxu0 0
  %752 = vmatpush1.bf16.msra.mxu0 %v749
  %753 = vmatprep.subr.bf16.mxu0 0
  %754 = vmatpush1.bf16.msra.mxu0 0
  %755 = vmatprep.subr.bf16.mxu0 0
  %756 = vmatpush1.bf16.msra.mxu0 0
  %757 = vmatprep.subr.bf16.mxu0 0
  %758 = vmatpush1.bf16.msra.mxu0 0
  %759 = vmatprep.subr.bf16.mxu0 0
  %760 = vmatpush1.bf16.msra.mxu0 0
  %761 = vmatprep.subr.bf16.mxu0 0
  %762 = vmatpush1.bf16.msra.mxu0 0
  %763 = vmatprep.subr.bf16.mxu0 0
  %764 = vmatpush1.bf16.msra.mxu0 0
  %765 = vmatprep.subr.bf16.mxu0 0
  %766 = vmatpush1.bf16.msra.mxu0 0
  %767 = vmatprep.subr.bf16.mxu0 0
  %768 = vmatpush1.bf16.msra.mxu0 0
  %769 = vmatprep.subr.bf16.mxu0 0
  %770 = vmatpush1.bf16.msra.mxu0 0
  %771 = vmatprep.subr.bf16.mxu0 0
  %772 = vmatpush1.bf16.msra.mxu0 0
  %773 = vmatprep.subr.bf16.mxu0 0
  %774 = vmatpush1.bf16.msra.mxu0 0
  %775 = vmatprep.subr.bf16.mxu0 0
  %776 = vmatpush1.bf16.msra.mxu0 0
  %777 = vmatprep.subr.bf16.mxu0 0
  %778 = vmatpush1.bf16.msra.mxu0 0
  %779 = vmatprep.subr.bf16.mxu0 0
  %780 = vmatpush1.bf16.msra.mxu0 0
  %781 = vmatprep.subr.bf16.mxu0 0
  %782 = vmatpush1.bf16.msra.mxu0 0
  %783 = vmatprep.mubr.bf16.mxu0 0
  %784 = vmatmul.mubr.bf16.gmra.mrb[0].mxu0 %v746
  %v785 = vpop.f32.mrb[0].mxu0
  %v786 = vadd.f32 %v739, %v785
  %v787 = vpop.f32.mrb[0].mxu0
  %v788 = vpop.f32.mrb[0].mxu0
  %v789 = vadd.f32 %v742, %v788
  %v790 = vpop.f32.mrb[0].mxu0
  %791 = vdwg.mxu0
  %v792 = vrot.slane %v690, 1
  %v793 = vor.u32 %v687, %v792
  %v795 = vsel %vm234, %v793, 0
  %v796 = vsel %vm251, %v795, 0
  %s797 = scalar_lea.vmem %s8, 8
  %v798 = vld [vmem:[%s797] sm:$0xf]
  %v800 = vsel %vm333, %v796, 0
  %v803 = vsel %vm336, %v798, 0
  %805 = vmatprep.subr.bf16.mxu0 0
  %806 = vmatpush1.bf16.msra.mxu0 %v803
  %807 = vmatprep.subr.bf16.mxu0 0
  %808 = vmatpush1.bf16.msra.mxu0 0
  %809 = vmatprep.subr.bf16.mxu0 0
  %810 = vmatpush1.bf16.msra.mxu0 0
  %811 = vmatprep.subr.bf16.mxu0 0
  %812 = vmatpush1.bf16.msra.mxu0 0
  %813 = vmatprep.subr.bf16.mxu0 0
  %814 = vmatpush1.bf16.msra.mxu0 0
  %815 = vmatprep.subr.bf16.mxu0 0
  %816 = vmatpush1.bf16.msra.mxu0 0
  %817 = vmatprep.subr.bf16.mxu0 0
  %818 = vmatpush1.bf16.msra.mxu0 0
  %819 = vmatprep.subr.bf16.mxu0 0
  %820 = vmatpush1.bf16.msra.mxu0 0
  %821 = vmatprep.subr.bf16.mxu0 0
  %822 = vmatpush1.bf16.msra.mxu0 0
  %823 = vmatprep.subr.bf16.mxu0 0
  %824 = vmatpush1.bf16.msra.mxu0 0
  %825 = vmatprep.subr.bf16.mxu0 0
  %826 = vmatpush1.bf16.msra.mxu0 0
  %827 = vmatprep.subr.bf16.mxu0 0
  %828 = vmatpush1.bf16.msra.mxu0 0
  %829 = vmatprep.subr.bf16.mxu0 0
  %830 = vmatpush1.bf16.msra.mxu0 0
  %831 = vmatprep.subr.bf16.mxu0 0
  %832 = vmatpush1.bf16.msra.mxu0 0
  %833 = vmatprep.subr.bf16.mxu0 0
  %834 = vmatpush1.bf16.msra.mxu0 0
  %835 = vmatprep.subr.bf16.mxu0 0
  %836 = vmatpush1.bf16.msra.mxu0 0
  %837 = vmatprep.mubr.bf16.mxu0 0
  %838 = vmatmul.mubr.bf16.gmra.mrb[0].mxu0 %v800
  %v839 = vpop.f32.mrb[0].mxu0
  %v840 = vadd.f32 0.0, %v839
  %v841 = vpop.f32.mrb[0].mxu0
  %v842 = vpop.f32.mrb[0].mxu0
  %v843 = vadd.f32 0.0, %v842
  %v844 = vpop.f32.mrb[0].mxu0
  %845 = vdwg.mxu0
  %v846 = vadd.f32 %v786, %v840
  %v847 = vadd.f32 %v789, %v843
  %v848 = vld [vmem:[%s9] sm:$0x1]
  %v850 = vlaneseq
  %v851 = vshrl.u32 %v850, 7
  %v852 = vsub.s32 0, %v851
  %v853 = vrot.slane %v848, %v852
  %v855 = vadd.f32 %v846, %v853
  %v856 = vadd.f32 %v847, %v853
  %v857 = vtanh.pop %v855
  %v858 = vtanh.pop %v856
  %v859 = vmul.f32 %v857, 1.442695
  %v860 = vpow.pop %v859
  %v861 = vmul.f32 %v858, 1.442695
  %v862 = vpow.pop %v861
  %v863 = vmul.f32 %v501, %v860
  %v864 = vmul.f32 %v502, %v862
  %v865 = vpack.c.bf16 %v500, %v499
  %v867 = vshrl.u32 %v865, 16
  %v869 = vrot.slane %v867, 7
  %v870 = vshll.u32 %v865, 16
  %v872 = vor.u32 %v869, %v870
  %v874 = vsel %vm85, 0, %v872
  %v875 = vsel %vm129, %v874, 0
  %v876 = vld [vmem:[%s14] sm:$0x3]
  %s877 = scalar_lea.vmem %s14, 2
  %v878 = vld [vmem:[%s877] sm:$0x3]
  %v879 = vsel %vm134, %v865, 0
  %v882 = vsel %vm137, %v878, 0
  %884 = vmatprep.subr.bf16.mxu0 0
  %885 = vmatpush1.bf16.msra.mxu0 %v882
  %886 = vmatprep.subr.bf16.mxu0 0
  %887 = vmatpush1.bf16.msra.mxu0 0
  %888 = vmatprep.subr.bf16.mxu0 0
  %889 = vmatpush1.bf16.msra.mxu0 0
  %890 = vmatprep.subr.bf16.mxu0 0
  %891 = vmatpush1.bf16.msra.mxu0 0
  %892 = vmatprep.subr.bf16.mxu0 0
  %893 = vmatpush1.bf16.msra.mxu0 0
  %894 = vmatprep.subr.bf16.mxu0 0
  %895 = vmatpush1.bf16.msra.mxu0 0
  %896 = vmatprep.subr.bf16.mxu0 0
  %897 = vmatpush1.bf16.msra.mxu0 0
  %898 = vmatprep.subr.bf16.mxu0 0
  %899 = vmatpush1.bf16.msra.mxu0 0
  %900 = vmatprep.subr.bf16.mxu0 0
  %901 = vmatpush1.bf16.msra.mxu0 0
  %902 = vmatprep.subr.bf16.mxu0 0
  %903 = vmatpush1.bf16.msra.mxu0 0
  %904 = vmatprep.subr.bf16.mxu0 0
  %905 = vmatpush1.bf16.msra.mxu0 0
  %906 = vmatprep.subr.bf16.mxu0 0
  %907 = vmatpush1.bf16.msra.mxu0 0
  %908 = vmatprep.subr.bf16.mxu0 0
  %909 = vmatpush1.bf16.msra.mxu0 0
  %910 = vmatprep.subr.bf16.mxu0 0
  %911 = vmatpush1.bf16.msra.mxu0 0
  %912 = vmatprep.subr.bf16.mxu0 0
  %913 = vmatpush1.bf16.msra.mxu0 0
  %914 = vmatprep.subr.bf16.mxu0 0
  %915 = vmatpush1.bf16.msra.mxu0 0
  %916 = vmatprep.mubr.bf16.mxu0 0
  %917 = vmatmul.mubr.bf16.gmra.mrb[0].mxu0 %v879
  %v918 = vpop.f32.mrb[0].mxu0
  %v919 = vadd.f32 0.0, %v918
  %v920 = vpop.f32.mrb[0].mxu0
  %v921 = vpop.f32.mrb[0].mxu0
  %v922 = vadd.f32 0.0, %v921
  %v923 = vpop.f32.mrb[0].mxu0
  %924 = vdwg.mxu0
  %v926 = vsel %vm134, %v875, 0
  %v929 = vsel %vm137, %v876, 0
  %931 = vmatprep.subr.bf16.mxu0 0
  %932 = vmatpush1.bf16.msra.mxu0 %v929
  %933 = vmatprep.subr.bf16.mxu0 0
  %934 = vmatpush1.bf16.msra.mxu0 0
  %935 = vmatprep.subr.bf16.mxu0 0
  %936 = vmatpush1.bf16.msra.mxu0 0
  %937 = vmatprep.subr.bf16.mxu0 0
  %938 = vmatpush1.bf16.msra.mxu0 0
  %939 = vmatprep.subr.bf16.mxu0 0
  %940 = vmatpush1.bf16.msra.mxu0 0
  %941 = vmatprep.subr.bf16.mxu0 0
  %942 = vmatpush1.bf16.msra.mxu0 0
  %943 = vmatprep.subr.bf16.mxu0 0
  %944 = vmatpush1.bf16.msra.mxu0 0
  %945 = vmatprep.subr.bf16.mxu0 0
  %946 = vmatpush1.bf16.msra.mxu0 0
  %947 = vmatprep.subr.bf16.mxu0 0
  %948 = vmatpush1.bf16.msra.mxu0 0
  %949 = vmatprep.subr.bf16.mxu0 0
  %950 = vmatpush1.bf16.msra.mxu0 0
  %951 = vmatprep.subr.bf16.mxu0 0
  %952 = vmatpush1.bf16.msra.mxu0 0
  %953 = vmatprep.subr.bf16.mxu0 0
  %954 = vmatpush1.bf16.msra.mxu0 0
  %955 = vmatprep.subr.bf16.mxu0 0
  %956 = vmatpush1.bf16.msra.mxu0 0
  %957 = vmatprep.subr.bf16.mxu0 0
  %958 = vmatpush1.bf16.msra.mxu0 0
  %959 = vmatprep.subr.bf16.mxu0 0
  %960 = vmatpush1.bf16.msra.mxu0 0
  %961 = vmatprep.subr.bf16.mxu0 0
  %962 = vmatpush1.bf16.msra.mxu0 0
  %963 = vmatprep.mubr.bf16.mxu0 0
  %964 = vmatmul.mubr.bf16.gmra.mrb[0].mxu0 %v926
  %v965 = vpop.f32.mrb[0].mxu0
  %v966 = vadd.f32 %v919, %v965
  %v967 = vpop.f32.mrb[0].mxu0
  %v968 = vpop.f32.mrb[0].mxu0
  %v969 = vadd.f32 %v922, %v968
  %v970 = vpop.f32.mrb[0].mxu0
  %971 = vdwg.mxu0
  %v972 = vrot.slane %v870, 1
  %v973 = vor.u32 %v867, %v972
  %v975 = vsel %vm234, %v973, 0
  %v976 = vsel %vm251, %v975, 0
  %s977 = scalar_lea.vmem %s14, 4
  %v978 = vld [vmem:[%s977] sm:$0x3]
  %v980 = vsel %vm134, %v976, 0
  %v983 = vsel %vm137, %v978, 0
  %985 = vmatprep.subr.bf16.mxu0 0
  %986 = vmatpush1.bf16.msra.mxu0 %v983
  %987 = vmatprep.subr.bf16.mxu0 0
  %988 = vmatpush1.bf16.msra.mxu0 0
  %989 = vmatprep.subr.bf16.mxu0 0
  %990 = vmatpush1.bf16.msra.mxu0 0
  %991 = vmatprep.subr.bf16.mxu0 0
  %992 = vmatpush1.bf16.msra.mxu0 0
  %993 = vmatprep.subr.bf16.mxu0 0
  %994 = vmatpush1.bf16.msra.mxu0 0
  %995 = vmatprep.subr.bf16.mxu0 0
  %996 = vmatpush1.bf16.msra.mxu0 0
  %997 = vmatprep.subr.bf16.mxu0 0
  %998 = vmatpush1.bf16.msra.mxu0 0
  %999 = vmatprep.subr.bf16.mxu0 0
  %1000 = vmatpush1.bf16.msra.mxu0 0
  %1001 = vmatprep.subr.bf16.mxu0 0
  %1002 = vmatpush1.bf16.msra.mxu0 0
  %1003 = vmatprep.subr.bf16.mxu0 0
  %1004 = vmatpush1.bf16.msra.mxu0 0
  %1005 = vmatprep.subr.bf16.mxu0 0
  %1006 = vmatpush1.bf16.msra.mxu0 0
  %1007 = vmatprep.subr.bf16.mxu0 0
  %1008 = vmatpush1.bf16.msra.mxu0 0
  %1009 = vmatprep.subr.bf16.mxu0 0
  %1010 = vmatpush1.bf16.msra.mxu0 0
  %1011 = vmatprep.subr.bf16.mxu0 0
  %1012 = vmatpush1.bf16.msra.mxu0 0
  %1013 = vmatprep.subr.bf16.mxu0 0
  %1014 = vmatpush1.bf16.msra.mxu0 0
  %1015 = vmatprep.subr.bf16.mxu0 0
  %1016 = vmatpush1.bf16.msra.mxu0 0
  %1017 = vmatprep.mubr.bf16.mxu0 0
  %1018 = vmatmul.mubr.bf16.gmra.mrb[0].mxu0 %v980
  %v1019 = vpop.f32.mrb[0].mxu0
  %v1020 = vadd.f32 0.0, %v1019
  %v1021 = vpop.f32.mrb[0].mxu0
  %v1022 = vpop.f32.mrb[0].mxu0
  %v1023 = vadd.f32 0.0, %v1022
  %v1024 = vpop.f32.mrb[0].mxu0
  %1025 = vdwg.mxu0
  %v1026 = vadd.f32 %v966, %v1020
  %v1027 = vadd.f32 %v969, %v1023
  %v1028 = vld [vmem:[%s15] sm:$0x1]
  %v1030 = vlaneseq
  %v1031 = vshrl.u32 %v1030, 7
  %v1032 = vsub.s32 0, %v1031
  %v1033 = vrot.slane %v1028, %v1032
  %v1035 = vadd.f32 %v1026, %v1033
  %v1036 = vadd.f32 %v1027, %v1033
  %vm1037 = vcmp.gt.f32.partialorder %v1035, 0.0
  %vm1038 = vcmp.gt.f32.partialorder %v1036, 0.0
  %v1039 = vmul.f32 %v1035, 0.01
  %v1040 = vmul.f32 %v1036, 0.01
  %v1041 = vsel %vm1037, %v1035, %v1039
  %v1042 = vsel %vm1038, %v1036, %v1040
  %v1043 = vpack.c.bf16 %v1042, %v1041
  %v1045 = vshrl.u32 %v1043, 16
  %v1047 = vrot.slane %v1045, 7
  %v1048 = vshll.u32 %v1043, 16
  %v1050 = vor.u32 %v1047, %v1048
  %v1052 = vsel %vm85, 0, %v1050
  %v1053 = vsel %vm129, %v1052, 0
  %v1054 = vld [vmem:[%s16] sm:$0xf]
  %s1055 = scalar_lea.vmem %s16, 4
  %v1056 = vld [vmem:[%s1055] sm:$0xf]
  %v1057 = vsel %vm333, %v1043, 0
  %v1060 = vsel %vm336, %v1056, 0
  %1062 = vmatprep.subr.bf16.mxu0 0
  %1063 = vmatpush1.bf16.msra.mxu0 %v1060
  %1064 = vmatprep.subr.bf16.mxu0 0
  %1065 = vmatpush1.bf16.msra.mxu0 0
  %1066 = vmatprep.subr.bf16.mxu0 0
  %1067 = vmatpush1.bf16.msra.mxu0 0
  %1068 = vmatprep.subr.bf16.mxu0 0
  %1069 = vmatpush1.bf16.msra.mxu0 0
  %1070 = vmatprep.subr.bf16.mxu0 0
  %1071 = vmatpush1.bf16.msra.mxu0 0
  %1072 = vmatprep.subr.bf16.mxu0 0
  %1073 = vmatpush1.bf16.msra.mxu0 0
  %1074 = vmatprep.subr.bf16.mxu0 0
  %1075 = vmatpush1.bf16.msra.mxu0 0
  %1076 = vmatprep.subr.bf16.mxu0 0
  %1077 = vmatpush1.bf16.msra.mxu0 0
  %1078 = vmatprep.subr.bf16.mxu0 0
  %1079 = vmatpush1.bf16.msra.mxu0 0
  %1080 = vmatprep.subr.bf16.mxu0 0
  %1081 = vmatpush1.bf16.msra.mxu0 0
  %1082 = vmatprep.subr.bf16.mxu0 0
  %1083 = vmatpush1.bf16.msra.mxu0 0
  %1084 = vmatprep.subr.bf16.mxu0 0
  %1085 = vmatpush1.bf16.msra.mxu0 0
  %1086 = vmatprep.subr.bf16.mxu0 0
  %1087 = vmatpush1.bf16.msra.mxu0 0
  %1088 = vmatprep.subr.bf16.mxu0 0
  %1089 = vmatpush1.bf16.msra.mxu0 0
  %1090 = vmatprep.subr.bf16.mxu0 0
  %1091 = vmatpush1.bf16.msra.mxu0 0
  %1092 = vmatprep.subr.bf16.mxu0 0
  %1093 = vmatpush1.bf16.msra.mxu0 0
  %1094 = vmatprep.mubr.bf16.mxu0 0
  %1095 = vmatmul.mubr.bf16.gmra.mrb[0].mxu0 %v1057
  %v1096 = vpop.f32.mrb[0].mxu0
  %v1097 = vadd.f32 0.0, %v1096
  %v1098 = vpop.f32.mrb[0].mxu0
  %v1099 = vpop.f32.mrb[0].mxu0
  %v1100 = vadd.f32 0.0, %v1099
  %v1101 = vpop.f32.mrb[0].mxu0
  %1102 = vdwg.mxu0
  %v1104 = vsel %vm333, %v1053, 0
  %v1107 = vsel %vm336, %v1054, 0
  %1109 = vmatprep.subr.bf16.mxu0 0
  %1110 = vmatpush1.bf16.msra.mxu0 %v1107
  %1111 = vmatprep.subr.bf16.mxu0 0
  %1112 = vmatpush1.bf16.msra.mxu0 0
  %1113 = vmatprep.subr.bf16.mxu0 0
  %1114 = vmatpush1.bf16.msra.mxu0 0
  %1115 = vmatprep.subr.bf16.mxu0 0
  %1116 = vmatpush1.bf16.msra.mxu0 0
  %1117 = vmatprep.subr.bf16.mxu0 0
  %1118 = vmatpush1.bf16.msra.mxu0 0
  %1119 = vmatprep.subr.bf16.mxu0 0
  %1120 = vmatpush1.bf16.msra.mxu0 0
  %1121 = vmatprep.subr.bf16.mxu0 0
  %1122 = vmatpush1.bf16.msra.mxu0 0
  %1123 = vmatprep.subr.bf16.mxu0 0
  %1124 = vmatpush1.bf16.msra.mxu0 0
  %1125 = vmatprep.subr.bf16.mxu0 0
  %1126 = vmatpush1.bf16.msra.mxu0 0
  %1127 = vmatprep.subr.bf16.mxu0 0
  %1128 = vmatpush1.bf16.msra.mxu0 0
  %1129 = vmatprep.subr.bf16.mxu0 0
  %1130 = vmatpush1.bf16.msra.mxu0 0
  %1131 = vmatprep.subr.bf16.mxu0 0
  %1132 = vmatpush1.bf16.msra.mxu0 0
  %1133 = vmatprep.subr.bf16.mxu0 0
  %1134 = vmatpush1.bf16.msra.mxu0 0
  %1135 = vmatprep.subr.bf16.mxu0 0
  %1136 = vmatpush1.bf16.msra.mxu0 0
  %1137 = vmatprep.subr.bf16.mxu0 0
  %1138 = vmatpush1.bf16.msra.mxu0 0
  %1139 = vmatprep.subr.bf16.mxu0 0
  %1140 = vmatpush1.bf16.msra.mxu0 0
  %1141 = vmatprep.mubr.bf16.mxu0 0
  %1142 = vmatmul.mubr.bf16.gmra.mrb[0].mxu0 %v1104
  %v1143 = vpop.f32.mrb[0].mxu0
  %v1144 = vadd.f32 %v1097, %v1143
  %v1145 = vpop.f32.mrb[0].mxu0
  %v1146 = vpop.f32.mrb[0].mxu0
  %v1147 = vadd.f32 %v1100, %v1146
  %v1148 = vpop.f32.mrb[0].mxu0
  %1149 = vdwg.mxu0
  %v1150 = vrot.slane %v1048, 1
  %v1151 = vor.u32 %v1045, %v1150
  %v1153 = vsel %vm234, %v1151, 0
  %v1154 = vsel %vm251, %v1153, 0
  %s1155 = scalar_lea.vmem %s16, 8
  %v1156 = vld [vmem:[%s1155] sm:$0xf]
  %v1158 = vsel %vm333, %v1154, 0
  %v1161 = vsel %vm336, %v1156, 0
  %1163 = vmatprep.subr.bf16.mxu0 0
  %1164 = vmatpush1.bf16.msra.mxu0 %v1161
  %1165 = vmatprep.subr.bf16.mxu0 0
  %1166 = vmatpush1.bf16.msra.mxu0 0
  %1167 = vmatprep.subr.bf16.mxu0 0
  %1168 = vmatpush1.bf16.msra.mxu0 0
  %1169 = vmatprep.subr.bf16.mxu0 0
  %1170 = vmatpush1.bf16.msra.mxu0 0
  %1171 = vmatprep.subr.bf16.mxu0 0
  %1172 = vmatpush1.bf16.msra.mxu0 0
  %1173 = vmatprep.subr.bf16.mxu0 0
  %1174 = vmatpush1.bf16.msra.mxu0 0
  %1175 = vmatprep.subr.bf16.mxu0 0
  %1176 = vmatpush1.bf16.msra.mxu0 0
  %1177 = vmatprep.subr.bf16.mxu0 0
  %1178 = vmatpush1.bf16.msra.mxu0 0
  %1179 = vmatprep.subr.bf16.mxu0 0
  %1180 = vmatpush1.bf16.msra.mxu0 0
  %1181 = vmatprep.subr.bf16.mxu0 0
  %1182 = vmatpush1.bf16.msra.mxu0 0
  %1183 = vmatprep.subr.bf16.mxu0 0
  %1184 = vmatpush1.bf16.msra.mxu0 0
  %1185 = vmatprep.subr.bf16.mxu0 0
  %1186 = vmatpush1.bf16.msra.mxu0 0
  %1187 = vmatprep.subr.bf16.mxu0 0
  %1188 = vmatpush1.bf16.msra.mxu0 0
  %1189 = vmatprep.subr.bf16.mxu0 0
  %1190 = vmatpush1.bf16.msra.mxu0 0
  %1191 = vmatprep.subr.bf16.mxu0 0
  %1192 = vmatpush1.bf16.msra.mxu0 0
  %1193 = vmatprep.subr.bf16.mxu0 0
  %1194 = vmatpush1.bf16.msra.mxu0 0
  %1195 = vmatprep.mubr.bf16.mxu0 0
  %1196 = vmatmul.mubr.bf16.gmra.mrb[0].mxu0 %v1158
  %v1197 = vpop.f32.mrb[0].mxu0
  %v1198 = vadd.f32 0.0, %v1197
  %v1199 = vpop.f32.mrb[0].mxu0
  %v1200 = vpop.f32.mrb[0].mxu0
  %v1201 = vadd.f32 0.0, %v1200
  %v1202 = vpop.f32.mrb[0].mxu0
  %1203 = vdwg.mxu0
  %v1204 = vadd.f32 %v1144, %v1198
  %v1205 = vadd.f32 %v1147, %v1201
  %v1206 = vld [vmem:[%s17] sm:$0x1]
  %v1208 = vlaneseq
  %v1209 = vshrl.u32 %v1208, 7
  %v1210 = vsub.s32 0, %v1209
  %v1211 = vrot.slane %v1206, %v1210
  %v1213 = vadd.f32 %v1204, %v1211
  %v1214 = vadd.f32 %v1205, %v1211
  %v1215 = vtanh.pop %v1213
  %v1216 = vtanh.pop %v1214
  %v1217 = vadd.f32 %v863, %v1215
  %v1218 = vadd.f32 %v864, %v1216
  %v1219 = vpack.c.bf16 %v1218, %v1217
  %v1221 = vunpack.c.l.b16 %v1219
  %v1222 = vunpack.c.h.b16 %v1219
  %v1223 = vpack.c.b16 %v1221, %v1221
  %v1224 = vpack.c.b16 %v1222, %v1222
  %vm1227 = vcmask 27648
  %1228 = vst.msk [vmem:[%s18] sm:$0xf] %vm1227, %v1223
  %1229 = vst.msk [vmem:[%s18 + $0x4] sm:$0xf] %vm1227, %v1224
  %v1230 = vpack.c.bf16 %v864, %v863
  %v1232 = vshrl.u32 %v1230, 16
  %v1234 = vrot.slane %v1232, 7
  %v1235 = vshll.u32 %v1230, 16
  %v1237 = vor.u32 %v1234, %v1235
  %v1239 = vsel %vm85, 0, %v1237
  %v1240 = vsel %vm129, %v1239, 0
  %v1241 = vld [vmem:[%s10] sm:$0x3]
  %s1242 = scalar_lea.vmem %s10, 2
  %v1243 = vld [vmem:[%s1242] sm:$0x3]
  %v1244 = vsel %vm134, %v1230, 0
  %v1247 = vsel %vm137, %v1243, 0
  %1249 = vmatprep.subr.bf16.mxu0 0
  %1250 = vmatpush1.bf16.msra.mxu0 %v1247
  %1251 = vmatprep.subr.bf16.mxu0 0
  %1252 = vmatpush1.bf16.msra.mxu0 0
  %1253 = vmatprep.subr.bf16.mxu0 0
  %1254 = vmatpush1.bf16.msra.mxu0 0
  %1255 = vmatprep.subr.bf16.mxu0 0
  %1256 = vmatpush1.bf16.msra.mxu0 0
  %1257 = vmatprep.subr.bf16.mxu0 0
  %1258 = vmatpush1.bf16.msra.mxu0 0
  %1259 = vmatprep.subr.bf16.mxu0 0
  %1260 = vmatpush1.bf16.msra.mxu0 0
  %1261 = vmatprep.subr.bf16.mxu0 0
  %1262 = vmatpush1.bf16.msra.mxu0 0
  %1263 = vmatprep.subr.bf16.mxu0 0
  %1264 = vmatpush1.bf16.msra.mxu0 0
  %1265 = vmatprep.subr.bf16.mxu0 0
  %1266 = vmatpush1.bf16.msra.mxu0 0
  %1267 = vmatprep.subr.bf16.mxu0 0
  %1268 = vmatpush1.bf16.msra.mxu0 0
  %1269 = vmatprep.subr.bf16.mxu0 0
  %1270 = vmatpush1.bf16.msra.mxu0 0
  %1271 = vmatprep.subr.bf16.mxu0 0
  %1272 = vmatpush1.bf16.msra.mxu0 0
  %1273 = vmatprep.subr.bf16.mxu0 0
  %1274 = vmatpush1.bf16.msra.mxu0 0
  %1275 = vmatprep.subr.bf16.mxu0 0
  %1276 = vmatpush1.bf16.msra.mxu0 0
  %1277 = vmatprep.subr.bf16.mxu0 0
  %1278 = vmatpush1.bf16.msra.mxu0 0
  %1279 = vmatprep.subr.bf16.mxu0 0
  %1280 = vmatpush1.bf16.msra.mxu0 0
  %1281 = vmatprep.mubr.bf16.mxu0 0
  %1282 = vmatmul.mubr.bf16.gmra.mrb[0].mxu0 %v1244
  %v1283 = vpop.f32.mrb[0].mxu0
  %v1284 = vadd.f32 0.0, %v1283
  %v1285 = vpop.f32.mrb[0].mxu0
  %v1286 = vpop.f32.mrb[0].mxu0
  %v1287 = vadd.f32 0.0, %v1286
  %v1288 = vpop.f32.mrb[0].mxu0
  %1289 = vdwg.mxu0
  %v1291 = vsel %vm134, %v1240, 0
  %v1294 = vsel %vm137, %v1241, 0
  %1296 = vmatprep.subr.bf16.mxu0 0
  %1297 = vmatpush1.bf16.msra.mxu0 %v1294
  %1298 = vmatprep.subr.bf16.mxu0 0
  %1299 = vmatpush1.bf16.msra.mxu0 0
  %1300 = vmatprep.subr.bf16.mxu0 0
  %1301 = vmatpush1.bf16.msra.mxu0 0
  %1302 = vmatprep.subr.bf16.mxu0 0
  %1303 = vmatpush1.bf16.msra.mxu0 0
  %1304 = vmatprep.subr.bf16.mxu0 0
  %1305 = vmatpush1.bf16.msra.mxu0 0
  %1306 = vmatprep.subr.bf16.mxu0 0
  %1307 = vmatpush1.bf16.msra.mxu0 0
  %1308 = vmatprep.subr.bf16.mxu0 0
  %1309 = vmatpush1.bf16.msra.mxu0 0
  %1310 = vmatprep.subr.bf16.mxu0 0
  %1311 = vmatpush1.bf16.msra.mxu0 0
  %1312 = vmatprep.subr.bf16.mxu0 0
  %1313 = vmatpush1.bf16.msra.mxu0 0
  %1314 = vmatprep.subr.bf16.mxu0 0
  %1315 = vmatpush1.bf16.msra.mxu0 0
  %1316 = vmatprep.subr.bf16.mxu0 0
  %1317 = vmatpush1.bf16.msra.mxu0 0
  %1318 = vmatprep.subr.bf16.mxu0 0
  %1319 = vmatpush1.bf16.msra.mxu0 0
  %1320 = vmatprep.subr.bf16.mxu0 0
  %1321 = vmatpush1.bf16.msra.mxu0 0
  %1322 = vmatprep.subr.bf16.mxu0 0
  %1323 = vmatpush1.bf16.msra.mxu0 0
  %1324 = vmatprep.subr.bf16.mxu0 0
  %1325 = vmatpush1.bf16.msra.mxu0 0
  %1326 = vmatprep.subr.bf16.mxu0 0
  %1327 = vmatpush1.bf16.msra.mxu0 0
  %1328 = vmatprep.mubr.bf16.mxu0 0
  %1329 = vmatmul.mubr.bf16.gmra.mrb[0].mxu0 %v1291
  %v1330 = vpop.f32.mrb[0].mxu0
  %v1331 = vadd.f32 %v1284, %v1330
  %v1332 = vpop.f32.mrb[0].mxu0
  %v1333 = vpop.f32.mrb[0].mxu0
  %v1334 = vadd.f32 %v1287, %v1333
  %v1335 = vpop.f32.mrb[0].mxu0
  %1336 = vdwg.mxu0
  %v1337 = vrot.slane %v1235, 1
  %v1338 = vor.u32 %v1232, %v1337
  %v1340 = vsel %vm234, %v1338, 0
  %v1341 = vsel %vm251, %v1340, 0
  %s1342 = scalar_lea.vmem %s10, 4
  %v1343 = vld [vmem:[%s1342] sm:$0x3]
  %v1345 = vsel %vm134, %v1341, 0
  %v1348 = vsel %vm137, %v1343, 0
  %1350 = vmatprep.subr.bf16.mxu0 0
  %1351 = vmatpush1.bf16.msra.mxu0 %v1348
  %1352 = vmatprep.subr.bf16.mxu0 0
  %1353 = vmatpush1.bf16.msra.mxu0 0
  %1354 = vmatprep.subr.bf16.mxu0 0
  %1355 = vmatpush1.bf16.msra.mxu0 0
  %1356 = vmatprep.subr.bf16.mxu0 0
  %1357 = vmatpush1.bf16.msra.mxu0 0
  %1358 = vmatprep.subr.bf16.mxu0 0
  %1359 = vmatpush1.bf16.msra.mxu0 0
  %1360 = vmatprep.subr.bf16.mxu0 0
  %1361 = vmatpush1.bf16.msra.mxu0 0
  %1362 = vmatprep.subr.bf16.mxu0 0
  %1363 = vmatpush1.bf16.msra.mxu0 0
  %1364 = vmatprep.subr.bf16.mxu0 0
  %1365 = vmatpush1.bf16.msra.mxu0 0
  %1366 = vmatprep.subr.bf16.mxu0 0
  %1367 = vmatpush1.bf16.msra.mxu0 0
  %1368 = vmatprep.subr.bf16.mxu0 0
  %1369 = vmatpush1.bf16.msra.mxu0 0
  %1370 = vmatprep.subr.bf16.mxu0 0
  %1371 = vmatpush1.bf16.msra.mxu0 0
  %1372 = vmatprep.subr.bf16.mxu0 0
  %1373 = vmatpush1.bf16.msra.mxu0 0
  %1374 = vmatprep.subr.bf16.mxu0 0
  %1375 = vmatpush1.bf16.msra.mxu0 0
  %1376 = vmatprep.subr.bf16.mxu0 0
  %1377 = vmatpush1.bf16.msra.mxu0 0
  %1378 = vmatprep.subr.bf16.mxu0 0
  %1379 = vmatpush1.bf16.msra.mxu0 0
  %1380 = vmatprep.subr.bf16.mxu0 0
  %1381 = vmatpush1.bf16.msra.mxu0 0
  %1382 = vmatprep.mubr.bf16.mxu0 0
  %1383 = vmatmul.mubr.bf16.gmra.mrb[0].mxu0 %v1345
  %v1384 = vpop.f32.mrb[0].mxu0
  %v1385 = vadd.f32 0.0, %v1384
  %v1386 = vpop.f32.mrb[0].mxu0
  %v1387 = vpop.f32.mrb[0].mxu0
  %v1388 = vadd.f32 0.0, %v1387
  %v1389 = vpop.f32.mrb[0].mxu0
  %1390 = vdwg.mxu0
  %v1391 = vadd.f32 %v1331, %v1385
  %v1392 = vadd.f32 %v1334, %v1388
  %v1393 = vld [vmem:[%s11] sm:$0x1]
  %v1395 = vlaneseq
  %v1396 = vshrl.u32 %v1395, 7
  %v1397 = vsub.s32 0, %v1396
  %v1398 = vrot.slane %v1393, %v1397
  %v1400 = vadd.f32 %v1391, %v1398
  %v1401 = vadd.f32 %v1392, %v1398
  %vm1402 = vcmp.gt.f32.partialorder %v1400, 0.0
  %vm1403 = vcmp.gt.f32.partialorder %v1401, 0.0
  %v1404 = vmul.f32 %v1400, 0.01
  %v1405 = vmul.f32 %v1401, 0.01
  %v1406 = vsel %vm1402, %v1400, %v1404
  %v1407 = vsel %vm1403, %v1401, %v1405
  %v1408 = vpack.c.bf16 %v1407, %v1406
  %v1410 = vshrl.u32 %v1408, 16
  %v1412 = vrot.slane %v1410, 7
  %v1413 = vshll.u32 %v1408, 16
  %v1415 = vor.u32 %v1412, %v1413
  %v1417 = vsel %vm85, 0, %v1415
  %v1418 = vsel %vm129, %v1417, 0
  %v1419 = vld [vmem:[%s12] sm:$0xf]
  %s1420 = scalar_lea.vmem %s12, 4
  %v1421 = vld [vmem:[%s1420] sm:$0xf]
  %v1422 = vsel %vm333, %v1408, 0
  %v1425 = vsel %vm336, %v1421, 0
  %1427 = vmatprep.subr.bf16.mxu0 0
  %1428 = vmatpush1.bf16.msra.mxu0 %v1425
  %1429 = vmatprep.subr.bf16.mxu0 0
  %1430 = vmatpush1.bf16.msra.mxu0 0
  %1431 = vmatprep.subr.bf16.mxu0 0
  %1432 = vmatpush1.bf16.msra.mxu0 0
  %1433 = vmatprep.subr.bf16.mxu0 0
  %1434 = vmatpush1.bf16.msra.mxu0 0
  %1435 = vmatprep.subr.bf16.mxu0 0
  %1436 = vmatpush1.bf16.msra.mxu0 0
  %1437 = vmatprep.subr.bf16.mxu0 0
  %1438 = vmatpush1.bf16.msra.mxu0 0
  %1439 = vmatprep.subr.bf16.mxu0 0
  %1440 = vmatpush1.bf16.msra.mxu0 0
  %1441 = vmatprep.subr.bf16.mxu0 0
  %1442 = vmatpush1.bf16.msra.mxu0 0
  %1443 = vmatprep.subr.bf16.mxu0 0
  %1444 = vmatpush1.bf16.msra.mxu0 0
  %1445 = vmatprep.subr.bf16.mxu0 0
  %1446 = vmatpush1.bf16.msra.mxu0 0
  %1447 = vmatprep.subr.bf16.mxu0 0
  %1448 = vmatpush1.bf16.msra.mxu0 0
  %1449 = vmatprep.subr.bf16.mxu0 0
  %1450 = vmatpush1.bf16.msra.mxu0 0
  %1451 = vmatprep.subr.bf16.mxu0 0
  %1452 = vmatpush1.bf16.msra.mxu0 0
  %1453 = vmatprep.subr.bf16.mxu0 0
  %1454 = vmatpush1.bf16.msra.mxu0 0
  %1455 = vmatprep.subr.bf16.mxu0 0
  %1456 = vmatpush1.bf16.msra.mxu0 0
  %1457 = vmatprep.subr.bf16.mxu0 0
  %1458 = vmatpush1.bf16.msra.mxu0 0
  %1459 = vmatprep.mubr.bf16.mxu0 0
  %1460 = vmatmul.mubr.bf16.gmra.mrb[0].mxu0 %v1422
  %v1461 = vpop.f32.mrb[0].mxu0
  %v1462 = vadd.f32 0.0, %v1461
  %v1463 = vpop.f32.mrb[0].mxu0
  %v1464 = vpop.f32.mrb[0].mxu0
  %v1465 = vadd.f32 0.0, %v1464
  %v1466 = vpop.f32.mrb[0].mxu0
  %1467 = vdwg.mxu0
  %v1469 = vsel %vm333, %v1418, 0
  %v1472 = vsel %vm336, %v1419, 0
  %1474 = vmatprep.subr.bf16.mxu0 0
  %1475 = vmatpush1.bf16.msra.mxu0 %v1472
  %1476 = vmatprep.subr.bf16.mxu0 0
  %1477 = vmatpush1.bf16.msra.mxu0 0
  %1478 = vmatprep.subr.bf16.mxu0 0
  %1479 = vmatpush1.bf16.msra.mxu0 0
  %1480 = vmatprep.subr.bf16.mxu0 0
  %1481 = vmatpush1.bf16.msra.mxu0 0
  %1482 = vmatprep.subr.bf16.mxu0 0
  %1483 = vmatpush1.bf16.msra.mxu0 0
  %1484 = vmatprep.subr.bf16.mxu0 0
  %1485 = vmatpush1.bf16.msra.mxu0 0
  %1486 = vmatprep.subr.bf16.mxu0 0
  %1487 = vmatpush1.bf16.msra.mxu0 0
  %1488 = vmatprep.subr.bf16.mxu0 0
  %1489 = vmatpush1.bf16.msra.mxu0 0
  %1490 = vmatprep.subr.bf16.mxu0 0
  %1491 = vmatpush1.bf16.msra.mxu0 0
  %1492 = vmatprep.subr.bf16.mxu0 0
  %1493 = vmatpush1.bf16.msra.mxu0 0
  %1494 = vmatprep.subr.bf16.mxu0 0
  %1495 = vmatpush1.bf16.msra.mxu0 0
  %1496 = vmatprep.subr.bf16.mxu0 0
  %1497 = vmatpush1.bf16.msra.mxu0 0
  %1498 = vmatprep.subr.bf16.mxu0 0
  %1499 = vmatpush1.bf16.msra.mxu0 0
  %1500 = vmatprep.subr.bf16.mxu0 0
  %1501 = vmatpush1.bf16.msra.mxu0 0
  %1502 = vmatprep.subr.bf16.mxu0 0
  %1503 = vmatpush1.bf16.msra.mxu0 0
  %1504 = vmatprep.subr.bf16.mxu0 0
  %1505 = vmatpush1.bf16.msra.mxu0 0
  %1506 = vmatprep.mubr.bf16.mxu0 0
  %1507 = vmatmul.mubr.bf16.gmra.mrb[0].mxu0 %v1469
  %v1508 = vpop.f32.mrb[0].mxu0
  %v1509 = vadd.f32 %v1462, %v1508
  %v1510 = vpop.f32.mrb[0].mxu0
  %v1511 = vpop.f32.mrb[0].mxu0
  %v1512 = vadd.f32 %v1465, %v1511
  %v1513 = vpop.f32.mrb[0].mxu0
  %1514 = vdwg.mxu0
  %v1515 = vrot.slane %v1413, 1
  %v1516 = vor.u32 %v1410, %v1515
  %v1518 = vsel %vm234, %v1516, 0
  %v1519 = vsel %vm251, %v1518, 0
  %s1520 = scalar_lea.vmem %s12, 8
  %v1521 = vld [vmem:[%s1520] sm:$0xf]
  %v1523 = vsel %vm333, %v1519, 0
  %v1526 = vsel %vm336, %v1521, 0
  %1528 = vmatprep.subr.bf16.mxu0 0
  %1529 = vmatpush1.bf16.msra.mxu0 %v1526
  %1530 = vmatprep.subr.bf16.mxu0 0
  %1531 = vmatpush1.bf16.msra.mxu0 0
  %1532 = vmatprep.subr.bf16.mxu0 0
  %1533 = vmatpush1.bf16.msra.mxu0 0
  %1534 = vmatprep.subr.bf16.mxu0 0
  %1535 = vmatpush1.bf16.msra.mxu0 0
  %1536 = vmatprep.subr.bf16.mxu0 0
  %1537 = vmatpush1.bf16.msra.mxu0 0
  %1538 = vmatprep.subr.bf16.mxu0 0
  %1539 = vmatpush1.bf16.msra.mxu0 0
  %1540 = vmatprep.subr.bf16.mxu0 0
  %1541 = vmatpush1.bf16.msra.mxu0 0
  %1542 = vmatprep.subr.bf16.mxu0 0
  %1543 = vmatpush1.bf16.msra.mxu0 0
  %1544 = vmatprep.subr.bf16.mxu0 0
  %1545 = vmatpush1.bf16.msra.mxu0 0
  %1546 = vmatprep.subr.bf16.mxu0 0
  %1547 = vmatpush1.bf16.msra.mxu0 0
  %1548 = vmatprep.subr.bf16.mxu0 0
  %1549 = vmatpush1.bf16.msra.mxu0 0
  %1550 = vmatprep.subr.bf16.mxu0 0
  %1551 = vmatpush1.bf16.msra.mxu0 0
  %1552 = vmatprep.subr.bf16.mxu0 0
  %1553 = vmatpush1.bf16.msra.mxu0 0
  %1554 = vmatprep.subr.bf16.mxu0 0
  %1555 = vmatpush1.bf16.msra.mxu0 0
  %1556 = vmatprep.subr.bf16.mxu0 0
  %1557 = vmatpush1.bf16.msra.mxu0 0
  %1558 = vmatprep.subr.bf16.mxu0 0
  %1559 = vmatpush1.bf16.msra.mxu0 0
  %1560 = vmatprep.mubr.bf16.mxu0 0
  %1561 = vmatmul.mubr.bf16.gmra.mrb[0].mxu0 %v1523
  %v1562 = vpop.f32.mrb[0].mxu0
  %v1563 = vadd.f32 0.0, %v1562
  %v1564 = vpop.f32.mrb[0].mxu0
  %v1565 = vpop.f32.mrb[0].mxu0
  %v1566 = vadd.f32 0.0, %v1565
  %v1567 = vpop.f32.mrb[0].mxu0
  %1568 = vdwg.mxu0
  %v1569 = vadd.f32 %v1509, %v1563
  %v1570 = vadd.f32 %v1512, %v1566
  %v1571 = vld [vmem:[%s13] sm:$0x1]
  %v1573 = vlaneseq
  %v1574 = vshrl.u32 %v1573, 7
  %v1575 = vsub.s32 0, %v1574
  %v1576 = vrot.slane %v1571, %v1575
  %v1578 = vadd.f32 %v1569, %v1576
  %v1579 = vadd.f32 %v1570, %v1576
  %v1580 = vtanh.pop %v1578
  %v1581 = vtanh.pop %v1579
  %v1582 = vsub.f32 %v499, %v1580
  %v1583 = vsub.f32 %v500, %v1581
  %v1584 = vpack.c.bf16 %v1583, %v1582
  %v1586 = vunpack.c.l.b16 %v1584
  %v1587 = vunpack.c.h.b16 %v1584
  %v1588 = vpack.c.b16 %v1586, %v1586
  %v1589 = vpack.c.b16 %v1587, %v1587
  %1592 = vst.msk [vmem:[%s19] sm:$0xf] %vm1227, %v1588
  %1593 = vst.msk [vmem:[%s19 + $0x4] sm:$0xf] %vm1227, %v1589
  // Predicated region
  $region74: #{sci_net_forward.3} parent=0 // pred_check
    _
  $region75: #{sci_net_forward.3} parent=0 // pred_check_branch
    %1595 = sbr.rel (0) target = $region77
  $region76: #{sci_net_forward.3} parent=0 // pred_region
    _
  $region77: #{sci_net_forward.3} parent=0 // pred_fallthru
    _
  // Predicated region
  $region78: #{sci_net_forward.3} parent=0 // pred_check
    _
  $region79: #{sci_net_forward.3} parent=0 // pred_check_branch
    %1597 = sbr.rel (0) target = $region81
  $region80: #{sci_net_forward.3} parent=0 // pred_region
    _
  $region81: #{sci_net_forward.3} parent=0 // pred_fallthru
    _
  // Predicated region
  $region82: #{sci_net_forward.3} parent=0 // pred_check
    _
  $region83: #{sci_net_forward.3} parent=0 // pred_check_branch
    %1599 = sbr.rel (0) target = $region85
  $region84: #{sci_net_forward.3} parent=0 // pred_region
    _
  $region85: #{sci_net_forward.3} parent=0 // pred_fallthru
    _
  // Predicated region
  $region86: #{sci_net_forward.3} parent=0 // pred_check
    _
  $region87: #{sci_net_forward.3} parent=0 // pred_check_branch
    %1601 = sbr.rel (0) target = $region89
  $region88: #{sci_net_forward.3} parent=0 // pred_region
    _
  $region89: #{sci_net_forward.3} parent=0 // pred_fallthru
    _

</llo_original>
